<compile_context>
chip_gen: v7x
topology: tpu7x:2x2x1
jax: 0.10.0
libtpu: 0.0.40
codegen_flags: <defaults>
</compile_context>

<pallas_src>
import jax
import jax.numpy as jnp
from jax.experimental import pallas as pl
from jax.experimental.pallas import tpu as pltpu
import numpy as np

INPUT_DIM = 16
HIDDEN = 64
N_HEADS = 4
N_LAYERS = 2
FFN = HIDDEN * 4
LN_EPS = 1e-5
OUT_LANES = 128          # lane-dense output slab; real output is column 0


def _layernorm(x, gamma, beta):
    m = jnp.mean(x, axis=-1, keepdims=True)
    c = x - m
    var = jnp.mean(c * c, axis=-1, keepdims=True)
    return c * jax.lax.rsqrt(var + LN_EPS) * gamma + beta


def transformer_kernel(x_ref, wi_ref, wvo_ref, w1_ref, w2_ref,
                       lvec_ref, bf1_ref, gvec_ref, out_ref):
    # gvec rows: 0 = input_proj bias, 1 = output_proj weight row, 2 = output bias (broadcast)
    gv = gvec_ref[...]                                   # (3, H) f32
    bi = gv[0:1, :]
    wout = gv[1:2, :]
    bout = gv[2:3, 0:1]                                  # (1, 1)

    x = x_ref[...].astype(jnp.bfloat16)                  # (tb, Din)
    h = jnp.dot(x, wi_ref[...], preferred_element_type=jnp.float32) + bi   # (tb, H) f32

    for l in range(N_LAYERS):
        lv = lvec_ref[l]                                 # (6, H) f32
        bvo, g1, be1 = lv[0:1, :], lv[1:2, :], lv[2:3, :]
        bf2, g2, be2 = lv[3:4, :], lv[4:5, :], lv[5:6, :]

        # seq_len == 1  =>  attention == out_proj(V) == h @ (Wv^T Wo^T) + bvo  (fused offline)
        attn = jnp.dot(h.astype(jnp.bfloat16), wvo_ref[l],
                       preferred_element_type=jnp.float32) + bvo
        h = _layernorm(h + attn, g1, be1)                # post-norm (norm_first=False)

        ff = jnp.maximum(
            jnp.dot(h.astype(jnp.bfloat16), w1_ref[l],
                    preferred_element_type=jnp.float32) + bf1_ref[l], 0.0)
        ff = jnp.dot(ff.astype(jnp.bfloat16), w2_ref[l],
                     preferred_element_type=jnp.float32) + bf2
        h = _layernorm(h + ff, g2, be2)

    # Final N=1 projection on the VPU/XLU (no 1-column MXU matmul); store lane-dense.
    out_col = jnp.sum(h * wout, axis=-1, keepdims=True) + bout    # (tb, 1) f32
    out_ref[...] = jnp.broadcast_to(out_col, out_ref.shape)       # (tb, 128)


def small_transformer_forward(x, kw, *, tb=128):
    """x: (B, input_dim) f32 -> (B,) f32.  kw: dict of kernel-layout weights.

    tb: batch tile (sweep {128, 256, 512}; keep >=2 grid steps for v7x megacore).
    """
    B, Din = x.shape
    B_pad = ((B + tb - 1) // tb) * tb
    if B_pad != B:
        x = jnp.pad(x, ((0, B_pad - B), (0, 0)))

    weights = [kw["wi"], kw["wvo"], kw["w1"], kw["w2"],
               kw["lvec"], kw["bf1"], kw["gvec"]]

    def full_spec(arr):
        return pl.BlockSpec(arr.shape, lambda i, n=arr.ndim: (0,) * n)

    in_specs = [pl.BlockSpec((tb, Din), lambda i: (i, 0))] + [full_spec(w) for w in weights]
    out_specs = pl.BlockSpec((tb, OUT_LANES), lambda i: (i, 0))

    out = pl.pallas_call(
        transformer_kernel,
        out_shape=jax.ShapeDtypeStruct((B_pad, OUT_LANES), jnp.float32),
        grid_spec=pltpu.PrefetchScalarGridSpec(
            num_scalar_prefetch=0,
            grid=(B_pad // tb,),
            in_specs=in_specs,
            out_specs=out_specs),
        compiler_params=pltpu.CompilerParams(dimension_semantics=("parallel",)),
    )(x, *weights)
    return out[:B, 0]


# ---------------------------------------------------------------------------
# Deterministic parameter construction (PyTorch layouts), then repack for the
# kernel (transposed so the kernel computes x @ W, Wv*Wo fused, bf16 matrices).
# ---------------------------------------------------------------------------
def init_params(key):
    def nrm(k, shape, scale=0.05):
        return scale * jax.random.normal(k, shape, dtype=jnp.float32)

    keys = jax.random.split(key, 4 + 6 * N_LAYERS)
    ki = iter(keys)
    P = {
        "input_w": nrm(next(ki), (HIDDEN, INPUT_DIM)),
        "input_b": nrm(next(ki), (HIDDEN,)),
        "out_w": nrm(next(ki), (1, HIDDEN)),
        "out_b": nrm(next(ki), (1,)),
        "layers": [],
    }
    for _ in range(N_LAYERS):
        P["layers"].append({
            "in_proj_w": nrm(next(ki), (3 * HIDDEN, HIDDEN)),
            "in_proj_b": nrm(next(ki), (3 * HIDDEN,)),
            "out_proj_w": nrm(next(ki), (HIDDEN, HIDDEN)),
            "out_proj_b": nrm(next(ki), (HIDDEN,)),
            "w1": nrm(next(ki), (FFN, HIDDEN)),
            "b1": jnp.zeros((FFN,), jnp.float32),
            "w2": nrm(next(ki), (HIDDEN, FFN)),
            "b2": jnp.zeros((HIDDEN,), jnp.float32),
            "g1": jnp.ones((HIDDEN,), jnp.float32),
            "be1": jnp.zeros((HIDDEN,), jnp.float32),
            "g2": jnp.ones((HIDDEN,), jnp.float32),
            "be2": jnp.zeros((HIDDEN,), jnp.float32),
        })
    return P


def pack_for_kernel(P):
    wvo_l, w1_l, w2_l, lvec_l, bf1_l = [], [], [], [], []
    for L in P["layers"]:
        wv = L["in_proj_w"][2 * HIDDEN:3 * HIDDEN]          # V slice of in_proj (H, H)
        bv = L["in_proj_b"][2 * HIDDEN:3 * HIDDEN]
        wo, bo = L["out_proj_w"], L["out_proj_b"]
        # fold V-projection and out-projection (exact for seq_len == 1); fuse in f32
        wvo = wv.T @ wo.T                                   # (H, H) kernel layout
        bvo = bv @ wo.T + bo                                # (H,)
        wvo_l.append(wvo)
        w1_l.append(L["w1"].T)                              # (H, FFN)
        w2_l.append(L["w2"].T)                              # (FFN, H)
        lvec_l.append(jnp.stack(                            # (6, H) f32
            [bvo, L["g1"], L["be1"], L["b2"], L["g2"], L["be2"]], axis=0))
        bf1_l.append(L["b1"][None, :])                      # (1, FFN)

    st = lambda xs: jnp.stack(xs, axis=0)
    gvec = jnp.stack([P["input_b"],
                      P["out_w"][0],
                      jnp.full((HIDDEN,), P["out_b"][0], dtype=jnp.float32)], axis=0)
    return {
        "wi": P["input_w"].T.astype(jnp.bfloat16),          # (Din, H)
        "wvo": st(wvo_l).astype(jnp.bfloat16),              # (L, H, H)
        "w1": st(w1_l).astype(jnp.bfloat16),                # (L, H, FFN)
        "w2": st(w2_l).astype(jnp.bfloat16),                # (L, FFN, H)
        "lvec": st(lvec_l).astype(jnp.float32),             # (L, 6, H)
        "bf1": st(bf1_l).astype(jnp.float32),               # (L, 1, FFN)
        "gvec": gvec.astype(jnp.float32),                   # (3, H)
    }


# Pure-JAX f32 reference reproducing the PyTorch forward literally (full multi-
# head attention incl. softmax over the length-1 sequence).
def ref_forward(x, P):
    B = x.shape[0]
    dh = HIDDEN // N_HEADS
    h = (x @ P["input_w"].T + P["input_b"])[:, None, :]     # (B, 1, H)
    for L in P["layers"]:
        wq, wk, wv = jnp.split(L["in_proj_w"], 3, axis=0)
        bq, bk, bv = jnp.split(L["in_proj_b"], 3, axis=0)
        q, k, v = h @ wq.T + bq, h @ wk.T + bk, h @ wv.T + bv
        heads = lambda t: t.reshape(B, 1, N_HEADS, dh).transpose(0, 2, 1, 3)
        qh, kh, vh = heads(q), heads(k), heads(v)
        scores = (qh @ kh.transpose(0, 1, 3, 2)) / jnp.sqrt(dh)
        att = jax.nn.softmax(scores, axis=-1) @ vh
        att = att.transpose(0, 2, 1, 3).reshape(B, 1, HIDDEN)
        att = att @ L["out_proj_w"].T + L["out_proj_b"]
        h = _layernorm(h + att, L["g1"], L["be1"])
        ff = jax.nn.relu(h @ L["w1"].T + L["b1"]) @ L["w2"].T + L["b2"]
        h = _layernorm(h + ff, L["g2"], L["be2"])
    h = h.mean(axis=1)                                      # (B, H)
    return (h @ P["out_w"].T + P["out_b"])[:, 0]


if __name__ == "__main__":
    key = jax.random.PRNGKey(0)
    kx, kp = jax.random.split(key)
    B = 240                                   # non-multiple of tb exercises the pad path
    x = jax.random.normal(kx, (B, INPUT_DIM), dtype=jnp.float32)

    P = init_params(kp)
    kw = pack_for_kernel(P)

    out = small_transformer_forward(x, kw, tb=128)
    out = jax.block_until_ready(out)

    ref = ref_forward(x, P)
    assert out.shape == (B,)
    # bf16 matmul operands vs f32 reference -> relaxed tolerance.
    assert np.allclose(np.asarray(out), np.asarray(ref), atol=2e-2, rtol=2e-2), (
        float(np.max(np.abs(np.asarray(out) - np.asarray(ref)))))
    print("KERNEL_OK")
</pallas_src>

<mosaic_0001>
module attributes {stable_mosaic.version = 11 : i64} {
  func.func @transformer_kernel(%arg0: i32, %arg1: memref<128x16xf32, #tpu.memory_space<vmem>>, %arg2: memref<16x64xbf16, #tpu.memory_space<vmem>>, %arg3: memref<2x64x64xbf16, #tpu.memory_space<vmem>>, %arg4: memref<2x64x256xbf16, #tpu.memory_space<vmem>>, %arg5: memref<2x256x64xbf16, #tpu.memory_space<vmem>>, %arg6: memref<2x6x64xf32, #tpu.memory_space<vmem>>, %arg7: memref<2x1x256xf32, #tpu.memory_space<vmem>>, %arg8: memref<3x64xf32, #tpu.memory_space<vmem>>, %arg9: memref<128x128xf32, #tpu.memory_space<vmem>>) attributes {dimension_semantics = [#tpu.dimension_semantics<parallel>], iteration_bounds = array<i64: 2>, scalar_prefetch = 0 : i64, scratch_operands = 0 : i64, tpu.core_type = #tpu.core_type<tc>, window_params = [{transform_indices = @transform_0, window_bounds = array<i64: 128, 16>}, {pipeline_mode = #tpu.pipeline_mode<synchronous>, transform_indices = @transform_1, window_bounds = array<i64: 16, 64>}, {pipeline_mode = #tpu.pipeline_mode<synchronous>, transform_indices = @transform_2, window_bounds = array<i64: 2, 64, 64>}, {pipeline_mode = #tpu.pipeline_mode<synchronous>, transform_indices = @transform_3, window_bounds = array<i64: 2, 64, 256>}, {pipeline_mode = #tpu.pipeline_mode<synchronous>, transform_indices = @transform_4, window_bounds = array<i64: 2, 256, 64>}, {pipeline_mode = #tpu.pipeline_mode<synchronous>, transform_indices = @transform_5, window_bounds = array<i64: 2, 6, 64>}, {pipeline_mode = #tpu.pipeline_mode<synchronous>, transform_indices = @transform_6, window_bounds = array<i64: 2, 1, 256>}, {pipeline_mode = #tpu.pipeline_mode<synchronous>, transform_indices = @transform_7, window_bounds = array<i64: 3, 64>}, {transform_indices = @transform_8, window_bounds = array<i64: 128, 128>}]} {
    %c0 = arith.constant 0 : index
    %c0_0 = arith.constant 0 : index
    %0 = vector.load %arg8[%c0, %c0_0] : memref<3x64xf32, #tpu.memory_space<vmem>>, vector<3x64xf32>
    %1 = vector.extract_strided_slice %0 {offsets = [0, 0], sizes = [1, 64], strides = [1, 1]} : vector<3x64xf32> to vector<1x64xf32>
    %2 = vector.extract_strided_slice %0 {offsets = [1, 0], sizes = [1, 64], strides = [1, 1]} : vector<3x64xf32> to vector<1x64xf32>
    %3 = vector.extract_strided_slice %0 {offsets = [2, 0], sizes = [1, 1], strides = [1, 1]} : vector<3x64xf32> to vector<1x1xf32>
    %c0_1 = arith.constant 0 : index
    %c0_2 = arith.constant 0 : index
    %4 = vector.load %arg1[%c0_1, %c0_2] : memref<128x16xf32, #tpu.memory_space<vmem>>, vector<128x16xf32>
    %5 = arith.truncf %4 : vector<128x16xf32> to vector<128x16xbf16>
    %c0_3 = arith.constant 0 : index
    %c0_4 = arith.constant 0 : index
    %6 = vector.load %arg2[%c0_3, %c0_4] : memref<16x64xbf16, #tpu.memory_space<vmem>>, vector<16x64xbf16>
    %cst = arith.constant dense<0.000000e+00> : vector<128x64xf32>
    %7 = tpu.matmul %5, %6, %cst {dimension_numbers = #tpu.dot_dimension_numbers<[1], [0], [0], [1], [0, 0, 1, 1], [], []>} : vector<128x16xbf16>, vector<16x64xbf16>, vector<128x64xf32> -> vector<128x64xf32>
    %8 = vector.broadcast %1 : vector<1x64xf32> to vector<128x64xf32>
    %9 = arith.addf %7, %8 : vector<128x64xf32>
    %c0_5 = arith.constant 0 : index
    %c0_6 = arith.constant 0 : index
    %c0_7 = arith.constant 0 : index
    %10 = vector.load %arg6[%c0_5, %c0_6, %c0_7] : memref<2x6x64xf32, #tpu.memory_space<vmem>>, vector<1x6x64xf32>
    %11 = vector.shape_cast %10 : vector<1x6x64xf32> to vector<6x64xf32>
    %12 = vector.extract_strided_slice %11 {offsets = [0, 0], sizes = [1, 64], strides = [1, 1]} : vector<6x64xf32> to vector<1x64xf32>
    %13 = vector.extract_strided_slice %11 {offsets = [1, 0], sizes = [1, 64], strides = [1, 1]} : vector<6x64xf32> to vector<1x64xf32>
    %14 = vector.extract_strided_slice %11 {offsets = [2, 0], sizes = [1, 64], strides = [1, 1]} : vector<6x64xf32> to vector<1x64xf32>
    %15 = vector.extract_strided_slice %11 {offsets = [3, 0], sizes = [1, 64], strides = [1, 1]} : vector<6x64xf32> to vector<1x64xf32>
    %16 = vector.extract_strided_slice %11 {offsets = [4, 0], sizes = [1, 64], strides = [1, 1]} : vector<6x64xf32> to vector<1x64xf32>
    %17 = vector.extract_strided_slice %11 {offsets = [5, 0], sizes = [1, 64], strides = [1, 1]} : vector<6x64xf32> to vector<1x64xf32>
    %18 = arith.truncf %9 : vector<128x64xf32> to vector<128x64xbf16>
    %c0_8 = arith.constant 0 : index
    %c0_9 = arith.constant 0 : index
    %c0_10 = arith.constant 0 : index
    %19 = vector.load %arg3[%c0_8, %c0_9, %c0_10] : memref<2x64x64xbf16, #tpu.memory_space<vmem>>, vector<1x64x64xbf16>
    %20 = vector.shape_cast %19 : vector<1x64x64xbf16> to vector<64x64xbf16>
    %cst_11 = arith.constant dense<0.000000e+00> : vector<128x64xf32>
    %21 = tpu.matmul %18, %20, %cst_11 {dimension_numbers = #tpu.dot_dimension_numbers<[1], [0], [0], [1], [0, 0, 1, 1], [], []>} : vector<128x64xbf16>, vector<64x64xbf16>, vector<128x64xf32> -> vector<128x64xf32>
    %22 = vector.broadcast %12 : vector<1x64xf32> to vector<128x64xf32>
    %23 = arith.addf %21, %22 : vector<128x64xf32>
    %24 = arith.addf %9, %23 : vector<128x64xf32>
    %cst_12 = arith.constant dense<0.000000e+00> : vector<128xf32>
    %25 = vector.multi_reduction <add>, %24, %cst_12 [1] : vector<128x64xf32> to vector<128xf32>
    %26 = vector.shape_cast %25 : vector<128xf32> to vector<128x1xf32>
    %cst_13 = arith.constant 6.400000e+01 : f32
    %27 = vector.broadcast %cst_13 : f32 to vector<128x1xf32>
    %28 = arith.divf %26, %27 : vector<128x1xf32>
    %29 = vector.broadcast %28 : vector<128x1xf32> to vector<128x64xf32>
    %30 = arith.subf %24, %29 : vector<128x64xf32>
    %31 = arith.mulf %30, %30 : vector<128x64xf32>
    %cst_14 = arith.constant dense<0.000000e+00> : vector<128xf32>
    %32 = vector.multi_reduction <add>, %31, %cst_14 [1] : vector<128x64xf32> to vector<128xf32>
    %33 = vector.shape_cast %32 : vector<128xf32> to vector<128x1xf32>
    %cst_15 = arith.constant 6.400000e+01 : f32
    %34 = vector.broadcast %cst_15 : f32 to vector<128x1xf32>
    %35 = arith.divf %33, %34 : vector<128x1xf32>
    %cst_16 = arith.constant 9.99999974E-6 : f32
    %36 = vector.broadcast %cst_16 : f32 to vector<128x1xf32>
    %37 = arith.addf %35, %36 : vector<128x1xf32>
    %38 = math.rsqrt %37 : vector<128x1xf32>
    %39 = vector.broadcast %38 : vector<128x1xf32> to vector<128x64xf32>
    %40 = arith.mulf %30, %39 : vector<128x64xf32>
    %41 = vector.broadcast %13 : vector<1x64xf32> to vector<128x64xf32>
    %42 = arith.mulf %40, %41 : vector<128x64xf32>
    %43 = vector.broadcast %14 : vector<1x64xf32> to vector<128x64xf32>
    %44 = arith.addf %42, %43 : vector<128x64xf32>
    %45 = arith.truncf %44 : vector<128x64xf32> to vector<128x64xbf16>
    %c0_17 = arith.constant 0 : index
    %c0_18 = arith.constant 0 : index
    %c0_19 = arith.constant 0 : index
    %46 = vector.load %arg4[%c0_17, %c0_18, %c0_19] : memref<2x64x256xbf16, #tpu.memory_space<vmem>>, vector<1x64x256xbf16>
    %47 = vector.shape_cast %46 : vector<1x64x256xbf16> to vector<64x256xbf16>
    %cst_20 = arith.constant dense<0.000000e+00> : vector<128x256xf32>
    %48 = tpu.matmul %45, %47, %cst_20 {dimension_numbers = #tpu.dot_dimension_numbers<[1], [0], [0], [1], [0, 0, 1, 1], [], []>} : vector<128x64xbf16>, vector<64x256xbf16>, vector<128x256xf32> -> vector<128x256xf32>
    %c0_21 = arith.constant 0 : index
    %c0_22 = arith.constant 0 : index
    %c0_23 = arith.constant 0 : index
    %49 = vector.load %arg7[%c0_21, %c0_22, %c0_23] : memref<2x1x256xf32, #tpu.memory_space<vmem>>, vector<1x1x256xf32>
    %50 = vector.shape_cast %49 : vector<1x1x256xf32> to vector<1x256xf32>
    %51 = vector.broadcast %50 : vector<1x256xf32> to vector<128x256xf32>
    %52 = arith.addf %48, %51 : vector<128x256xf32>
    %cst_24 = arith.constant 0.000000e+00 : f32
    %53 = vector.broadcast %cst_24 : f32 to vector<128x256xf32>
    %54 = arith.maximumf %52, %53 : vector<128x256xf32>
    %55 = arith.truncf %54 : vector<128x256xf32> to vector<128x256xbf16>
    %c0_25 = arith.constant 0 : index
    %c0_26 = arith.constant 0 : index
    %c0_27 = arith.constant 0 : index
    %56 = vector.load %arg5[%c0_25, %c0_26, %c0_27] : memref<2x256x64xbf16, #tpu.memory_space<vmem>>, vector<1x256x64xbf16>
    %57 = vector.shape_cast %56 : vector<1x256x64xbf16> to vector<256x64xbf16>
    %cst_28 = arith.constant dense<0.000000e+00> : vector<128x64xf32>
    %58 = tpu.matmul %55, %57, %cst_28 {dimension_numbers = #tpu.dot_dimension_numbers<[1], [0], [0], [1], [0, 0, 1, 1], [], []>} : vector<128x256xbf16>, vector<256x64xbf16>, vector<128x64xf32> -> vector<128x64xf32>
    %59 = vector.broadcast %15 : vector<1x64xf32> to vector<128x64xf32>
    %60 = arith.addf %58, %59 : vector<128x64xf32>
    %61 = arith.addf %44, %60 : vector<128x64xf32>
    %cst_29 = arith.constant dense<0.000000e+00> : vector<128xf32>
    %62 = vector.multi_reduction <add>, %61, %cst_29 [1] : vector<128x64xf32> to vector<128xf32>
    %63 = vector.shape_cast %62 : vector<128xf32> to vector<128x1xf32>
    %cst_30 = arith.constant 6.400000e+01 : f32
    %64 = vector.broadcast %cst_30 : f32 to vector<128x1xf32>
    %65 = arith.divf %63, %64 : vector<128x1xf32>
    %66 = vector.broadcast %65 : vector<128x1xf32> to vector<128x64xf32>
    %67 = arith.subf %61, %66 : vector<128x64xf32>
    %68 = arith.mulf %67, %67 : vector<128x64xf32>
    %cst_31 = arith.constant dense<0.000000e+00> : vector<128xf32>
    %69 = vector.multi_reduction <add>, %68, %cst_31 [1] : vector<128x64xf32> to vector<128xf32>
    %70 = vector.shape_cast %69 : vector<128xf32> to vector<128x1xf32>
    %cst_32 = arith.constant 6.400000e+01 : f32
    %71 = vector.broadcast %cst_32 : f32 to vector<128x1xf32>
    %72 = arith.divf %70, %71 : vector<128x1xf32>
    %cst_33 = arith.constant 9.99999974E-6 : f32
    %73 = vector.broadcast %cst_33 : f32 to vector<128x1xf32>
    %74 = arith.addf %72, %73 : vector<128x1xf32>
    %75 = math.rsqrt %74 : vector<128x1xf32>
    %76 = vector.broadcast %75 : vector<128x1xf32> to vector<128x64xf32>
    %77 = arith.mulf %67, %76 : vector<128x64xf32>
    %78 = vector.broadcast %16 : vector<1x64xf32> to vector<128x64xf32>
    %79 = arith.mulf %77, %78 : vector<128x64xf32>
    %80 = vector.broadcast %17 : vector<1x64xf32> to vector<128x64xf32>
    %81 = arith.addf %79, %80 : vector<128x64xf32>
    %c1 = arith.constant 1 : index
    %c0_34 = arith.constant 0 : index
    %c0_35 = arith.constant 0 : index
    %82 = vector.load %arg6[%c1, %c0_34, %c0_35] : memref<2x6x64xf32, #tpu.memory_space<vmem>>, vector<1x6x64xf32>
    %83 = vector.shape_cast %82 : vector<1x6x64xf32> to vector<6x64xf32>
    %84 = vector.extract_strided_slice %83 {offsets = [0, 0], sizes = [1, 64], strides = [1, 1]} : vector<6x64xf32> to vector<1x64xf32>
    %85 = vector.extract_strided_slice %83 {offsets = [1, 0], sizes = [1, 64], strides = [1, 1]} : vector<6x64xf32> to vector<1x64xf32>
    %86 = vector.extract_strided_slice %83 {offsets = [2, 0], sizes = [1, 64], strides = [1, 1]} : vector<6x64xf32> to vector<1x64xf32>
    %87 = vector.extract_strided_slice %83 {offsets = [3, 0], sizes = [1, 64], strides = [1, 1]} : vector<6x64xf32> to vector<1x64xf32>
    %88 = vector.extract_strided_slice %83 {offsets = [4, 0], sizes = [1, 64], strides = [1, 1]} : vector<6x64xf32> to vector<1x64xf32>
    %89 = vector.extract_strided_slice %83 {offsets = [5, 0], sizes = [1, 64], strides = [1, 1]} : vector<6x64xf32> to vector<1x64xf32>
    %90 = arith.truncf %81 : vector<128x64xf32> to vector<128x64xbf16>
    %c1_36 = arith.constant 1 : index
    %c0_37 = arith.constant 0 : index
    %c0_38 = arith.constant 0 : index
    %91 = vector.load %arg3[%c1_36, %c0_37, %c0_38] : memref<2x64x64xbf16, #tpu.memory_space<vmem>>, vector<1x64x64xbf16>
    %92 = vector.shape_cast %91 : vector<1x64x64xbf16> to vector<64x64xbf16>
    %cst_39 = arith.constant dense<0.000000e+00> : vector<128x64xf32>
    %93 = tpu.matmul %90, %92, %cst_39 {dimension_numbers = #tpu.dot_dimension_numbers<[1], [0], [0], [1], [0, 0, 1, 1], [], []>} : vector<128x64xbf16>, vector<64x64xbf16>, vector<128x64xf32> -> vector<128x64xf32>
    %94 = vector.broadcast %84 : vector<1x64xf32> to vector<128x64xf32>
    %95 = arith.addf %93, %94 : vector<128x64xf32>
    %96 = arith.addf %81, %95 : vector<128x64xf32>
    %cst_40 = arith.constant dense<0.000000e+00> : vector<128xf32>
    %97 = vector.multi_reduction <add>, %96, %cst_40 [1] : vector<128x64xf32> to vector<128xf32>
    %98 = vector.shape_cast %97 : vector<128xf32> to vector<128x1xf32>
    %cst_41 = arith.constant 6.400000e+01 : f32
    %99 = vector.broadcast %cst_41 : f32 to vector<128x1xf32>
    %100 = arith.divf %98, %99 : vector<128x1xf32>
    %101 = vector.broadcast %100 : vector<128x1xf32> to vector<128x64xf32>
    %102 = arith.subf %96, %101 : vector<128x64xf32>
    %103 = arith.mulf %102, %102 : vector<128x64xf32>
    %cst_42 = arith.constant dense<0.000000e+00> : vector<128xf32>
    %104 = vector.multi_reduction <add>, %103, %cst_42 [1] : vector<128x64xf32> to vector<128xf32>
    %105 = vector.shape_cast %104 : vector<128xf32> to vector<128x1xf32>
    %cst_43 = arith.constant 6.400000e+01 : f32
    %106 = vector.broadcast %cst_43 : f32 to vector<128x1xf32>
    %107 = arith.divf %105, %106 : vector<128x1xf32>
    %cst_44 = arith.constant 9.99999974E-6 : f32
    %108 = vector.broadcast %cst_44 : f32 to vector<128x1xf32>
    %109 = arith.addf %107, %108 : vector<128x1xf32>
    %110 = math.rsqrt %109 : vector<128x1xf32>
    %111 = vector.broadcast %110 : vector<128x1xf32> to vector<128x64xf32>
    %112 = arith.mulf %102, %111 : vector<128x64xf32>
    %113 = vector.broadcast %85 : vector<1x64xf32> to vector<128x64xf32>
    %114 = arith.mulf %112, %113 : vector<128x64xf32>
    %115 = vector.broadcast %86 : vector<1x64xf32> to vector<128x64xf32>
    %116 = arith.addf %114, %115 : vector<128x64xf32>
    %117 = arith.truncf %116 : vector<128x64xf32> to vector<128x64xbf16>
    %c1_45 = arith.constant 1 : index
    %c0_46 = arith.constant 0 : index
    %c0_47 = arith.constant 0 : index
    %118 = vector.load %arg4[%c1_45, %c0_46, %c0_47] : memref<2x64x256xbf16, #tpu.memory_space<vmem>>, vector<1x64x256xbf16>
    %119 = vector.shape_cast %118 : vector<1x64x256xbf16> to vector<64x256xbf16>
    %cst_48 = arith.constant dense<0.000000e+00> : vector<128x256xf32>
    %120 = tpu.matmul %117, %119, %cst_48 {dimension_numbers = #tpu.dot_dimension_numbers<[1], [0], [0], [1], [0, 0, 1, 1], [], []>} : vector<128x64xbf16>, vector<64x256xbf16>, vector<128x256xf32> -> vector<128x256xf32>
    %c1_49 = arith.constant 1 : index
    %c0_50 = arith.constant 0 : index
    %c0_51 = arith.constant 0 : index
    %121 = vector.load %arg7[%c1_49, %c0_50, %c0_51] : memref<2x1x256xf32, #tpu.memory_space<vmem>>, vector<1x1x256xf32>
    %122 = vector.shape_cast %121 : vector<1x1x256xf32> to vector<1x256xf32>
    %123 = vector.broadcast %122 : vector<1x256xf32> to vector<128x256xf32>
    %124 = arith.addf %120, %123 : vector<128x256xf32>
    %cst_52 = arith.constant 0.000000e+00 : f32
    %125 = vector.broadcast %cst_52 : f32 to vector<128x256xf32>
    %126 = arith.maximumf %124, %125 : vector<128x256xf32>
    %127 = arith.truncf %126 : vector<128x256xf32> to vector<128x256xbf16>
    %c1_53 = arith.constant 1 : index
    %c0_54 = arith.constant 0 : index
    %c0_55 = arith.constant 0 : index
    %128 = vector.load %arg5[%c1_53, %c0_54, %c0_55] : memref<2x256x64xbf16, #tpu.memory_space<vmem>>, vector<1x256x64xbf16>
    %129 = vector.shape_cast %128 : vector<1x256x64xbf16> to vector<256x64xbf16>
    %cst_56 = arith.constant dense<0.000000e+00> : vector<128x64xf32>
    %130 = tpu.matmul %127, %129, %cst_56 {dimension_numbers = #tpu.dot_dimension_numbers<[1], [0], [0], [1], [0, 0, 1, 1], [], []>} : vector<128x256xbf16>, vector<256x64xbf16>, vector<128x64xf32> -> vector<128x64xf32>
    %131 = vector.broadcast %87 : vector<1x64xf32> to vector<128x64xf32>
    %132 = arith.addf %130, %131 : vector<128x64xf32>
    %133 = arith.addf %116, %132 : vector<128x64xf32>
    %cst_57 = arith.constant dense<0.000000e+00> : vector<128xf32>
    %134 = vector.multi_reduction <add>, %133, %cst_57 [1] : vector<128x64xf32> to vector<128xf32>
    %135 = vector.shape_cast %134 : vector<128xf32> to vector<128x1xf32>
    %cst_58 = arith.constant 6.400000e+01 : f32
    %136 = vector.broadcast %cst_58 : f32 to vector<128x1xf32>
    %137 = arith.divf %135, %136 : vector<128x1xf32>
    %138 = vector.broadcast %137 : vector<128x1xf32> to vector<128x64xf32>
    %139 = arith.subf %133, %138 : vector<128x64xf32>
    %140 = arith.mulf %139, %139 : vector<128x64xf32>
    %cst_59 = arith.constant dense<0.000000e+00> : vector<128xf32>
    %141 = vector.multi_reduction <add>, %140, %cst_59 [1] : vector<128x64xf32> to vector<128xf32>
    %142 = vector.shape_cast %141 : vector<128xf32> to vector<128x1xf32>
    %cst_60 = arith.constant 6.400000e+01 : f32
    %143 = vector.broadcast %cst_60 : f32 to vector<128x1xf32>
    %144 = arith.divf %142, %143 : vector<128x1xf32>
    %cst_61 = arith.constant 9.99999974E-6 : f32
    %145 = vector.broadcast %cst_61 : f32 to vector<128x1xf32>
    %146 = arith.addf %144, %145 : vector<128x1xf32>
    %147 = math.rsqrt %146 : vector<128x1xf32>
    %148 = vector.broadcast %147 : vector<128x1xf32> to vector<128x64xf32>
    %149 = arith.mulf %139, %148 : vector<128x64xf32>
    %150 = vector.broadcast %88 : vector<1x64xf32> to vector<128x64xf32>
    %151 = arith.mulf %149, %150 : vector<128x64xf32>
    %152 = vector.broadcast %89 : vector<1x64xf32> to vector<128x64xf32>
    %153 = arith.addf %151, %152 : vector<128x64xf32>
    %154 = vector.broadcast %2 : vector<1x64xf32> to vector<128x64xf32>
    %155 = arith.mulf %153, %154 : vector<128x64xf32>
    %cst_62 = arith.constant dense<0.000000e+00> : vector<128xf32>
    %156 = vector.multi_reduction <add>, %155, %cst_62 [1] : vector<128x64xf32> to vector<128xf32>
    %157 = vector.shape_cast %156 : vector<128xf32> to vector<128x1xf32>
    %158 = vector.broadcast %3 : vector<1x1xf32> to vector<128x1xf32>
    %159 = arith.addf %157, %158 : vector<128x1xf32>
    %160 = vector.shape_cast %159 : vector<128x1xf32> to vector<128x1xf32>
    %161 = vector.broadcast %160 : vector<128x1xf32> to vector<128x128xf32>
    %c0_63 = arith.constant 0 : index
    %c0_64 = arith.constant 0 : index
    %162 = vector.load %arg9[%c0_63, %c0_64] : memref<128x128xf32, #tpu.memory_space<vmem>>, vector<128x128xf32>
    tpu.vector_store %arg9[%c0_63, %c0_64], %161 {strides = array<i32>} : memref<128x128xf32, #tpu.memory_space<vmem>>, vector<128x128xf32>,
    return
  }
  func.func @transform_0(%arg0: i32) -> (i32, i32) {
    %c0_i32 = arith.constant 0 : i32
    %c0_i32_0 = arith.constant 0 : i32
    return %arg0, %c0_i32 : i32, i32
  }
  func.func @transform_1(%arg0: i32) -> (i32, i32) {
    %c0_i32 = arith.constant 0 : i32
    %c0_i32_0 = arith.constant 0 : i32
    %c0_i32_1 = arith.constant 0 : i32
    return %c0_i32, %c0_i32_0 : i32, i32
  }
  func.func @transform_2(%arg0: i32) -> (i32, i32, i32) {
    %c0_i32 = arith.constant 0 : i32
    %c0_i32_0 = arith.constant 0 : i32
    %c0_i32_1 = arith.constant 0 : i32
    %c0_i32_2 = arith.constant 0 : i32
    return %c0_i32, %c0_i32_0, %c0_i32_1 : i32, i32, i32
  }
  func.func @transform_3(%arg0: i32) -> (i32, i32, i32) {
    %c0_i32 = arith.constant 0 : i32
    %c0_i32_0 = arith.constant 0 : i32
    %c0_i32_1 = arith.constant 0 : i32
    %c0_i32_2 = arith.constant 0 : i32
    return %c0_i32, %c0_i32_0, %c0_i32_1 : i32, i32, i32
  }
  func.func @transform_4(%arg0: i32) -> (i32, i32, i32) {
    %c0_i32 = arith.constant 0 : i32
    %c0_i32_0 = arith.constant 0 : i32
    %c0_i32_1 = arith.constant 0 : i32
    %c0_i32_2 = arith.constant 0 : i32
    return %c0_i32, %c0_i32_0, %c0_i32_1 : i32, i32, i32
  }
  func.func @transform_5(%arg0: i32) -> (i32, i32, i32) {
    %c0_i32 = arith.constant 0 : i32
    %c0_i32_0 = arith.constant 0 : i32
    %c0_i32_1 = arith.constant 0 : i32
    %c0_i32_2 = arith.constant 0 : i32
    return %c0_i32, %c0_i32_0, %c0_i32_1 : i32, i32, i32
  }
  func.func @transform_6(%arg0: i32) -> (i32, i32, i32) {
    %c0_i32 = arith.constant 0 : i32
    %c0_i32_0 = arith.constant 0 : i32
    %c0_i32_1 = arith.constant 0 : i32
    %c0_i32_2 = arith.constant 0 : i32
    return %c0_i32, %c0_i32_0, %c0_i32_1 : i32, i32, i32
  }
  func.func @transform_7(%arg0: i32) -> (i32, i32) {
    %c0_i32 = arith.constant 0 : i32
    %c0_i32_0 = arith.constant 0 : i32
    %c0_i32_1 = arith.constant 0 : i32
    return %c0_i32, %c0_i32_0 : i32, i32
  }
  func.func @transform_8(%arg0: i32) -> (i32, i32) {
    %c0_i32 = arith.constant 0 : i32
    %c0_i32_0 = arith.constant 0 : i32
    return %arg0, %c0_i32 : i32, i32
  }
}

</mosaic_0001>

<llo_original>
// kernel: tpu_custom_call.1
$region0: #{tpu_custom_call.1}
  #allocation0 [shape = 'u32[]', space=smem, size = 0x4, offset = 0x4, fixed_abs, tag = 'smem constant byte address 0x4 - core index']
  #allocation1 [shape = 'u32[144,128]{1,0:T(1,128)}', space=vmem, size = 0x12000, scoped, tag = 'internal scratch']
  %s0 = inlined_call_operand.vmem [shape: f32[256,16], index: 0, kind: input, shape index: {}]
  %s1 = inlined_call_operand.vmem [shape: bf16[16,64], index: 1, kind: input, shape index: {}]
  %s2 = inlined_call_operand.vmem [shape: bf16[2,64,64], index: 2, kind: input, shape index: {}]
  %s3 = inlined_call_operand.vmem [shape: bf16[2,64,256], index: 3, kind: input, shape index: {}]
  %s4 = inlined_call_operand.vmem [shape: bf16[2,256,64], index: 4, kind: input, shape index: {}]
  %s5 = inlined_call_operand.vmem [shape: f32[2,6,64], index: 5, kind: input, shape index: {}]
  %s6 = inlined_call_operand.vmem [shape: f32[2,1,256], index: 6, kind: input, shape index: {}]
  %s7 = inlined_call_operand.vmem [shape: f32[3,64], index: 7, kind: input, shape index: {}]
  %s8 = inlined_call_operand.hbm [shape: f32[256,128], index: 8, kind: output, shape index: {}]
  %s9 = sld [smem:[#allocation0]]
  $region65: #{tpu_custom_call.1} parent=0
    _
  %s11 = ssub.s32 1, %s9
  %s12 = scalar_select 0, %s11, %s9
  $region1: #{tpu_custom_call.1} parent=0
    #allocation2 [shape = 'u8[131072]{0}', space=vmem, size = 0x20000, scoped, tag = 'output window, operand 0']
    #allocation3 [shape = 's32[2]{0}', space=sflag, size = 0x8, scoped, tag = 'scoped memory for tpu_custom_call.1']
    %13 = vsyncpa [#allocation3], 0
    %s14 = scalar_lea.sflag [#allocation3], 1
    %15 = vsyncpa %s14, 0
    loop: start=0, step=1, limit=4
    $region2: #{tpu_custom_call.1} parent=1 // loop_pre_header
      _
    $region3: #{tpu_custom_call.1} parent=1 // loop_header
      %s17 = sphi 0, %s21
      %p18 = scmp.ge.s32.totalorder %s17, 4
      %s27 = sphi 0, %s29
      %s30 = sphi 0, %s27
      %s31 = sphi 0, %s30
      %s47 = sphi 0, %s31
      %s51 = sphi 0, %s51
      %s53 = sphi 0, %s51
      %s54 = sphi 0, %s53
      %s68 = sphi 0, %s54
      %s72 = sphi 0, %s72
      %s74 = sphi 0, %s72
      %s75 = sphi 0, %s74
      %s89 = sphi 0, %s75
      %s93 = sphi 0, %s93
      %s95 = sphi 0, %s93
      %s96 = sphi 0, %s95
      %s110 = sphi 0, %s96
      %s114 = sphi 0, %s114
      %s116 = sphi 0, %s114
      %s117 = sphi 0, %s116
      %s131 = sphi 0, %s117
      %s135 = sphi 0, %s135
      %s137 = sphi 0, %s135
      %s138 = sphi 0, %s137
      %s152 = sphi 0, %s138
      %s156 = sphi 0, %s156
      %s158 = sphi 0, %s156
      %s159 = sphi 0, %s158
      %s173 = sphi 0, %s159
      %s177 = sphi 0, %s177
      %s179 = sphi 0, %s177
      %s180 = sphi 0, %s179
      %s194 = sphi 0, %s180
      %s200 = sphi 0, %s202
      %s203 = sphi 0, %s200
      %s204 = sphi 0, %s203
      %s220 = sphi 0, %s204
    $region4: #{tpu_custom_call.1} parent=1 // loop_header_branch
      %20 = sbr.rel (%p18) target = $region8
    $region5: #{tpu_custom_call.1} parent=1 // loop_body
      %s22 = ssub.s32 %s17, 1
      %s23 = ssub.s32 %s17, 2
      %s24 = sadd.s32 %s17, 1
      %s25 = ssub.s32 %s17, %s24
      %p26 = scmp.eq.s32.totalorder %s25, 0
      %s28 = sadd.s32 %s27, 1
      %s29 = scalar_select %p26, %s27, %s28
      %p32 = pneg %p26
      %p33 = scmp.eq.s32.totalorder %s17, 1
      %p34 = por %p32, %p33
      %p35 = scmp.ne.s32.totalorder %s27, %s30
      %p36 = scmp.eq.s32.totalorder %s17, 0
      %p37 = por %p35, %p36
      %p38 = scmp.ne.s32.totalorder %s27, %s30
      %p39 = scmp.eq.s32.totalorder %s22, 1
      %p40 = por %p38, %p39
      %p41 = scmp.ne.s32.totalorder %s30, %s31
      %p42 = scmp.eq.s32.totalorder %s22, 0
      %p43 = por %p41, %p42
      %p44 = scmp.ne.s32.totalorder %s30, %s31
      %p45 = scmp.eq.s32.totalorder %s23, 1
      %p46 = por %p44, %p45
      %p48 = scmp.ne.s32.totalorder %s31, %s47
      %p49 = scmp.eq.s32.totalorder %s23, 0
      %p50 = por %p48, %p49
      %s52 = sadd.s32 %s51, 1
      %p55 = scmp.eq.s32.totalorder %s17, 1
      %p56 = scmp.ne.s32.totalorder %s51, %s53
      %p57 = scmp.eq.s32.totalorder %s17, 0
      %p58 = por %p56, %p57
      %p59 = scmp.ne.s32.totalorder %s51, %s53
      %p60 = scmp.eq.s32.totalorder %s22, 1
      %p61 = por %p59, %p60
      %p62 = scmp.ne.s32.totalorder %s53, %s54
      %p63 = scmp.eq.s32.totalorder %s22, 0
      %p64 = por %p62, %p63
      %p65 = scmp.ne.s32.totalorder %s53, %s54
      %p66 = scmp.eq.s32.totalorder %s23, 1
      %p67 = por %p65, %p66
      %p69 = scmp.ne.s32.totalorder %s54, %s68
      %p70 = scmp.eq.s32.totalorder %s23, 0
      %p71 = por %p69, %p70
      %s73 = sadd.s32 %s72, 1
      %p76 = scmp.eq.s32.totalorder %s17, 1
      %p77 = scmp.ne.s32.totalorder %s72, %s74
      %p78 = scmp.eq.s32.totalorder %s17, 0
      %p79 = por %p77, %p78
      %p80 = scmp.ne.s32.totalorder %s72, %s74
      %p81 = scmp.eq.s32.totalorder %s22, 1
      %p82 = por %p80, %p81
      %p83 = scmp.ne.s32.totalorder %s74, %s75
      %p84 = scmp.eq.s32.totalorder %s22, 0
      %p85 = por %p83, %p84
      %p86 = scmp.ne.s32.totalorder %s74, %s75
      %p87 = scmp.eq.s32.totalorder %s23, 1
      %p88 = por %p86, %p87
      %p90 = scmp.ne.s32.totalorder %s75, %s89
      %p91 = scmp.eq.s32.totalorder %s23, 0
      %p92 = por %p90, %p91
      %s94 = sadd.s32 %s93, 1
      %p97 = scmp.eq.s32.totalorder %s17, 1
      %p98 = scmp.ne.s32.totalorder %s93, %s95
      %p99 = scmp.eq.s32.totalorder %s17, 0
      %p100 = por %p98, %p99
      %p101 = scmp.ne.s32.totalorder %s93, %s95
      %p102 = scmp.eq.s32.totalorder %s22, 1
      %p103 = por %p101, %p102
      %p104 = scmp.ne.s32.totalorder %s95, %s96
      %p105 = scmp.eq.s32.totalorder %s22, 0
      %p106 = por %p104, %p105
      %p107 = scmp.ne.s32.totalorder %s95, %s96
      %p108 = scmp.eq.s32.totalorder %s23, 1
      %p109 = por %p107, %p108
      %p111 = scmp.ne.s32.totalorder %s96, %s110
      %p112 = scmp.eq.s32.totalorder %s23, 0
      %p113 = por %p111, %p112
      %s115 = sadd.s32 %s114, 1
      %p118 = scmp.eq.s32.totalorder %s17, 1
      %p119 = scmp.ne.s32.totalorder %s114, %s116
      %p120 = scmp.eq.s32.totalorder %s17, 0
      %p121 = por %p119, %p120
      %p122 = scmp.ne.s32.totalorder %s114, %s116
      %p123 = scmp.eq.s32.totalorder %s22, 1
      %p124 = por %p122, %p123
      %p125 = scmp.ne.s32.totalorder %s116, %s117
      %p126 = scmp.eq.s32.totalorder %s22, 0
      %p127 = por %p125, %p126
      %p128 = scmp.ne.s32.totalorder %s116, %s117
      %p129 = scmp.eq.s32.totalorder %s23, 1
      %p130 = por %p128, %p129
      %p132 = scmp.ne.s32.totalorder %s117, %s131
      %p133 = scmp.eq.s32.totalorder %s23, 0
      %p134 = por %p132, %p133
      %s136 = sadd.s32 %s135, 1
      %p139 = scmp.eq.s32.totalorder %s17, 1
      %p140 = scmp.ne.s32.totalorder %s135, %s137
      %p141 = scmp.eq.s32.totalorder %s17, 0
      %p142 = por %p140, %p141
      %p143 = scmp.ne.s32.totalorder %s135, %s137
      %p144 = scmp.eq.s32.totalorder %s22, 1
      %p145 = por %p143, %p144
      %p146 = scmp.ne.s32.totalorder %s137, %s138
      %p147 = scmp.eq.s32.totalorder %s22, 0
      %p148 = por %p146, %p147
      %p149 = scmp.ne.s32.totalorder %s137, %s138
      %p150 = scmp.eq.s32.totalorder %s23, 1
      %p151 = por %p149, %p150
      %p153 = scmp.ne.s32.totalorder %s138, %s152
      %p154 = scmp.eq.s32.totalorder %s23, 0
      %p155 = por %p153, %p154
      %s157 = sadd.s32 %s156, 1
      %p160 = scmp.eq.s32.totalorder %s17, 1
      %p161 = scmp.ne.s32.totalorder %s156, %s158
      %p162 = scmp.eq.s32.totalorder %s17, 0
      %p163 = por %p161, %p162
      %p164 = scmp.ne.s32.totalorder %s156, %s158
      %p165 = scmp.eq.s32.totalorder %s22, 1
      %p166 = por %p164, %p165
      %p167 = scmp.ne.s32.totalorder %s158, %s159
      %p168 = scmp.eq.s32.totalorder %s22, 0
      %p169 = por %p167, %p168
      %p170 = scmp.ne.s32.totalorder %s158, %s159
      %p171 = scmp.eq.s32.totalorder %s23, 1
      %p172 = por %p170, %p171
      %p174 = scmp.ne.s32.totalorder %s159, %s173
      %p175 = scmp.eq.s32.totalorder %s23, 0
      %p176 = por %p174, %p175
      %s178 = sadd.s32 %s177, 1
      %p181 = scmp.eq.s32.totalorder %s17, 1
      %p182 = scmp.ne.s32.totalorder %s177, %s179
      %p183 = scmp.eq.s32.totalorder %s17, 0
      %p184 = por %p182, %p183
      %p185 = scmp.ne.s32.totalorder %s177, %s179
      %p186 = scmp.eq.s32.totalorder %s22, 1
      %p187 = por %p185, %p186
      %p188 = scmp.ne.s32.totalorder %s179, %s180
      %p189 = scmp.eq.s32.totalorder %s22, 0
      %p190 = por %p188, %p189
      %p191 = scmp.ne.s32.totalorder %s179, %s180
      %p192 = scmp.eq.s32.totalorder %s23, 1
      %p193 = por %p191, %p192
      %p195 = scmp.ne.s32.totalorder %s180, %s194
      %p196 = scmp.eq.s32.totalorder %s23, 0
      %p197 = por %p195, %p196
      %s198 = ssub.s32 %s17, %s24
      %p199 = scmp.eq.s32.totalorder %s198, 0
      %s201 = sadd.s32 %s200, 1
      %s202 = scalar_select %p199, %s200, %s201
      %p205 = pneg %p199
      %p206 = scmp.eq.s32.totalorder %s17, 1
      %p207 = por %p205, %p206
      %p208 = scmp.ne.s32.totalorder %s200, %s203
      %p209 = scmp.eq.s32.totalorder %s17, 0
      %p210 = por %p208, %p209
      %p211 = scmp.ne.s32.totalorder %s200, %s203
      %p212 = scmp.eq.s32.totalorder %s22, 1
      %p213 = por %p211, %p212
      %p214 = scmp.ne.s32.totalorder %s203, %s204
      %p215 = scmp.eq.s32.totalorder %s22, 0
      %p216 = por %p214, %p215
      %p217 = scmp.ne.s32.totalorder %s203, %s204
      %p218 = scmp.eq.s32.totalorder %s23, 1
      %p219 = por %p217, %p218
      %p221 = scmp.ne.s32.totalorder %s204, %s220
      %p222 = scmp.eq.s32.totalorder %s23, 0
      %p223 = por %p221, %p222
      %p224 = scmp.le.s32.totalorder 1, %s17
      %p225 = scmp.lt.s32.totalorder %s17, 3
      %p226 = pnand %p224, %p225
      %p227 = pneg %p226
      // Predicated region
      $region9: #{tpu_custom_call.1} parent=5 // pred_check
        _
      $region10: #{tpu_custom_call.1} parent=5 // pred_check_branch
        %229 = sbr.rel (%p226) target = $region12
      $region11: #{tpu_custom_call.1} parent=5 // pred_region
        %s230 = ssub.s32 %s17, 1
        // Predicated region
        $region13: #{tpu_custom_call.1} parent=11 // pred_check
          %p231 = pneg %p64
        $region14: #{tpu_custom_call.1} parent=11 // pred_check_branch
          %233 = sbr.rel (%p231) target = $region16
        $region15: #{tpu_custom_call.1} parent=11 // pred_region
          _
        $region16: #{tpu_custom_call.1} parent=11 // pred_fallthru
          _
        // Predicated region
        $region17: #{tpu_custom_call.1} parent=11 // pred_check
          %p234 = pneg %p85
        $region18: #{tpu_custom_call.1} parent=11 // pred_check_branch
          %236 = sbr.rel (%p234) target = $region20
        $region19: #{tpu_custom_call.1} parent=11 // pred_region
          _
        $region20: #{tpu_custom_call.1} parent=11 // pred_fallthru
          _
        // Predicated region
        $region21: #{tpu_custom_call.1} parent=11 // pred_check
          %p237 = pneg %p106
        $region22: #{tpu_custom_call.1} parent=11 // pred_check_branch
          %239 = sbr.rel (%p237) target = $region24
        $region23: #{tpu_custom_call.1} parent=11 // pred_region
          _
        $region24: #{tpu_custom_call.1} parent=11 // pred_fallthru
          _
        // Predicated region
        $region25: #{tpu_custom_call.1} parent=11 // pred_check
          %p240 = pneg %p127
        $region26: #{tpu_custom_call.1} parent=11 // pred_check_branch
          %242 = sbr.rel (%p240) target = $region28
        $region27: #{tpu_custom_call.1} parent=11 // pred_region
          _
        $region28: #{tpu_custom_call.1} parent=11 // pred_fallthru
          _
        // Predicated region
        $region29: #{tpu_custom_call.1} parent=11 // pred_check
          %p243 = pneg %p148
        $region30: #{tpu_custom_call.1} parent=11 // pred_check_branch
          %245 = sbr.rel (%p243) target = $region32
        $region31: #{tpu_custom_call.1} parent=11 // pred_region
          _
        $region32: #{tpu_custom_call.1} parent=11 // pred_fallthru
          _
        // Predicated region
        $region33: #{tpu_custom_call.1} parent=11 // pred_check
          %p246 = pneg %p169
        $region34: #{tpu_custom_call.1} parent=11 // pred_check_branch
          %248 = sbr.rel (%p246) target = $region36
        $region35: #{tpu_custom_call.1} parent=11 // pred_region
          _
        $region36: #{tpu_custom_call.1} parent=11 // pred_fallthru
          _
        // Predicated region
        $region37: #{tpu_custom_call.1} parent=11 // pred_check
          %p249 = pneg %p190
        $region38: #{tpu_custom_call.1} parent=11 // pred_check_branch
          %251 = sbr.rel (%p249) target = $region40
        $region39: #{tpu_custom_call.1} parent=11 // pred_region
          _
        $region40: #{tpu_custom_call.1} parent=11 // pred_fallthru
          _
      $region12: #{tpu_custom_call.1} parent=5 // pred_fallthru
        _
      %p252 = scmp.lt.s32.totalorder %s17, 2
      // Predicated region
      $region41: #{tpu_custom_call.1} parent=5 // pred_check
        %p253 = pneg %p252
      $region42: #{tpu_custom_call.1} parent=5 // pred_check_branch
        %255 = sbr.rel (%p253) target = $region44
      $region43: #{tpu_custom_call.1} parent=5 // pred_region
        // Predicated region
        $region45: #{tpu_custom_call.1} parent=43 // pred_check
          %p256 = pneg %p37
        $region46: #{tpu_custom_call.1} parent=43 // pred_check_branch
          %258 = sbr.rel (%p256) target = $region48
        $region47: #{tpu_custom_call.1} parent=43 // pred_region
          %s259 = smul.u32 16, %s17
          %p260 = scmp.lt.s32.totalorder %s259, 31
          %s261 = scalar_select %p260, %s259, 31
          %s262 = smul.addr %s261, 8
          %s263 = scalar_lea.vmem %s0, %s262
          %s264 = smul.u32 16, %s17
        $region48: #{tpu_custom_call.1} parent=43 // pred_fallthru
          _
      $region44: #{tpu_custom_call.1} parent=5 // pred_fallthru
        _
      %p265 = scmp.le.s32.totalorder 1, %s17
      %p266 = scmp.lt.s32.totalorder %s17, 3
      %p267 = pnand %p265, %p266
      %p268 = pneg %p267
      // Predicated region
      $region49: #{tpu_custom_call.1} parent=5 // pred_check
        _
      $region50: #{tpu_custom_call.1} parent=5 // pred_check_branch
        %270 = sbr.rel (%p267) target = $region52
      $region51: #{tpu_custom_call.1} parent=5 // pred_region
        %s271 = ssub.s32 %s17, 1
        %s272 = smul.u32 16, %s22
        %p273 = scmp.lt.s32.totalorder %s272, 31
        %s274 = scalar_select %p273, %s272, 31
        %s275 = smul.addr %s274, 8
        %s276 = scalar_lea.vmem %s0, %s275
        %p277 = pneg %p43
        %p278 = pneg %p40
        %p279 = pneg %p64
        %p280 = pneg %p61
        %p281 = pneg %p85
        %p282 = pneg %p82
        %p283 = pneg %p106
        %p284 = pneg %p103
        %p285 = pneg %p127
        %p286 = pneg %p124
        %p287 = pneg %p148
        %p288 = pneg %p145
        %p289 = pneg %p169
        %p290 = pneg %p166
        %p291 = pneg %p190
        %p292 = pneg %p187
        %p293 = pneg %p216
        %p294 = pneg %p213
        %s295 = sand.u32 %s203, 1
        %s296 = scalar_lea.sflag [#allocation3], %s295
        %s297 = sand.u32 %s203, 1
        %s298 = smul.addr %s297, 128
        %s299 = scalar_lea.vmem [#allocation2], %s298
        %s300 = smul.u32 16, %s22
        %p301 = scmp.lt.s32.totalorder %s300, 31
        %s302 = scalar_select %p301, %s300, 31
        %s303 = smul.addr %s302, 8
        %s304 = scalar_lea.vmem %s0, %s303
        %s305 = smul.u32 16, %s22
        %s306 = smul.u32 16, %s22
        %v308 = vld [vmem:[%s7] sm:$0x7]
        %v309 = vld [vmem:[%s304] sm:$0xff]
        %v310 = vld [vmem:[%s304 + $0x8] sm:$0xff]
        %v311 = vld [vmem:[%s304 + $0x10] sm:$0xff]
        %v312 = vld [vmem:[%s304 + $0x18] sm:$0xff]
        %v313 = vld [vmem:[%s304 + $0x20] sm:$0xff]
        %v314 = vld [vmem:[%s304 + $0x28] sm:$0xff]
        %v315 = vld [vmem:[%s304 + $0x30] sm:$0xff]
        %v316 = vld [vmem:[%s304 + $0x38] sm:$0xff]
        %v317 = vld [vmem:[%s304 + $0x40] sm:$0xff]
        %v318 = vld [vmem:[%s304 + $0x48] sm:$0xff]
        %v319 = vld [vmem:[%s304 + $0x50] sm:$0xff]
        %v320 = vld [vmem:[%s304 + $0x58] sm:$0xff]
        %v321 = vld [vmem:[%s304 + $0x60] sm:$0xff]
        %v322 = vld [vmem:[%s304 + $0x68] sm:$0xff]
        %v323 = vld [vmem:[%s304 + $0x70] sm:$0xff]
        %v324 = vld [vmem:[%s304 + $0x78] sm:$0xff]
        %v325 = vpack.c.bf16 %v310, %v309
        %v326 = vpack.c.bf16 %v312, %v311
        %v327 = vpack.c.bf16 %v314, %v313
        %v328 = vpack.c.bf16 %v316, %v315
        %v329 = vpack.c.bf16 %v318, %v317
        %v330 = vpack.c.bf16 %v320, %v319
        %v331 = vpack.c.bf16 %v322, %v321
        %v332 = vpack.c.bf16 %v324, %v323
        %v333 = vld [vmem:[%s1] sm:$0xf]
        %v334 = vld [vmem:[%s1 + $0x4] sm:$0xf]
        %v335 = vlaneseq
        %v336 = vshrl.u32 %v335, 7
        %v337 = vsub.s32 0, %v336
        %v338 = vrot.slane %v308, %v337
        %v341 = vunpack.c.l.b16 %v333
        %v342 = vunpack.c.l.b16 %v334
        %v343 = vpack.c.b16 %v342, %v341
        %vm345 = vcmask 130048
        %v347 = vsel %vm345, %v325, 0
        %v350 = vsel %vm345, %v326, 0
        %v353 = vsel %vm345, %v327, 0
        %v356 = vsel %vm345, %v328, 0
        %v359 = vsel %vm345, %v329, 0
        %v362 = vsel %vm345, %v330, 0
        %v365 = vsel %vm345, %v331, 0
        %v368 = vsel %vm345, %v332, 0
        %370 = vmatprep.subr.bf16.mxu0 0
        %371 = vmatpush1.bf16.msra.mxu0 %v343
        %372 = vmatprep.subr.bf16.mxu0 0
        %373 = vmatpush1.bf16.msra.mxu0 0
        %374 = vmatprep.subr.bf16.mxu0 0
        %375 = vmatpush1.bf16.msra.mxu0 0
        %376 = vmatprep.subr.bf16.mxu0 0
        %377 = vmatpush1.bf16.msra.mxu0 0
        %378 = vmatprep.subr.bf16.mxu0 0
        %379 = vmatpush1.bf16.msra.mxu0 0
        %380 = vmatprep.subr.bf16.mxu0 0
        %381 = vmatpush1.bf16.msra.mxu0 0
        %382 = vmatprep.subr.bf16.mxu0 0
        %383 = vmatpush1.bf16.msra.mxu0 0
        %384 = vmatprep.subr.bf16.mxu0 0
        %385 = vmatpush1.bf16.msra.mxu0 0
        %386 = vmatprep.subr.bf16.mxu0 0
        %387 = vmatpush1.bf16.msra.mxu0 0
        %388 = vmatprep.subr.bf16.mxu0 0
        %389 = vmatpush1.bf16.msra.mxu0 0
        %390 = vmatprep.subr.bf16.mxu0 0
        %391 = vmatpush1.bf16.msra.mxu0 0
        %392 = vmatprep.subr.bf16.mxu0 0
        %393 = vmatpush1.bf16.msra.mxu0 0
        %394 = vmatprep.subr.bf16.mxu0 0
        %395 = vmatpush1.bf16.msra.mxu0 0
        %396 = vmatprep.subr.bf16.mxu0 0
        %397 = vmatpush1.bf16.msra.mxu0 0
        %398 = vmatprep.subr.bf16.mxu0 0
        %399 = vmatpush1.bf16.msra.mxu0 0
        %400 = vmatprep.subr.bf16.mxu0 0
        %401 = vmatpush1.bf16.msra.mxu0 0
        %402 = vmatprep.mubr.bf16.mxu0 0
        %403 = vmatmul.mubr.bf16.gmra.mrb[0].mxu0 %v347
        %v404 = vpop.f32.mrb[0].mxu0
        %v405 = vadd.f32 %v338, %v404
        %v406 = vpop.f32.mrb[0].mxu0
        %v407 = vpop.f32.mrb[0].mxu0
        %v408 = vadd.f32 %v338, %v407
        %v409 = vpop.f32.mrb[0].mxu0
        %410 = vmatprep.mubr.bf16.mxu0 0
        %411 = vmatmul.mubr.bf16.gmra.mrb[0].mxu0 %v350
        %v412 = vpop.f32.mrb[0].mxu0
        %v413 = vadd.f32 %v338, %v412
        %v414 = vpop.f32.mrb[0].mxu0
        %v415 = vpop.f32.mrb[0].mxu0
        %v416 = vadd.f32 %v338, %v415
        %v417 = vpop.f32.mrb[0].mxu0
        %418 = vmatprep.mubr.bf16.mxu0 0
        %419 = vmatmul.mubr.bf16.gmra.mrb[0].mxu0 %v353
        %v420 = vpop.f32.mrb[0].mxu0
        %v421 = vadd.f32 %v338, %v420
        %v422 = vpop.f32.mrb[0].mxu0
        %v423 = vpop.f32.mrb[0].mxu0
        %v424 = vadd.f32 %v338, %v423
        %v425 = vpop.f32.mrb[0].mxu0
        %426 = vmatprep.mubr.bf16.mxu0 0
        %427 = vmatmul.mubr.bf16.gmra.mrb[0].mxu0 %v356
        %v428 = vpop.f32.mrb[0].mxu0
        %v429 = vadd.f32 %v338, %v428
        %v430 = vpop.f32.mrb[0].mxu0
        %v431 = vpop.f32.mrb[0].mxu0
        %v432 = vadd.f32 %v338, %v431
        %v433 = vpop.f32.mrb[0].mxu0
        %434 = vmatprep.mubr.bf16.mxu0 0
        %435 = vmatmul.mubr.bf16.gmra.mrb[0].mxu0 %v359
        %v436 = vpop.f32.mrb[0].mxu0
        %v437 = vadd.f32 %v338, %v436
        %v438 = vpop.f32.mrb[0].mxu0
        %v439 = vpop.f32.mrb[0].mxu0
        %v440 = vadd.f32 %v338, %v439
        %v441 = vpop.f32.mrb[0].mxu0
        %442 = vmatprep.mubr.bf16.mxu0 0
        %443 = vmatmul.mubr.bf16.gmra.mrb[0].mxu0 %v362
        %v444 = vpop.f32.mrb[0].mxu0
        %v445 = vadd.f32 %v338, %v444
        %v446 = vpop.f32.mrb[0].mxu0
        %v447 = vpop.f32.mrb[0].mxu0
        %v448 = vadd.f32 %v338, %v447
        %v449 = vpop.f32.mrb[0].mxu0
        %450 = vmatprep.mubr.bf16.mxu0 0
        %451 = vmatmul.mubr.bf16.gmra.mrb[0].mxu0 %v365
        %v452 = vpop.f32.mrb[0].mxu0
        %v453 = vadd.f32 %v338, %v452
        %v454 = vpop.f32.mrb[0].mxu0
        %v455 = vpop.f32.mrb[0].mxu0
        %v456 = vadd.f32 %v338, %v455
        %v457 = vpop.f32.mrb[0].mxu0
        %458 = vmatprep.mubr.bf16.mxu0 0
        %459 = vmatmul.mubr.bf16.gmra.mrb[0].mxu0 %v368
        %v460 = vpop.f32.mrb[0].mxu0
        %v461 = vadd.f32 %v338, %v460
        %v462 = vpop.f32.mrb[0].mxu0
        %v463 = vpop.f32.mrb[0].mxu0
        %v464 = vadd.f32 %v338, %v463
        %v465 = vpop.f32.mrb[0].mxu0
        %466 = vdwg.mxu0
        %v467 = vld [vmem:[%s5] sm:$0x3f]
        %v468 = vpack.c.bf16 %v408, %v405
        %v469 = vpack.c.bf16 %v416, %v413
        %v470 = vpack.c.bf16 %v424, %v421
        %v471 = vpack.c.bf16 %v432, %v429
        %v472 = vpack.c.bf16 %v440, %v437
        %v473 = vpack.c.bf16 %v448, %v445
        %v474 = vpack.c.bf16 %v456, %v453
        %v475 = vpack.c.bf16 %v464, %v461
        %v476 = vld [vmem:[%s2] sm:$0xf]
        %v477 = vld [vmem:[%s2 + $0x4] sm:$0xf]
        %v478 = vld [vmem:[%s2 + $0x8] sm:$0xf]
        %v479 = vld [vmem:[%s2 + $0xc] sm:$0xf]
        %v480 = vld [vmem:[%s2 + $0x10] sm:$0xf]
        %v481 = vld [vmem:[%s2 + $0x14] sm:$0xf]
        %v482 = vld [vmem:[%s2 + $0x18] sm:$0xf]
        %v483 = vld [vmem:[%s2 + $0x1c] sm:$0xf]
        %v484 = vlaneseq
        %v485 = vshrl.u32 %v484, 7
        %v486 = vsub.s32 0, %v485
        %v487 = vrot.slane %v467, %v486
        %v496 = vunpack.c.l.b16 %v476
        %v497 = vunpack.c.l.b16 %v477
        %v498 = vunpack.c.l.b16 %v478
        %v499 = vunpack.c.l.b16 %v479
        %v500 = vunpack.c.l.b16 %v480
        %v501 = vunpack.c.l.b16 %v481
        %v502 = vunpack.c.l.b16 %v482
        %v503 = vunpack.c.l.b16 %v483
        %v504 = vpack.c.b16 %v497, %v496
        %v505 = vpack.c.b16 %v499, %v498
        %v506 = vpack.c.b16 %v501, %v500
        %v507 = vpack.c.b16 %v503, %v502
        %vm512 = vcmask 523264
        %v514 = vsel %vm512, %v468, 0
        %v517 = vsel %vm512, %v469, 0
        %v520 = vsel %vm512, %v470, 0
        %v523 = vsel %vm512, %v471, 0
        %v526 = vsel %vm512, %v472, 0
        %v529 = vsel %vm512, %v473, 0
        %v532 = vsel %vm512, %v474, 0
        %v535 = vsel %vm512, %v475, 0
        %537 = vmatprep.subr.bf16.mxu0 0
        %538 = vmatpush1.bf16.msra.mxu0 %v504
        %539 = vmatprep.subr.bf16.mxu0 0
        %540 = vmatpush1.bf16.msra.mxu0 %v505
        %541 = vmatprep.subr.bf16.mxu0 0
        %542 = vmatpush1.bf16.msra.mxu0 %v506
        %543 = vmatprep.subr.bf16.mxu0 0
        %544 = vmatpush1.bf16.msra.mxu0 %v507
        %545 = vmatprep.subr.bf16.mxu0 0
        %546 = vmatpush1.bf16.msra.mxu0 0
        %547 = vmatprep.subr.bf16.mxu0 0
        %548 = vmatpush1.bf16.msra.mxu0 0
        %549 = vmatprep.subr.bf16.mxu0 0
        %550 = vmatpush1.bf16.msra.mxu0 0
        %551 = vmatprep.subr.bf16.mxu0 0
        %552 = vmatpush1.bf16.msra.mxu0 0
        %553 = vmatprep.subr.bf16.mxu0 0
        %554 = vmatpush1.bf16.msra.mxu0 0
        %555 = vmatprep.subr.bf16.mxu0 0
        %556 = vmatpush1.bf16.msra.mxu0 0
        %557 = vmatprep.subr.bf16.mxu0 0
        %558 = vmatpush1.bf16.msra.mxu0 0
        %559 = vmatprep.subr.bf16.mxu0 0
        %560 = vmatpush1.bf16.msra.mxu0 0
        %561 = vmatprep.subr.bf16.mxu0 0
        %562 = vmatpush1.bf16.msra.mxu0 0
        %563 = vmatprep.subr.bf16.mxu0 0
        %564 = vmatpush1.bf16.msra.mxu0 0
        %565 = vmatprep.subr.bf16.mxu0 0
        %566 = vmatpush1.bf16.msra.mxu0 0
        %567 = vmatprep.subr.bf16.mxu0 0
        %568 = vmatpush1.bf16.msra.mxu0 0
        %569 = vmatprep.mubr.bf16.mxu0 0
        %570 = vmatmul.mubr.bf16.gmra.mrb[0].mxu0 %v514
        %v571 = vpop.f32.mrb[0].mxu0
        %v572 = vadd.f32 %v487, %v571
        %v573 = vpop.f32.mrb[0].mxu0
        %v574 = vpop.f32.mrb[0].mxu0
        %v575 = vadd.f32 %v487, %v574
        %v576 = vpop.f32.mrb[0].mxu0
        %577 = vmatprep.mubr.bf16.mxu0 0
        %578 = vmatmul.mubr.bf16.gmra.mrb[0].mxu0 %v517
        %v579 = vpop.f32.mrb[0].mxu0
        %v580 = vadd.f32 %v487, %v579
        %v581 = vpop.f32.mrb[0].mxu0
        %v582 = vpop.f32.mrb[0].mxu0
        %v583 = vadd.f32 %v487, %v582
        %v584 = vpop.f32.mrb[0].mxu0
        %585 = vmatprep.mubr.bf16.mxu0 0
        %586 = vmatmul.mubr.bf16.gmra.mrb[0].mxu0 %v520
        %v587 = vpop.f32.mrb[0].mxu0
        %v588 = vadd.f32 %v487, %v587
        %v589 = vpop.f32.mrb[0].mxu0
        %v590 = vpop.f32.mrb[0].mxu0
        %v591 = vadd.f32 %v487, %v590
        %v592 = vpop.f32.mrb[0].mxu0
        %593 = vmatprep.mubr.bf16.mxu0 0
        %594 = vmatmul.mubr.bf16.gmra.mrb[0].mxu0 %v523
        %v595 = vpop.f32.mrb[0].mxu0
        %v596 = vadd.f32 %v487, %v595
        %v597 = vpop.f32.mrb[0].mxu0
        %v598 = vpop.f32.mrb[0].mxu0
        %v599 = vadd.f32 %v487, %v598
        %v600 = vpop.f32.mrb[0].mxu0
        %601 = vmatprep.mubr.bf16.mxu0 0
        %602 = vmatmul.mubr.bf16.gmra.mrb[0].mxu0 %v526
        %v603 = vpop.f32.mrb[0].mxu0
        %v604 = vadd.f32 %v487, %v603
        %v605 = vpop.f32.mrb[0].mxu0
        %v606 = vpop.f32.mrb[0].mxu0
        %v607 = vadd.f32 %v487, %v606
        %v608 = vpop.f32.mrb[0].mxu0
        %609 = vmatprep.mubr.bf16.mxu0 0
        %610 = vmatmul.mubr.bf16.gmra.mrb[0].mxu0 %v529
        %v611 = vpop.f32.mrb[0].mxu0
        %v612 = vadd.f32 %v487, %v611
        %v613 = vpop.f32.mrb[0].mxu0
        %v614 = vpop.f32.mrb[0].mxu0
        %v615 = vadd.f32 %v487, %v614
        %v616 = vpop.f32.mrb[0].mxu0
        %617 = vmatprep.mubr.bf16.mxu0 0
        %618 = vmatmul.mubr.bf16.gmra.mrb[0].mxu0 %v532
        %v619 = vpop.f32.mrb[0].mxu0
        %v620 = vadd.f32 %v487, %v619
        %v621 = vpop.f32.mrb[0].mxu0
        %v622 = vpop.f32.mrb[0].mxu0
        %v623 = vadd.f32 %v487, %v622
        %v624 = vpop.f32.mrb[0].mxu0
        %625 = vmatprep.mubr.bf16.mxu0 0
        %626 = vmatmul.mubr.bf16.gmra.mrb[0].mxu0 %v535
        %v627 = vpop.f32.mrb[0].mxu0
        %v628 = vadd.f32 %v487, %v627
        %v629 = vpop.f32.mrb[0].mxu0
        %v630 = vpop.f32.mrb[0].mxu0
        %v631 = vadd.f32 %v487, %v630
        %v632 = vpop.f32.mrb[0].mxu0
        %633 = vdwg.mxu0
        %v634 = vadd.f32 %v405, %v572
        %v635 = vadd.f32 %v408, %v575
        %v636 = vadd.f32 %v413, %v580
        %v637 = vadd.f32 %v416, %v583
        %v638 = vadd.f32 %v421, %v588
        %v639 = vadd.f32 %v424, %v591
        %v640 = vadd.f32 %v429, %v596
        %v641 = vadd.f32 %v432, %v599
        %v642 = vadd.f32 %v437, %v604
        %v643 = vadd.f32 %v440, %v607
        %v644 = vadd.f32 %v445, %v612
        %v645 = vadd.f32 %v448, %v615
        %v646 = vadd.f32 %v453, %v620
        %v647 = vadd.f32 %v456, %v623
        %v648 = vadd.f32 %v461, %v628
        %v649 = vadd.f32 %v464, %v631
        %v650 = vsel %vm512, %v634, 0.0
        %651 = vadd.xlane.f32.xlu0 %v650
        %v652 = vpop.xlane.xlu0 %651
        %v653 = vsel %vm512, %v635, 0.0
        %654 = vadd.xlane.f32.xlu0 %v653
        %v655 = vpop.xlane.xlu0 %654
        %v656 = vsel %vm512, %v636, 0.0
        %657 = vadd.xlane.f32.xlu0 %v656
        %v658 = vpop.xlane.xlu0 %657
        %v659 = vsel %vm512, %v637, 0.0
        %660 = vadd.xlane.f32.xlu0 %v659
        %v661 = vpop.xlane.xlu0 %660
        %v662 = vsel %vm512, %v638, 0.0
        %663 = vadd.xlane.f32.xlu0 %v662
        %v664 = vpop.xlane.xlu0 %663
        %v665 = vsel %vm512, %v639, 0.0
        %666 = vadd.xlane.f32.xlu0 %v665
        %v667 = vpop.xlane.xlu0 %666
        %v668 = vsel %vm512, %v640, 0.0
        %669 = vadd.xlane.f32.xlu0 %v668
        %v670 = vpop.xlane.xlu0 %669
        %v671 = vsel %vm512, %v641, 0.0
        %672 = vadd.xlane.f32.xlu0 %v671
        %v673 = vpop.xlane.xlu0 %672
        %v674 = vsel %vm512, %v642, 0.0
        %675 = vadd.xlane.f32.xlu0 %v674
        %v676 = vpop.xlane.xlu0 %675
        %v677 = vsel %vm512, %v643, 0.0
        %678 = vadd.xlane.f32.xlu0 %v677
        %v679 = vpop.xlane.xlu0 %678
        %v680 = vsel %vm512, %v644, 0.0
        %681 = vadd.xlane.f32.xlu0 %v680
        %v682 = vpop.xlane.xlu0 %681
        %v683 = vsel %vm512, %v645, 0.0
        %684 = vadd.xlane.f32.xlu0 %v683
        %v685 = vpop.xlane.xlu0 %684
        %v686 = vsel %vm512, %v646, 0.0
        %687 = vadd.xlane.f32.xlu0 %v686
        %v688 = vpop.xlane.xlu0 %687
        %v689 = vsel %vm512, %v647, 0.0
        %690 = vadd.xlane.f32.xlu0 %v689
        %v691 = vpop.xlane.xlu0 %690
        %v692 = vsel %vm512, %v648, 0.0
        %693 = vadd.xlane.f32.xlu0 %v692
        %v694 = vpop.xlane.xlu0 %693
        %v695 = vsel %vm512, %v649, 0.0
        %696 = vadd.xlane.f32.xlu0 %v695
        %v697 = vpop.xlane.xlu0 %696
        %v698 = vrcp.pop 64.0
        %v699 = vmul.f32 %v652, %v698
        %v700 = vmul.f32 %v655, %v698
        %v701 = vmul.f32 %v658, %v698
        %v702 = vmul.f32 %v661, %v698
        %v703 = vmul.f32 %v664, %v698
        %v704 = vmul.f32 %v667, %v698
        %v705 = vmul.f32 %v670, %v698
        %v706 = vmul.f32 %v673, %v698
        %v707 = vmul.f32 %v676, %v698
        %v708 = vmul.f32 %v679, %v698
        %v709 = vmul.f32 %v682, %v698
        %v710 = vmul.f32 %v685, %v698
        %v711 = vmul.f32 %v688, %v698
        %v712 = vmul.f32 %v691, %v698
        %v713 = vmul.f32 %v694, %v698
        %v714 = vmul.f32 %v697, %v698
        %v715 = vsub.f32 %v634, %v699
        %v716 = vsub.f32 %v635, %v700
        %v717 = vsub.f32 %v636, %v701
        %v718 = vsub.f32 %v637, %v702
        %v719 = vsub.f32 %v638, %v703
        %v720 = vsub.f32 %v639, %v704
        %v721 = vsub.f32 %v640, %v705
        %v722 = vsub.f32 %v641, %v706
        %v723 = vsub.f32 %v642, %v707
        %v724 = vsub.f32 %v643, %v708
        %v725 = vsub.f32 %v644, %v709
        %v726 = vsub.f32 %v645, %v710
        %v727 = vsub.f32 %v646, %v711
        %v728 = vsub.f32 %v647, %v712
        %v729 = vsub.f32 %v648, %v713
        %v730 = vsub.f32 %v649, %v714
        %v731 = vmul.f32 %v715, %v715
        %v732 = vmul.f32 %v716, %v716
        %v733 = vmul.f32 %v717, %v717
        %v734 = vmul.f32 %v718, %v718
        %v735 = vmul.f32 %v719, %v719
        %v736 = vmul.f32 %v720, %v720
        %v737 = vmul.f32 %v721, %v721
        %v738 = vmul.f32 %v722, %v722
        %v739 = vmul.f32 %v723, %v723
        %v740 = vmul.f32 %v724, %v724
        %v741 = vmul.f32 %v725, %v725
        %v742 = vmul.f32 %v726, %v726
        %v743 = vmul.f32 %v727, %v727
        %v744 = vmul.f32 %v728, %v728
        %v745 = vmul.f32 %v729, %v729
        %v746 = vmul.f32 %v730, %v730
        %v747 = vsel %vm512, %v731, 0.0
        %748 = vadd.xlane.f32.xlu0 %v747
        %v749 = vpop.xlane.xlu0 %748
        %v750 = vsel %vm512, %v732, 0.0
        %751 = vadd.xlane.f32.xlu0 %v750
        %v752 = vpop.xlane.xlu0 %751
        %v753 = vsel %vm512, %v733, 0.0
        %754 = vadd.xlane.f32.xlu0 %v753
        %v755 = vpop.xlane.xlu0 %754
        %v756 = vsel %vm512, %v734, 0.0
        %757 = vadd.xlane.f32.xlu0 %v756
        %v758 = vpop.xlane.xlu0 %757
        %v759 = vsel %vm512, %v735, 0.0
        %760 = vadd.xlane.f32.xlu0 %v759
        %v761 = vpop.xlane.xlu0 %760
        %v762 = vsel %vm512, %v736, 0.0
        %763 = vadd.xlane.f32.xlu0 %v762
        %v764 = vpop.xlane.xlu0 %763
        %v765 = vsel %vm512, %v737, 0.0
        %766 = vadd.xlane.f32.xlu0 %v765
        %v767 = vpop.xlane.xlu0 %766
        %v768 = vsel %vm512, %v738, 0.0
        %769 = vadd.xlane.f32.xlu0 %v768
        %v770 = vpop.xlane.xlu0 %769
        %v771 = vsel %vm512, %v739, 0.0
        %772 = vadd.xlane.f32.xlu0 %v771
        %v773 = vpop.xlane.xlu0 %772
        %v774 = vsel %vm512, %v740, 0.0
        %775 = vadd.xlane.f32.xlu0 %v774
        %v776 = vpop.xlane.xlu0 %775
        %v777 = vsel %vm512, %v741, 0.0
        %778 = vadd.xlane.f32.xlu0 %v777
        %v779 = vpop.xlane.xlu0 %778
        %v780 = vsel %vm512, %v742, 0.0
        %781 = vadd.xlane.f32.xlu0 %v780
        %v782 = vpop.xlane.xlu0 %781
        %v783 = vsel %vm512, %v743, 0.0
        %784 = vadd.xlane.f32.xlu0 %v783
        %v785 = vpop.xlane.xlu0 %784
        %v786 = vsel %vm512, %v744, 0.0
        %787 = vadd.xlane.f32.xlu0 %v786
        %v788 = vpop.xlane.xlu0 %787
        %v789 = vsel %vm512, %v745, 0.0
        %790 = vadd.xlane.f32.xlu0 %v789
        %v791 = vpop.xlane.xlu0 %790
        %v792 = vsel %vm512, %v746, 0.0
        %793 = vadd.xlane.f32.xlu0 %v792
        %v794 = vpop.xlane.xlu0 %793
        %v795 = vmul.f32 %v749, %v698
        %v796 = vmul.f32 %v752, %v698
        %v797 = vmul.f32 %v755, %v698
        %v798 = vmul.f32 %v758, %v698
        %v799 = vmul.f32 %v761, %v698
        %v800 = vmul.f32 %v764, %v698
        %v801 = vmul.f32 %v767, %v698
        %v802 = vmul.f32 %v770, %v698
        %v803 = vmul.f32 %v773, %v698
        %v804 = vmul.f32 %v776, %v698
        %v805 = vmul.f32 %v779, %v698
        %v806 = vmul.f32 %v782, %v698
        %v807 = vmul.f32 %v785, %v698
        %v808 = vmul.f32 %v788, %v698
        %v809 = vmul.f32 %v791, %v698
        %v810 = vmul.f32 %v794, %v698
        %v811 = vadd.f32 %v795, 1e-05
        %v812 = vadd.f32 %v796, 1e-05
        %v813 = vadd.f32 %v797, 1e-05
        %v814 = vadd.f32 %v798, 1e-05
        %v815 = vadd.f32 %v799, 1e-05
        %v816 = vadd.f32 %v800, 1e-05
        %v817 = vadd.f32 %v801, 1e-05
        %v818 = vadd.f32 %v802, 1e-05
        %v819 = vadd.f32 %v803, 1e-05
        %v820 = vadd.f32 %v804, 1e-05
        %v821 = vadd.f32 %v805, 1e-05
        %v822 = vadd.f32 %v806, 1e-05
        %v823 = vadd.f32 %v807, 1e-05
        %v824 = vadd.f32 %v808, 1e-05
        %v825 = vadd.f32 %v809, 1e-05
        %v826 = vadd.f32 %v810, 1e-05
        %v827 = vrsqrt.pop %v811
        %v828 = vrsqrt.pop %v812
        %v829 = vrsqrt.pop %v813
        %v830 = vrsqrt.pop %v814
        %v831 = vrsqrt.pop %v815
        %v832 = vrsqrt.pop %v816
        %v833 = vrsqrt.pop %v817
        %v834 = vrsqrt.pop %v818
        %v835 = vrsqrt.pop %v819
        %v836 = vrsqrt.pop %v820
        %v837 = vrsqrt.pop %v821
        %v838 = vrsqrt.pop %v822
        %v839 = vrsqrt.pop %v823
        %v840 = vrsqrt.pop %v824
        %v841 = vrsqrt.pop %v825
        %v842 = vrsqrt.pop %v826
        %v843 = vmul.f32 %v715, %v827
        %v844 = vmul.f32 %v716, %v828
        %v845 = vmul.f32 %v717, %v829
        %v846 = vmul.f32 %v718, %v830
        %v847 = vmul.f32 %v719, %v831
        %v848 = vmul.f32 %v720, %v832
        %v849 = vmul.f32 %v721, %v833
        %v850 = vmul.f32 %v722, %v834
        %v851 = vmul.f32 %v723, %v835
        %v852 = vmul.f32 %v724, %v836
        %v853 = vmul.f32 %v725, %v837
        %v854 = vmul.f32 %v726, %v838
        %v855 = vmul.f32 %v727, %v839
        %v856 = vmul.f32 %v728, %v840
        %v857 = vmul.f32 %v729, %v841
        %v858 = vmul.f32 %v730, %v842
        %v859 = vlaneseq
        %v860 = vshrl.u32 %v859, 7
        %v861 = vsub.s32 1, %v860
        %v862 = vrot.slane %v467, %v861
        %v863 = vmul.f32 %v843, %v862
        %v864 = vmul.f32 %v844, %v862
        %v865 = vmul.f32 %v845, %v862
        %v866 = vmul.f32 %v846, %v862
        %v867 = vmul.f32 %v847, %v862
        %v868 = vmul.f32 %v848, %v862
        %v869 = vmul.f32 %v849, %v862
        %v870 = vmul.f32 %v850, %v862
        %v871 = vmul.f32 %v851, %v862
        %v872 = vmul.f32 %v852, %v862
        %v873 = vmul.f32 %v853, %v862
        %v874 = vmul.f32 %v854, %v862
        %v875 = vmul.f32 %v855, %v862
        %v876 = vmul.f32 %v856, %v862
        %v877 = vmul.f32 %v857, %v862
        %v878 = vmul.f32 %v858, %v862
        %v879 = vlaneseq
        %v880 = vshrl.u32 %v879, 7
        %v881 = vsub.s32 2, %v880
        %v882 = vrot.slane %v467, %v881
        %v883 = vadd.f32 %v863, %v882
        %v884 = vadd.f32 %v864, %v882
        %v885 = vadd.f32 %v865, %v882
        %v886 = vadd.f32 %v866, %v882
        %v887 = vadd.f32 %v867, %v882
        %v888 = vadd.f32 %v868, %v882
        %v889 = vadd.f32 %v869, %v882
        %v890 = vadd.f32 %v870, %v882
        %v891 = vadd.f32 %v871, %v882
        %v892 = vadd.f32 %v872, %v882
        %v893 = vadd.f32 %v873, %v882
        %v894 = vadd.f32 %v874, %v882
        %v895 = vadd.f32 %v875, %v882
        %v896 = vadd.f32 %v876, %v882
        %v897 = vadd.f32 %v877, %v882
        %v898 = vadd.f32 %v878, %v882
        %v899 = vpack.c.bf16 %v884, %v883
        %v900 = vpack.c.bf16 %v886, %v885
        %v901 = vpack.c.bf16 %v888, %v887
        %v902 = vpack.c.bf16 %v890, %v889
        %v903 = vpack.c.bf16 %v892, %v891
        %v904 = vpack.c.bf16 %v894, %v893
        %v905 = vpack.c.bf16 %v896, %v895
        %v906 = vpack.c.bf16 %v898, %v897
        %v907 = vld [vmem:[%s3] sm:$0xff]
        %v908 = vld [vmem:[%s3 + $0x8] sm:$0xff]
        %v909 = vld [vmem:[%s3 + $0x10] sm:$0xff]
        %v910 = vld [vmem:[%s3 + $0x18] sm:$0xff]
        %v911 = vld [vmem:[%s3 + $0x20] sm:$0xff]
        %v912 = vld [vmem:[%s3 + $0x28] sm:$0xff]
        %v913 = vld [vmem:[%s3 + $0x30] sm:$0xff]
        %v914 = vld [vmem:[%s3 + $0x38] sm:$0xff]
        %v915 = vld [vmem:[%s6] sm:$0x3]
        %v917 = vlaneseq
        %v918 = vshrl.u32 %v917, 7
        %v919 = vsub.s32 0, %v918
        %v920 = vrot.slane %v915, %v919
        %v921 = vlaneseq
        %v922 = vshrl.u32 %v921, 7
        %v923 = vsub.s32 1, %v922
        %v924 = vrot.slane %v915, %v923
        %v935 = vunpack.c.l.b16 %v907
        %v936 = vunpack.c.h.b16 %v907
        %v937 = vunpack.c.l.b16 %v908
        %v938 = vunpack.c.h.b16 %v908
        %v939 = vunpack.c.l.b16 %v909
        %v940 = vunpack.c.h.b16 %v909
        %v941 = vunpack.c.l.b16 %v910
        %v942 = vunpack.c.h.b16 %v910
        %v943 = vunpack.c.l.b16 %v911
        %v944 = vunpack.c.h.b16 %v911
        %v945 = vunpack.c.l.b16 %v912
        %v946 = vunpack.c.h.b16 %v912
        %v947 = vunpack.c.l.b16 %v913
        %v948 = vunpack.c.h.b16 %v913
        %v949 = vunpack.c.l.b16 %v914
        %v950 = vunpack.c.h.b16 %v914
        %v951 = vpack.c.b16 %v937, %v935
        %v952 = vpack.c.b16 %v938, %v936
        %v953 = vpack.c.b16 %v941, %v939
        %v954 = vpack.c.b16 %v942, %v940
        %v955 = vpack.c.b16 %v945, %v943
        %v956 = vpack.c.b16 %v946, %v944
        %v957 = vpack.c.b16 %v949, %v947
        %v958 = vpack.c.b16 %v950, %v948
        %v968 = vsel %vm512, %v899, 0
        %v971 = vsel %vm512, %v900, 0
        %v974 = vsel %vm512, %v901, 0
        %v977 = vsel %vm512, %v902, 0
        %v980 = vsel %vm512, %v903, 0
        %v983 = vsel %vm512, %v904, 0
        %v986 = vsel %vm512, %v905, 0
        %v989 = vsel %vm512, %v906, 0
        %991 = vmatprep.subr.bf16.mxu0 %v952
        %992 = vmatpush1.bf16.msra.mxu0 %v951
        %993 = vmatprep.subr.bf16.mxu0 %v954
        %994 = vmatpush1.bf16.msra.mxu0 %v953
        %995 = vmatprep.subr.bf16.mxu0 %v956
        %996 = vmatpush1.bf16.msra.mxu0 %v955
        %997 = vmatprep.subr.bf16.mxu0 %v958
        %998 = vmatpush1.bf16.msra.mxu0 %v957
        %999 = vmatprep.subr.bf16.mxu0 0
        %1000 = vmatpush1.bf16.msra.mxu0 0
        %1001 = vmatprep.subr.bf16.mxu0 0
        %1002 = vmatpush1.bf16.msra.mxu0 0
        %1003 = vmatprep.subr.bf16.mxu0 0
        %1004 = vmatpush1.bf16.msra.mxu0 0
        %1005 = vmatprep.subr.bf16.mxu0 0
        %1006 = vmatpush1.bf16.msra.mxu0 0
        %1007 = vmatprep.subr.bf16.mxu0 0
        %1008 = vmatpush1.bf16.msra.mxu0 0
        %1009 = vmatprep.subr.bf16.mxu0 0
        %1010 = vmatpush1.bf16.msra.mxu0 0
        %1011 = vmatprep.subr.bf16.mxu0 0
        %1012 = vmatpush1.bf16.msra.mxu0 0
        %1013 = vmatprep.subr.bf16.mxu0 0
        %1014 = vmatpush1.bf16.msra.mxu0 0
        %1015 = vmatprep.subr.bf16.mxu0 0
        %1016 = vmatpush1.bf16.msra.mxu0 0
        %1017 = vmatprep.subr.bf16.mxu0 0
        %1018 = vmatpush1.bf16.msra.mxu0 0
        %1019 = vmatprep.subr.bf16.mxu0 0
        %1020 = vmatpush1.bf16.msra.mxu0 0
        %1021 = vmatprep.subr.bf16.mxu0 0
        %1022 = vmatpush1.bf16.msra.mxu0 0
        %1023 = vmatprep.mubr.bf16.mxu0 0
        %1024 = vmatmul.mubr.bf16.gmra.mrb[0].mxu0 %v968
        %v1025 = vpop.f32.mrb[0].mxu0
        %v1026 = vadd.f32 %v920, %v1025
        %v1027 = vpop.f32.mrb[0].mxu0
        %v1028 = vadd.f32 %v924, %v1027
        %v1029 = vpop.f32.mrb[0].mxu0
        %v1030 = vadd.f32 %v920, %v1029
        %v1031 = vpop.f32.mrb[0].mxu0
        %v1032 = vadd.f32 %v924, %v1031
        %1033 = vmatprep.mubr.bf16.mxu0 0
        %1034 = vmatmul.mubr.bf16.gmra.mrb[0].mxu0 %v971
        %v1035 = vpop.f32.mrb[0].mxu0
        %v1036 = vadd.f32 %v920, %v1035
        %v1037 = vpop.f32.mrb[0].mxu0
        %v1038 = vadd.f32 %v924, %v1037
        %v1039 = vpop.f32.mrb[0].mxu0
        %v1040 = vadd.f32 %v920, %v1039
        %v1041 = vpop.f32.mrb[0].mxu0
        %v1042 = vadd.f32 %v924, %v1041
        %1043 = vmatprep.mubr.bf16.mxu0 0
        %1044 = vmatmul.mubr.bf16.gmra.mrb[0].mxu0 %v974
        %v1045 = vpop.f32.mrb[0].mxu0
        %v1046 = vadd.f32 %v920, %v1045
        %v1047 = vpop.f32.mrb[0].mxu0
        %v1048 = vadd.f32 %v924, %v1047
        %v1049 = vpop.f32.mrb[0].mxu0
        %v1050 = vadd.f32 %v920, %v1049
        %v1051 = vpop.f32.mrb[0].mxu0
        %v1052 = vadd.f32 %v924, %v1051
        %1053 = vmatprep.mubr.bf16.mxu0 0
        %1054 = vmatmul.mubr.bf16.gmra.mrb[0].mxu0 %v977
        %v1055 = vpop.f32.mrb[0].mxu0
        %v1056 = vadd.f32 %v920, %v1055
        %v1057 = vpop.f32.mrb[0].mxu0
        %v1058 = vadd.f32 %v924, %v1057
        %v1059 = vpop.f32.mrb[0].mxu0
        %v1060 = vadd.f32 %v920, %v1059
        %v1061 = vpop.f32.mrb[0].mxu0
        %v1062 = vadd.f32 %v924, %v1061
        %1063 = vmatprep.mubr.bf16.mxu0 0
        %1064 = vmatmul.mubr.bf16.gmra.mrb[0].mxu0 %v980
        %v1065 = vpop.f32.mrb[0].mxu0
        %v1066 = vadd.f32 %v920, %v1065
        %v1067 = vpop.f32.mrb[0].mxu0
        %v1068 = vadd.f32 %v924, %v1067
        %v1069 = vpop.f32.mrb[0].mxu0
        %v1070 = vadd.f32 %v920, %v1069
        %v1071 = vpop.f32.mrb[0].mxu0
        %v1072 = vadd.f32 %v924, %v1071
        %1073 = vmatprep.mubr.bf16.mxu0 0
        %1074 = vmatmul.mubr.bf16.gmra.mrb[0].mxu0 %v983
        %v1075 = vpop.f32.mrb[0].mxu0
        %v1076 = vadd.f32 %v920, %v1075
        %v1077 = vpop.f32.mrb[0].mxu0
        %v1078 = vadd.f32 %v924, %v1077
        %v1079 = vpop.f32.mrb[0].mxu0
        %v1080 = vadd.f32 %v920, %v1079
        %v1081 = vpop.f32.mrb[0].mxu0
        %v1082 = vadd.f32 %v924, %v1081
        %1083 = vmatprep.mubr.bf16.mxu0 0
        %1084 = vmatmul.mubr.bf16.gmra.mrb[0].mxu0 %v986
        %v1085 = vpop.f32.mrb[0].mxu0
        %v1086 = vadd.f32 %v920, %v1085
        %v1087 = vpop.f32.mrb[0].mxu0
        %v1088 = vadd.f32 %v924, %v1087
        %v1089 = vpop.f32.mrb[0].mxu0
        %v1090 = vadd.f32 %v920, %v1089
        %v1091 = vpop.f32.mrb[0].mxu0
        %v1092 = vadd.f32 %v924, %v1091
        %1093 = vmatprep.mubr.bf16.mxu0 0
        %1094 = vmatmul.mubr.bf16.gmra.mrb[0].mxu0 %v989
        %v1095 = vpop.f32.mrb[0].mxu0
        %v1096 = vadd.f32 %v920, %v1095
        %v1097 = vpop.f32.mrb[0].mxu0
        %v1098 = vadd.f32 %v924, %v1097
        %v1099 = vpop.f32.mrb[0].mxu0
        %v1100 = vadd.f32 %v920, %v1099
        %v1101 = vpop.f32.mrb[0].mxu0
        %v1102 = vadd.f32 %v924, %v1101
        %1103 = vdwg.mxu0
        %v1104 = vmax.f32 %v1026, 0.0
        %v1105 = vmax.f32 %v1028, 0.0
        %v1106 = vmax.f32 %v1030, 0.0
        %v1107 = vmax.f32 %v1032, 0.0
        %v1108 = vmax.f32 %v1036, 0.0
        %v1109 = vmax.f32 %v1038, 0.0
        %v1110 = vmax.f32 %v1040, 0.0
        %v1111 = vmax.f32 %v1042, 0.0
        %v1112 = vmax.f32 %v1046, 0.0
        %v1113 = vmax.f32 %v1048, 0.0
        %v1114 = vmax.f32 %v1050, 0.0
        %v1115 = vmax.f32 %v1052, 0.0
        %v1116 = vmax.f32 %v1056, 0.0
        %v1117 = vmax.f32 %v1058, 0.0
        %v1118 = vmax.f32 %v1060, 0.0
        %v1119 = vmax.f32 %v1062, 0.0
        %v1120 = vmax.f32 %v1066, 0.0
        %v1121 = vmax.f32 %v1068, 0.0
        %v1122 = vmax.f32 %v1070, 0.0
        %v1123 = vmax.f32 %v1072, 0.0
        %v1124 = vmax.f32 %v1076, 0.0
        %v1125 = vmax.f32 %v1078, 0.0
        %v1126 = vmax.f32 %v1080, 0.0
        %v1127 = vmax.f32 %v1082, 0.0
        %v1128 = vmax.f32 %v1086, 0.0
        %v1129 = vmax.f32 %v1088, 0.0
        %v1130 = vmax.f32 %v1090, 0.0
        %v1131 = vmax.f32 %v1092, 0.0
        %v1132 = vmax.f32 %v1096, 0.0
        %v1133 = vmax.f32 %v1098, 0.0
        %v1134 = vmax.f32 %v1100, 0.0
        %v1135 = vmax.f32 %v1102, 0.0
        %v1136 = vpack.c.bf16 %v1106, %v1104
        %v1137 = vpack.c.bf16 %v1107, %v1105
        %v1138 = vpack.c.bf16 %v1110, %v1108
        %v1139 = vpack.c.bf16 %v1111, %v1109
        %v1140 = vpack.c.bf16 %v1114, %v1112
        %v1141 = vpack.c.bf16 %v1115, %v1113
        %v1142 = vpack.c.bf16 %v1118, %v1116
        %v1143 = vpack.c.bf16 %v1119, %v1117
        %v1144 = vpack.c.bf16 %v1122, %v1120
        %v1145 = vpack.c.bf16 %v1123, %v1121
        %v1146 = vpack.c.bf16 %v1126, %v1124
        %v1147 = vpack.c.bf16 %v1127, %v1125
        %v1148 = vpack.c.bf16 %v1130, %v1128
        %v1149 = vpack.c.bf16 %v1131, %v1129
        %v1150 = vpack.c.bf16 %v1134, %v1132
        %v1151 = vpack.c.bf16 %v1135, %v1133
        %v1152 = vld [vmem:[%s4] sm:$0xf]
        %v1153 = vld [vmem:[%s4 + $0x4] sm:$0xf]
        %v1154 = vld [vmem:[%s4 + $0x8] sm:$0xf]
        %v1155 = vld [vmem:[%s4 + $0xc] sm:$0xf]
        %v1156 = vld [vmem:[%s4 + $0x10] sm:$0xf]
        %v1157 = vld [vmem:[%s4 + $0x14] sm:$0xf]
        %v1158 = vld [vmem:[%s4 + $0x18] sm:$0xf]
        %v1159 = vld [vmem:[%s4 + $0x1c] sm:$0xf]
        %v1160 = vld [vmem:[%s4 + $0x20] sm:$0xf]
        %v1161 = vld [vmem:[%s4 + $0x24] sm:$0xf]
        %v1162 = vld [vmem:[%s4 + $0x28] sm:$0xf]
        %v1163 = vld [vmem:[%s4 + $0x2c] sm:$0xf]
        %v1164 = vld [vmem:[%s4 + $0x30] sm:$0xf]
        %v1165 = vld [vmem:[%s4 + $0x34] sm:$0xf]
        %v1166 = vld [vmem:[%s4 + $0x38] sm:$0xf]
        %v1167 = vld [vmem:[%s4 + $0x3c] sm:$0xf]
        %v1168 = vld [vmem:[%s4 + $0x40] sm:$0xf]
        %v1169 = vld [vmem:[%s4 + $0x44] sm:$0xf]
        %v1170 = vld [vmem:[%s4 + $0x48] sm:$0xf]
        %v1171 = vld [vmem:[%s4 + $0x4c] sm:$0xf]
        %v1172 = vld [vmem:[%s4 + $0x50] sm:$0xf]
        %v1173 = vld [vmem:[%s4 + $0x54] sm:$0xf]
        %v1174 = vld [vmem:[%s4 + $0x58] sm:$0xf]
        %v1175 = vld [vmem:[%s4 + $0x5c] sm:$0xf]
        %v1176 = vld [vmem:[%s4 + $0x60] sm:$0xf]
        %v1177 = vld [vmem:[%s4 + $0x64] sm:$0xf]
        %v1178 = vld [vmem:[%s4 + $0x68] sm:$0xf]
        %v1179 = vld [vmem:[%s4 + $0x6c] sm:$0xf]
        %v1180 = vld [vmem:[%s4 + $0x70] sm:$0xf]
        %v1181 = vld [vmem:[%s4 + $0x74] sm:$0xf]
        %v1182 = vld [vmem:[%s4 + $0x78] sm:$0xf]
        %v1183 = vld [vmem:[%s4 + $0x7c] sm:$0xf]
        %v1184 = vlaneseq
        %v1185 = vshrl.u32 %v1184, 7
        %v1186 = vsub.s32 3, %v1185
        %v1187 = vrot.slane %v467, %v1186
        %v1220 = vunpack.c.l.b16 %v1152
        %v1221 = vunpack.c.l.b16 %v1153
        %v1222 = vunpack.c.l.b16 %v1154
        %v1223 = vunpack.c.l.b16 %v1155
        %v1224 = vunpack.c.l.b16 %v1156
        %v1225 = vunpack.c.l.b16 %v1157
        %v1226 = vunpack.c.l.b16 %v1158
        %v1227 = vunpack.c.l.b16 %v1159
        %v1228 = vunpack.c.l.b16 %v1160
        %v1229 = vunpack.c.l.b16 %v1161
        %v1230 = vunpack.c.l.b16 %v1162
        %v1231 = vunpack.c.l.b16 %v1163
        %v1232 = vunpack.c.l.b16 %v1164
        %v1233 = vunpack.c.l.b16 %v1165
        %v1234 = vunpack.c.l.b16 %v1166
        %v1235 = vunpack.c.l.b16 %v1167
        %v1236 = vunpack.c.l.b16 %v1168
        %v1237 = vunpack.c.l.b16 %v1169
        %v1238 = vunpack.c.l.b16 %v1170
        %v1239 = vunpack.c.l.b16 %v1171
        %v1240 = vunpack.c.l.b16 %v1172
        %v1241 = vunpack.c.l.b16 %v1173
        %v1242 = vunpack.c.l.b16 %v1174
        %v1243 = vunpack.c.l.b16 %v1175
        %v1244 = vunpack.c.l.b16 %v1176
        %v1245 = vunpack.c.l.b16 %v1177
        %v1246 = vunpack.c.l.b16 %v1178
        %v1247 = vunpack.c.l.b16 %v1179
        %v1248 = vunpack.c.l.b16 %v1180
        %v1249 = vunpack.c.l.b16 %v1181
        %v1250 = vunpack.c.l.b16 %v1182
        %v1251 = vunpack.c.l.b16 %v1183
        %v1252 = vpack.c.b16 %v1221, %v1220
        %v1253 = vpack.c.b16 %v1223, %v1222
        %v1254 = vpack.c.b16 %v1225, %v1224
        %v1255 = vpack.c.b16 %v1227, %v1226
        %v1256 = vpack.c.b16 %v1229, %v1228
        %v1257 = vpack.c.b16 %v1231, %v1230
        %v1258 = vpack.c.b16 %v1233, %v1232
        %v1259 = vpack.c.b16 %v1235, %v1234
        %v1260 = vpack.c.b16 %v1237, %v1236
        %v1261 = vpack.c.b16 %v1239, %v1238
        %v1262 = vpack.c.b16 %v1241, %v1240
        %v1263 = vpack.c.b16 %v1243, %v1242
        %v1264 = vpack.c.b16 %v1245, %v1244
        %v1265 = vpack.c.b16 %v1247, %v1246
        %v1266 = vpack.c.b16 %v1249, %v1248
        %v1267 = vpack.c.b16 %v1251, %v1250
        %1284 = vmatprep.subr.bf16.mxu0 0
        %1285 = vmatpush1.bf16.msra.mxu0 %v1252
        %1286 = vmatprep.subr.bf16.mxu0 0
        %1287 = vmatpush1.bf16.msra.mxu0 %v1253
        %1288 = vmatprep.subr.bf16.mxu0 0
        %1289 = vmatpush1.bf16.msra.mxu0 %v1254
        %1290 = vmatprep.subr.bf16.mxu0 0
        %1291 = vmatpush1.bf16.msra.mxu0 %v1255
        %1292 = vmatprep.subr.bf16.mxu0 0
        %1293 = vmatpush1.bf16.msra.mxu0 %v1256
        %1294 = vmatprep.subr.bf16.mxu0 0
        %1295 = vmatpush1.bf16.msra.mxu0 %v1257
        %1296 = vmatprep.subr.bf16.mxu0 0
        %1297 = vmatpush1.bf16.msra.mxu0 %v1258
        %1298 = vmatprep.subr.bf16.mxu0 0
        %1299 = vmatpush1.bf16.msra.mxu0 %v1259
        %1300 = vmatprep.subr.bf16.mxu0 0
        %1301 = vmatpush1.bf16.msra.mxu0 %v1260
        %1302 = vmatprep.subr.bf16.mxu0 0
        %1303 = vmatpush1.bf16.msra.mxu0 %v1261
        %1304 = vmatprep.subr.bf16.mxu0 0
        %1305 = vmatpush1.bf16.msra.mxu0 %v1262
        %1306 = vmatprep.subr.bf16.mxu0 0
        %1307 = vmatpush1.bf16.msra.mxu0 %v1263
        %1308 = vmatprep.subr.bf16.mxu0 0
        %1309 = vmatpush1.bf16.msra.mxu0 %v1264
        %1310 = vmatprep.subr.bf16.mxu0 0
        %1311 = vmatpush1.bf16.msra.mxu0 %v1265
        %1312 = vmatprep.subr.bf16.mxu0 0
        %1313 = vmatpush1.bf16.msra.mxu0 %v1266
        %1314 = vmatprep.subr.bf16.mxu0 0
        %1315 = vmatpush1.bf16.msra.mxu0 %v1267
        %1316 = vmatprep.mubr.bf16.mxu0 %v1137
        %1317 = vmatmul.mubr.bf16.gmra.mrb[0].mxu0 %v1136
        %v1318 = vpop.f32.mrb[0].mxu0
        %v1319 = vadd.f32 %v1187, %v1318
        %v1320 = vpop.f32.mrb[0].mxu0
        %v1321 = vpop.f32.mrb[0].mxu0
        %v1322 = vadd.f32 %v1187, %v1321
        %v1323 = vpop.f32.mrb[0].mxu0
        %1324 = vmatprep.mubr.bf16.mxu0 %v1139
        %1325 = vmatmul.mubr.bf16.gmra.mrb[0].mxu0 %v1138
        %v1326 = vpop.f32.mrb[0].mxu0
        %v1327 = vadd.f32 %v1187, %v1326
        %v1328 = vpop.f32.mrb[0].mxu0
        %v1329 = vpop.f32.mrb[0].mxu0
        %v1330 = vadd.f32 %v1187, %v1329
        %v1331 = vpop.f32.mrb[0].mxu0
        %1332 = vmatprep.mubr.bf16.mxu0 %v1141
        %1333 = vmatmul.mubr.bf16.gmra.mrb[0].mxu0 %v1140
        %v1334 = vpop.f32.mrb[0].mxu0
        %v1335 = vadd.f32 %v1187, %v1334
        %v1336 = vpop.f32.mrb[0].mxu0
        %v1337 = vpop.f32.mrb[0].mxu0
        %v1338 = vadd.f32 %v1187, %v1337
        %v1339 = vpop.f32.mrb[0].mxu0
        %1340 = vmatprep.mubr.bf16.mxu0 %v1143
        %1341 = vmatmul.mubr.bf16.gmra.mrb[0].mxu0 %v1142
        %v1342 = vpop.f32.mrb[0].mxu0
        %v1343 = vadd.f32 %v1187, %v1342
        %v1344 = vpop.f32.mrb[0].mxu0
        %v1345 = vpop.f32.mrb[0].mxu0
        %v1346 = vadd.f32 %v1187, %v1345
        %v1347 = vpop.f32.mrb[0].mxu0
        %1348 = vmatprep.mubr.bf16.mxu0 %v1145
        %1349 = vmatmul.mubr.bf16.gmra.mrb[0].mxu0 %v1144
        %v1350 = vpop.f32.mrb[0].mxu0
        %v1351 = vadd.f32 %v1187, %v1350
        %v1352 = vpop.f32.mrb[0].mxu0
        %v1353 = vpop.f32.mrb[0].mxu0
        %v1354 = vadd.f32 %v1187, %v1353
        %v1355 = vpop.f32.mrb[0].mxu0
        %1356 = vmatprep.mubr.bf16.mxu0 %v1147
        %1357 = vmatmul.mubr.bf16.gmra.mrb[0].mxu0 %v1146
        %v1358 = vpop.f32.mrb[0].mxu0
        %v1359 = vadd.f32 %v1187, %v1358
        %v1360 = vpop.f32.mrb[0].mxu0
        %v1361 = vpop.f32.mrb[0].mxu0
        %v1362 = vadd.f32 %v1187, %v1361
        %v1363 = vpop.f32.mrb[0].mxu0
        %1364 = vmatprep.mubr.bf16.mxu0 %v1149
        %1365 = vmatmul.mubr.bf16.gmra.mrb[0].mxu0 %v1148
        %v1366 = vpop.f32.mrb[0].mxu0
        %v1367 = vadd.f32 %v1187, %v1366
        %v1368 = vpop.f32.mrb[0].mxu0
        %v1369 = vpop.f32.mrb[0].mxu0
        %v1370 = vadd.f32 %v1187, %v1369
        %v1371 = vpop.f32.mrb[0].mxu0
        %1372 = vmatprep.mubr.bf16.mxu0 %v1151
        %1373 = vmatmul.mubr.bf16.gmra.mrb[0].mxu0 %v1150
        %v1374 = vpop.f32.mrb[0].mxu0
        %v1375 = vadd.f32 %v1187, %v1374
        %v1376 = vpop.f32.mrb[0].mxu0
        %v1377 = vpop.f32.mrb[0].mxu0
        %v1378 = vadd.f32 %v1187, %v1377
        %v1379 = vpop.f32.mrb[0].mxu0
        %1380 = vdwg.mxu0
        %v1381 = vadd.f32 %v883, %v1319
        %v1382 = vadd.f32 %v884, %v1322
        %v1383 = vadd.f32 %v885, %v1327
        %v1384 = vadd.f32 %v886, %v1330
        %v1385 = vadd.f32 %v887, %v1335
        %v1386 = vadd.f32 %v888, %v1338
        %v1387 = vadd.f32 %v889, %v1343
        %v1388 = vadd.f32 %v890, %v1346
        %v1389 = vadd.f32 %v891, %v1351
        %v1390 = vadd.f32 %v892, %v1354
        %v1391 = vadd.f32 %v893, %v1359
        %v1392 = vadd.f32 %v894, %v1362
        %v1393 = vadd.f32 %v895, %v1367
        %v1394 = vadd.f32 %v896, %v1370
        %v1395 = vadd.f32 %v897, %v1375
        %v1396 = vadd.f32 %v898, %v1378
        %v1397 = vsel %vm512, %v1381, 0.0
        %1398 = vadd.xlane.f32.xlu0 %v1397
        %v1399 = vpop.xlane.xlu0 %1398
        %v1400 = vsel %vm512, %v1382, 0.0
        %1401 = vadd.xlane.f32.xlu0 %v1400
        %v1402 = vpop.xlane.xlu0 %1401
        %v1403 = vsel %vm512, %v1383, 0.0
        %1404 = vadd.xlane.f32.xlu0 %v1403
        %v1405 = vpop.xlane.xlu0 %1404
        %v1406 = vsel %vm512, %v1384, 0.0
        %1407 = vadd.xlane.f32.xlu0 %v1406
        %v1408 = vpop.xlane.xlu0 %1407
        %v1409 = vsel %vm512, %v1385, 0.0
        %1410 = vadd.xlane.f32.xlu0 %v1409
        %v1411 = vpop.xlane.xlu0 %1410
        %v1412 = vsel %vm512, %v1386, 0.0
        %1413 = vadd.xlane.f32.xlu0 %v1412
        %v1414 = vpop.xlane.xlu0 %1413
        %v1415 = vsel %vm512, %v1387, 0.0
        %1416 = vadd.xlane.f32.xlu0 %v1415
        %v1417 = vpop.xlane.xlu0 %1416
        %v1418 = vsel %vm512, %v1388, 0.0
        %1419 = vadd.xlane.f32.xlu0 %v1418
        %v1420 = vpop.xlane.xlu0 %1419
        %v1421 = vsel %vm512, %v1389, 0.0
        %1422 = vadd.xlane.f32.xlu0 %v1421
        %v1423 = vpop.xlane.xlu0 %1422
        %v1424 = vsel %vm512, %v1390, 0.0
        %1425 = vadd.xlane.f32.xlu0 %v1424
        %v1426 = vpop.xlane.xlu0 %1425
        %v1427 = vsel %vm512, %v1391, 0.0
        %1428 = vadd.xlane.f32.xlu0 %v1427
        %v1429 = vpop.xlane.xlu0 %1428
        %v1430 = vsel %vm512, %v1392, 0.0
        %1431 = vadd.xlane.f32.xlu0 %v1430
        %v1432 = vpop.xlane.xlu0 %1431
        %v1433 = vsel %vm512, %v1393, 0.0
        %1434 = vadd.xlane.f32.xlu0 %v1433
        %v1435 = vpop.xlane.xlu0 %1434
        %v1436 = vsel %vm512, %v1394, 0.0
        %1437 = vadd.xlane.f32.xlu0 %v1436
        %v1438 = vpop.xlane.xlu0 %1437
        %v1439 = vsel %vm512, %v1395, 0.0
        %1440 = vadd.xlane.f32.xlu0 %v1439
        %v1441 = vpop.xlane.xlu0 %1440
        %v1442 = vsel %vm512, %v1396, 0.0
        %1443 = vadd.xlane.f32.xlu0 %v1442
        %v1444 = vpop.xlane.xlu0 %1443
        %v1445 = vmul.f32 %v1399, %v698
        %v1446 = vmul.f32 %v1402, %v698
        %v1447 = vmul.f32 %v1405, %v698
        %v1448 = vmul.f32 %v1408, %v698
        %v1449 = vmul.f32 %v1411, %v698
        %v1450 = vmul.f32 %v1414, %v698
        %v1451 = vmul.f32 %v1417, %v698
        %v1452 = vmul.f32 %v1420, %v698
        %v1453 = vmul.f32 %v1423, %v698
        %v1454 = vmul.f32 %v1426, %v698
        %v1455 = vmul.f32 %v1429, %v698
        %v1456 = vmul.f32 %v1432, %v698
        %v1457 = vmul.f32 %v1435, %v698
        %v1458 = vmul.f32 %v1438, %v698
        %v1459 = vmul.f32 %v1441, %v698
        %v1460 = vmul.f32 %v1444, %v698
        %v1461 = vsub.f32 %v1381, %v1445
        %v1462 = vsub.f32 %v1382, %v1446
        %v1463 = vsub.f32 %v1383, %v1447
        %v1464 = vsub.f32 %v1384, %v1448
        %v1465 = vsub.f32 %v1385, %v1449
        %v1466 = vsub.f32 %v1386, %v1450
        %v1467 = vsub.f32 %v1387, %v1451
        %v1468 = vsub.f32 %v1388, %v1452
        %v1469 = vsub.f32 %v1389, %v1453
        %v1470 = vsub.f32 %v1390, %v1454
        %v1471 = vsub.f32 %v1391, %v1455
        %v1472 = vsub.f32 %v1392, %v1456
        %v1473 = vsub.f32 %v1393, %v1457
        %v1474 = vsub.f32 %v1394, %v1458
        %v1475 = vsub.f32 %v1395, %v1459
        %v1476 = vsub.f32 %v1396, %v1460
        %v1477 = vmul.f32 %v1461, %v1461
        %v1478 = vmul.f32 %v1462, %v1462
        %v1479 = vmul.f32 %v1463, %v1463
        %v1480 = vmul.f32 %v1464, %v1464
        %v1481 = vmul.f32 %v1465, %v1465
        %v1482 = vmul.f32 %v1466, %v1466
        %v1483 = vmul.f32 %v1467, %v1467
        %v1484 = vmul.f32 %v1468, %v1468
        %v1485 = vmul.f32 %v1469, %v1469
        %v1486 = vmul.f32 %v1470, %v1470
        %v1487 = vmul.f32 %v1471, %v1471
        %v1488 = vmul.f32 %v1472, %v1472
        %v1489 = vmul.f32 %v1473, %v1473
        %v1490 = vmul.f32 %v1474, %v1474
        %v1491 = vmul.f32 %v1475, %v1475
        %v1492 = vmul.f32 %v1476, %v1476
        %v1493 = vsel %vm512, %v1477, 0.0
        %1494 = vadd.xlane.f32.xlu0 %v1493
        %v1495 = vpop.xlane.xlu0 %1494
        %v1496 = vsel %vm512, %v1478, 0.0
        %1497 = vadd.xlane.f32.xlu0 %v1496
        %v1498 = vpop.xlane.xlu0 %1497
        %v1499 = vsel %vm512, %v1479, 0.0
        %1500 = vadd.xlane.f32.xlu0 %v1499
        %v1501 = vpop.xlane.xlu0 %1500
        %v1502 = vsel %vm512, %v1480, 0.0
        %1503 = vadd.xlane.f32.xlu0 %v1502
        %v1504 = vpop.xlane.xlu0 %1503
        %v1505 = vsel %vm512, %v1481, 0.0
        %1506 = vadd.xlane.f32.xlu0 %v1505
        %v1507 = vpop.xlane.xlu0 %1506
        %v1508 = vsel %vm512, %v1482, 0.0
        %1509 = vadd.xlane.f32.xlu0 %v1508
        %v1510 = vpop.xlane.xlu0 %1509
        %v1511 = vsel %vm512, %v1483, 0.0
        %1512 = vadd.xlane.f32.xlu0 %v1511
        %v1513 = vpop.xlane.xlu0 %1512
        %v1514 = vsel %vm512, %v1484, 0.0
        %1515 = vadd.xlane.f32.xlu0 %v1514
        %v1516 = vpop.xlane.xlu0 %1515
        %v1517 = vsel %vm512, %v1485, 0.0
        %1518 = vadd.xlane.f32.xlu0 %v1517
        %v1519 = vpop.xlane.xlu0 %1518
        %v1520 = vsel %vm512, %v1486, 0.0
        %1521 = vadd.xlane.f32.xlu0 %v1520
        %v1522 = vpop.xlane.xlu0 %1521
        %v1523 = vsel %vm512, %v1487, 0.0
        %1524 = vadd.xlane.f32.xlu0 %v1523
        %v1525 = vpop.xlane.xlu0 %1524
        %v1526 = vsel %vm512, %v1488, 0.0
        %1527 = vadd.xlane.f32.xlu0 %v1526
        %v1528 = vpop.xlane.xlu0 %1527
        %v1529 = vsel %vm512, %v1489, 0.0
        %1530 = vadd.xlane.f32.xlu0 %v1529
        %v1531 = vpop.xlane.xlu0 %1530
        %v1532 = vsel %vm512, %v1490, 0.0
        %1533 = vadd.xlane.f32.xlu0 %v1532
        %v1534 = vpop.xlane.xlu0 %1533
        %v1535 = vsel %vm512, %v1491, 0.0
        %1536 = vadd.xlane.f32.xlu0 %v1535
        %v1537 = vpop.xlane.xlu0 %1536
        %v1538 = vsel %vm512, %v1492, 0.0
        %1539 = vadd.xlane.f32.xlu0 %v1538
        %v1540 = vpop.xlane.xlu0 %1539
        %v1541 = vmul.f32 %v1495, %v698
        %v1542 = vmul.f32 %v1498, %v698
        %v1543 = vmul.f32 %v1501, %v698
        %v1544 = vmul.f32 %v1504, %v698
        %v1545 = vmul.f32 %v1507, %v698
        %v1546 = vmul.f32 %v1510, %v698
        %v1547 = vmul.f32 %v1513, %v698
        %v1548 = vmul.f32 %v1516, %v698
        %v1549 = vmul.f32 %v1519, %v698
        %v1550 = vmul.f32 %v1522, %v698
        %v1551 = vmul.f32 %v1525, %v698
        %v1552 = vmul.f32 %v1528, %v698
        %v1553 = vmul.f32 %v1531, %v698
        %v1554 = vmul.f32 %v1534, %v698
        %v1555 = vmul.f32 %v1537, %v698
        %v1556 = vmul.f32 %v1540, %v698
        %v1557 = vadd.f32 %v1541, 1e-05
        %v1558 = vadd.f32 %v1542, 1e-05
        %v1559 = vadd.f32 %v1543, 1e-05
        %v1560 = vadd.f32 %v1544, 1e-05
        %v1561 = vadd.f32 %v1545, 1e-05
        %v1562 = vadd.f32 %v1546, 1e-05
        %v1563 = vadd.f32 %v1547, 1e-05
        %v1564 = vadd.f32 %v1548, 1e-05
        %v1565 = vadd.f32 %v1549, 1e-05
        %v1566 = vadd.f32 %v1550, 1e-05
        %v1567 = vadd.f32 %v1551, 1e-05
        %v1568 = vadd.f32 %v1552, 1e-05
        %v1569 = vadd.f32 %v1553, 1e-05
        %v1570 = vadd.f32 %v1554, 1e-05
        %v1571 = vadd.f32 %v1555, 1e-05
        %v1572 = vadd.f32 %v1556, 1e-05
        %v1573 = vrsqrt.pop %v1557
        %v1574 = vrsqrt.pop %v1558
        %v1575 = vrsqrt.pop %v1559
        %v1576 = vrsqrt.pop %v1560
        %v1577 = vrsqrt.pop %v1561
        %v1578 = vrsqrt.pop %v1562
        %v1579 = vrsqrt.pop %v1563
        %v1580 = vrsqrt.pop %v1564
        %v1581 = vrsqrt.pop %v1565
        %v1582 = vrsqrt.pop %v1566
        %v1583 = vrsqrt.pop %v1567
        %v1584 = vrsqrt.pop %v1568
        %v1585 = vrsqrt.pop %v1569
        %v1586 = vrsqrt.pop %v1570
        %v1587 = vrsqrt.pop %v1571
        %v1588 = vrsqrt.pop %v1572
        %v1589 = vmul.f32 %v1461, %v1573
        %v1590 = vmul.f32 %v1462, %v1574
        %v1591 = vmul.f32 %v1463, %v1575
        %v1592 = vmul.f32 %v1464, %v1576
        %v1593 = vmul.f32 %v1465, %v1577
        %v1594 = vmul.f32 %v1466, %v1578
        %v1595 = vmul.f32 %v1467, %v1579
        %v1596 = vmul.f32 %v1468, %v1580
        %v1597 = vmul.f32 %v1469, %v1581
        %v1598 = vmul.f32 %v1470, %v1582
        %v1599 = vmul.f32 %v1471, %v1583
        %v1600 = vmul.f32 %v1472, %v1584
        %v1601 = vmul.f32 %v1473, %v1585
        %v1602 = vmul.f32 %v1474, %v1586
        %v1603 = vmul.f32 %v1475, %v1587
        %v1604 = vmul.f32 %v1476, %v1588
        %v1605 = vlaneseq
        %v1606 = vshrl.u32 %v1605, 7
        %v1607 = vsub.s32 4, %v1606
        %v1608 = vrot.slane %v467, %v1607
        %v1609 = vmul.f32 %v1589, %v1608
        %v1610 = vmul.f32 %v1590, %v1608
        %v1611 = vmul.f32 %v1591, %v1608
        %v1612 = vmul.f32 %v1592, %v1608
        %v1613 = vmul.f32 %v1593, %v1608
        %v1614 = vmul.f32 %v1594, %v1608
        %v1615 = vmul.f32 %v1595, %v1608
        %v1616 = vmul.f32 %v1596, %v1608
        %v1617 = vmul.f32 %v1597, %v1608
        %v1618 = vmul.f32 %v1598, %v1608
        %v1619 = vmul.f32 %v1599, %v1608
        %v1620 = vmul.f32 %v1600, %v1608
        %v1621 = vmul.f32 %v1601, %v1608
        %v1622 = vmul.f32 %v1602, %v1608
        %v1623 = vmul.f32 %v1603, %v1608
        %v1624 = vmul.f32 %v1604, %v1608
        %v1625 = vlaneseq
        %v1626 = vshrl.u32 %v1625, 7
        %v1627 = vsub.s32 5, %v1626
        %v1628 = vrot.slane %v467, %v1627
        %v1629 = vadd.f32 %v1609, %v1628
        %v1630 = vadd.f32 %v1610, %v1628
        %v1631 = vadd.f32 %v1611, %v1628
        %v1632 = vadd.f32 %v1612, %v1628
        %v1633 = vadd.f32 %v1613, %v1628
        %v1634 = vadd.f32 %v1614, %v1628
        %v1635 = vadd.f32 %v1615, %v1628
        %v1636 = vadd.f32 %v1616, %v1628
        %v1637 = vadd.f32 %v1617, %v1628
        %v1638 = vadd.f32 %v1618, %v1628
        %v1639 = vadd.f32 %v1619, %v1628
        %v1640 = vadd.f32 %v1620, %v1628
        %v1641 = vadd.f32 %v1621, %v1628
        %v1642 = vadd.f32 %v1622, %v1628
        %v1643 = vadd.f32 %v1623, %v1628
        %v1644 = vadd.f32 %v1624, %v1628
        %s1645 = scalar_lea.vmem %s5, 8
        %v1646 = vld [vmem:[%s1645] sm:$0x3f]
        %v1647 = vpack.c.bf16 %v1630, %v1629
        %v1648 = vpack.c.bf16 %v1632, %v1631
        %v1649 = vpack.c.bf16 %v1634, %v1633
        %v1650 = vpack.c.bf16 %v1636, %v1635
        %v1651 = vpack.c.bf16 %v1638, %v1637
        %v1652 = vpack.c.bf16 %v1640, %v1639
        %v1653 = vpack.c.bf16 %v1642, %v1641
        %v1654 = vpack.c.bf16 %v1644, %v1643
        %s1655 = scalar_lea.vmem %s2, 32
        %v1656 = vld [vmem:[%s1655] sm:$0xf]
        %v1657 = vld [vmem:[%s1655 + $0x4] sm:$0xf]
        %v1658 = vld [vmem:[%s1655 + $0x8] sm:$0xf]
        %v1659 = vld [vmem:[%s1655 + $0xc] sm:$0xf]
        %v1660 = vld [vmem:[%s1655 + $0x10] sm:$0xf]
        %v1661 = vld [vmem:[%s1655 + $0x14] sm:$0xf]
        %v1662 = vld [vmem:[%s1655 + $0x18] sm:$0xf]
        %v1663 = vld [vmem:[%s1655 + $0x1c] sm:$0xf]
        %v1664 = vlaneseq
        %v1665 = vshrl.u32 %v1664, 7
        %v1666 = vsub.s32 0, %v1665
        %v1667 = vrot.slane %v1646, %v1666
        %v1676 = vunpack.c.l.b16 %v1656
        %v1677 = vunpack.c.l.b16 %v1657
        %v1678 = vunpack.c.l.b16 %v1658
        %v1679 = vunpack.c.l.b16 %v1659
        %v1680 = vunpack.c.l.b16 %v1660
        %v1681 = vunpack.c.l.b16 %v1661
        %v1682 = vunpack.c.l.b16 %v1662
        %v1683 = vunpack.c.l.b16 %v1663
        %v1684 = vpack.c.b16 %v1677, %v1676
        %v1685 = vpack.c.b16 %v1679, %v1678
        %v1686 = vpack.c.b16 %v1681, %v1680
        %v1687 = vpack.c.b16 %v1683, %v1682
        %v1693 = vsel %vm512, %v1647, 0
        %v1696 = vsel %vm512, %v1648, 0
        %v1699 = vsel %vm512, %v1649, 0
        %v1702 = vsel %vm512, %v1650, 0
        %v1705 = vsel %vm512, %v1651, 0
        %v1708 = vsel %vm512, %v1652, 0
        %v1711 = vsel %vm512, %v1653, 0
        %v1714 = vsel %vm512, %v1654, 0
        %1716 = vmatprep.subr.bf16.mxu0 0
        %1717 = vmatpush1.bf16.msra.mxu0 %v1684
        %1718 = vmatprep.subr.bf16.mxu0 0
        %1719 = vmatpush1.bf16.msra.mxu0 %v1685
        %1720 = vmatprep.subr.bf16.mxu0 0
        %1721 = vmatpush1.bf16.msra.mxu0 %v1686
        %1722 = vmatprep.subr.bf16.mxu0 0
        %1723 = vmatpush1.bf16.msra.mxu0 %v1687
        %1724 = vmatprep.subr.bf16.mxu0 0
        %1725 = vmatpush1.bf16.msra.mxu0 0
        %1726 = vmatprep.subr.bf16.mxu0 0
        %1727 = vmatpush1.bf16.msra.mxu0 0
        %1728 = vmatprep.subr.bf16.mxu0 0
        %1729 = vmatpush1.bf16.msra.mxu0 0
        %1730 = vmatprep.subr.bf16.mxu0 0
        %1731 = vmatpush1.bf16.msra.mxu0 0
        %1732 = vmatprep.subr.bf16.mxu0 0
        %1733 = vmatpush1.bf16.msra.mxu0 0
        %1734 = vmatprep.subr.bf16.mxu0 0
        %1735 = vmatpush1.bf16.msra.mxu0 0
        %1736 = vmatprep.subr.bf16.mxu0 0
        %1737 = vmatpush1.bf16.msra.mxu0 0
        %1738 = vmatprep.subr.bf16.mxu0 0
        %1739 = vmatpush1.bf16.msra.mxu0 0
        %1740 = vmatprep.subr.bf16.mxu0 0
        %1741 = vmatpush1.bf16.msra.mxu0 0
        %1742 = vmatprep.subr.bf16.mxu0 0
        %1743 = vmatpush1.bf16.msra.mxu0 0
        %1744 = vmatprep.subr.bf16.mxu0 0
        %1745 = vmatpush1.bf16.msra.mxu0 0
        %1746 = vmatprep.subr.bf16.mxu0 0
        %1747 = vmatpush1.bf16.msra.mxu0 0
        %1748 = vmatprep.mubr.bf16.mxu0 0
        %1749 = vmatmul.mubr.bf16.gmra.mrb[0].mxu0 %v1693
        %v1750 = vpop.f32.mrb[0].mxu0
        %v1751 = vadd.f32 %v1667, %v1750
        %v1752 = vpop.f32.mrb[0].mxu0
        %v1753 = vpop.f32.mrb[0].mxu0
        %v1754 = vadd.f32 %v1667, %v1753
        %v1755 = vpop.f32.mrb[0].mxu0
        %1756 = vmatprep.mubr.bf16.mxu0 0
        %1757 = vmatmul.mubr.bf16.gmra.mrb[0].mxu0 %v1696
        %v1758 = vpop.f32.mrb[0].mxu0
        %v1759 = vadd.f32 %v1667, %v1758
        %v1760 = vpop.f32.mrb[0].mxu0
        %v1761 = vpop.f32.mrb[0].mxu0
        %v1762 = vadd.f32 %v1667, %v1761
        %v1763 = vpop.f32.mrb[0].mxu0
        %1764 = vmatprep.mubr.bf16.mxu0 0
        %1765 = vmatmul.mubr.bf16.gmra.mrb[0].mxu0 %v1699
        %v1766 = vpop.f32.mrb[0].mxu0
        %v1767 = vadd.f32 %v1667, %v1766
        %v1768 = vpop.f32.mrb[0].mxu0
        %v1769 = vpop.f32.mrb[0].mxu0
        %v1770 = vadd.f32 %v1667, %v1769
        %v1771 = vpop.f32.mrb[0].mxu0
        %1772 = vmatprep.mubr.bf16.mxu0 0
        %1773 = vmatmul.mubr.bf16.gmra.mrb[0].mxu0 %v1702
        %v1774 = vpop.f32.mrb[0].mxu0
        %v1775 = vadd.f32 %v1667, %v1774
        %v1776 = vpop.f32.mrb[0].mxu0
        %v1777 = vpop.f32.mrb[0].mxu0
        %v1778 = vadd.f32 %v1667, %v1777
        %v1779 = vpop.f32.mrb[0].mxu0
        %1780 = vmatprep.mubr.bf16.mxu0 0
        %1781 = vmatmul.mubr.bf16.gmra.mrb[0].mxu0 %v1705
        %v1782 = vpop.f32.mrb[0].mxu0
        %v1783 = vadd.f32 %v1667, %v1782
        %v1784 = vpop.f32.mrb[0].mxu0
        %v1785 = vpop.f32.mrb[0].mxu0
        %v1786 = vadd.f32 %v1667, %v1785
        %v1787 = vpop.f32.mrb[0].mxu0
        %1788 = vmatprep.mubr.bf16.mxu0 0
        %1789 = vmatmul.mubr.bf16.gmra.mrb[0].mxu0 %v1708
        %v1790 = vpop.f32.mrb[0].mxu0
        %v1791 = vadd.f32 %v1667, %v1790
        %v1792 = vpop.f32.mrb[0].mxu0
        %v1793 = vpop.f32.mrb[0].mxu0
        %v1794 = vadd.f32 %v1667, %v1793
        %v1795 = vpop.f32.mrb[0].mxu0
        %1796 = vmatprep.mubr.bf16.mxu0 0
        %1797 = vmatmul.mubr.bf16.gmra.mrb[0].mxu0 %v1711
        %v1798 = vpop.f32.mrb[0].mxu0
        %v1799 = vadd.f32 %v1667, %v1798
        %v1800 = vpop.f32.mrb[0].mxu0
        %v1801 = vpop.f32.mrb[0].mxu0
        %v1802 = vadd.f32 %v1667, %v1801
        %v1803 = vpop.f32.mrb[0].mxu0
        %1804 = vmatprep.mubr.bf16.mxu0 0
        %1805 = vmatmul.mubr.bf16.gmra.mrb[0].mxu0 %v1714
        %v1806 = vpop.f32.mrb[0].mxu0
        %v1807 = vadd.f32 %v1667, %v1806
        %v1808 = vpop.f32.mrb[0].mxu0
        %v1809 = vpop.f32.mrb[0].mxu0
        %v1810 = vadd.f32 %v1667, %v1809
        %v1811 = vpop.f32.mrb[0].mxu0
        %1812 = vdwg.mxu0
        %v1813 = vadd.f32 %v1629, %v1751
        %v1814 = vadd.f32 %v1630, %v1754
        %v1815 = vadd.f32 %v1631, %v1759
        %v1816 = vadd.f32 %v1632, %v1762
        %v1817 = vadd.f32 %v1633, %v1767
        %v1818 = vadd.f32 %v1634, %v1770
        %v1819 = vadd.f32 %v1635, %v1775
        %v1820 = vadd.f32 %v1636, %v1778
        %v1821 = vadd.f32 %v1637, %v1783
        %v1822 = vadd.f32 %v1638, %v1786
        %v1823 = vadd.f32 %v1639, %v1791
        %v1824 = vadd.f32 %v1640, %v1794
        %v1825 = vadd.f32 %v1641, %v1799
        %v1826 = vadd.f32 %v1642, %v1802
        %v1827 = vadd.f32 %v1643, %v1807
        %v1828 = vadd.f32 %v1644, %v1810
        %v1829 = vsel %vm512, %v1813, 0.0
        %1830 = vadd.xlane.f32.xlu0 %v1829
        %v1831 = vpop.xlane.xlu0 %1830
        %v1832 = vsel %vm512, %v1814, 0.0
        %1833 = vadd.xlane.f32.xlu0 %v1832
        %v1834 = vpop.xlane.xlu0 %1833
        %v1835 = vsel %vm512, %v1815, 0.0
        %1836 = vadd.xlane.f32.xlu0 %v1835
        %v1837 = vpop.xlane.xlu0 %1836
        %v1838 = vsel %vm512, %v1816, 0.0
        %1839 = vadd.xlane.f32.xlu0 %v1838
        %v1840 = vpop.xlane.xlu0 %1839
        %v1841 = vsel %vm512, %v1817, 0.0
        %1842 = vadd.xlane.f32.xlu0 %v1841
        %v1843 = vpop.xlane.xlu0 %1842
        %v1844 = vsel %vm512, %v1818, 0.0
        %1845 = vadd.xlane.f32.xlu0 %v1844
        %v1846 = vpop.xlane.xlu0 %1845
        %v1847 = vsel %vm512, %v1819, 0.0
        %1848 = vadd.xlane.f32.xlu0 %v1847
        %v1849 = vpop.xlane.xlu0 %1848
        %v1850 = vsel %vm512, %v1820, 0.0
        %1851 = vadd.xlane.f32.xlu0 %v1850
        %v1852 = vpop.xlane.xlu0 %1851
        %v1853 = vsel %vm512, %v1821, 0.0
        %1854 = vadd.xlane.f32.xlu0 %v1853
        %v1855 = vpop.xlane.xlu0 %1854
        %v1856 = vsel %vm512, %v1822, 0.0
        %1857 = vadd.xlane.f32.xlu0 %v1856
        %v1858 = vpop.xlane.xlu0 %1857
        %v1859 = vsel %vm512, %v1823, 0.0
        %1860 = vadd.xlane.f32.xlu0 %v1859
        %v1861 = vpop.xlane.xlu0 %1860
        %v1862 = vsel %vm512, %v1824, 0.0
        %1863 = vadd.xlane.f32.xlu0 %v1862
        %v1864 = vpop.xlane.xlu0 %1863
        %v1865 = vsel %vm512, %v1825, 0.0
        %1866 = vadd.xlane.f32.xlu0 %v1865
        %v1867 = vpop.xlane.xlu0 %1866
        %v1868 = vsel %vm512, %v1826, 0.0
        %1869 = vadd.xlane.f32.xlu0 %v1868
        %v1870 = vpop.xlane.xlu0 %1869
        %v1871 = vsel %vm512, %v1827, 0.0
        %1872 = vadd.xlane.f32.xlu0 %v1871
        %v1873 = vpop.xlane.xlu0 %1872
        %v1874 = vsel %vm512, %v1828, 0.0
        %1875 = vadd.xlane.f32.xlu0 %v1874
        %v1876 = vpop.xlane.xlu0 %1875
        %v1877 = vmul.f32 %v1831, %v698
        %v1878 = vmul.f32 %v1834, %v698
        %v1879 = vmul.f32 %v1837, %v698
        %v1880 = vmul.f32 %v1840, %v698
        %v1881 = vmul.f32 %v1843, %v698
        %v1882 = vmul.f32 %v1846, %v698
        %v1883 = vmul.f32 %v1849, %v698
        %v1884 = vmul.f32 %v1852, %v698
        %v1885 = vmul.f32 %v1855, %v698
        %v1886 = vmul.f32 %v1858, %v698
        %v1887 = vmul.f32 %v1861, %v698
        %v1888 = vmul.f32 %v1864, %v698
        %v1889 = vmul.f32 %v1867, %v698
        %v1890 = vmul.f32 %v1870, %v698
        %v1891 = vmul.f32 %v1873, %v698
        %v1892 = vmul.f32 %v1876, %v698
        %v1893 = vsub.f32 %v1813, %v1877
        %v1894 = vsub.f32 %v1814, %v1878
        %v1895 = vsub.f32 %v1815, %v1879
        %v1896 = vsub.f32 %v1816, %v1880
        %v1897 = vsub.f32 %v1817, %v1881
        %v1898 = vsub.f32 %v1818, %v1882
        %v1899 = vsub.f32 %v1819, %v1883
        %v1900 = vsub.f32 %v1820, %v1884
        %v1901 = vsub.f32 %v1821, %v1885
        %v1902 = vsub.f32 %v1822, %v1886
        %v1903 = vsub.f32 %v1823, %v1887
        %v1904 = vsub.f32 %v1824, %v1888
        %v1905 = vsub.f32 %v1825, %v1889
        %v1906 = vsub.f32 %v1826, %v1890
        %v1907 = vsub.f32 %v1827, %v1891
        %v1908 = vsub.f32 %v1828, %v1892
        %v1909 = vmul.f32 %v1893, %v1893
        %v1910 = vmul.f32 %v1894, %v1894
        %v1911 = vmul.f32 %v1895, %v1895
        %v1912 = vmul.f32 %v1896, %v1896
        %v1913 = vmul.f32 %v1897, %v1897
        %v1914 = vmul.f32 %v1898, %v1898
        %v1915 = vmul.f32 %v1899, %v1899
        %v1916 = vmul.f32 %v1900, %v1900
        %v1917 = vmul.f32 %v1901, %v1901
        %v1918 = vmul.f32 %v1902, %v1902
        %v1919 = vmul.f32 %v1903, %v1903
        %v1920 = vmul.f32 %v1904, %v1904
        %v1921 = vmul.f32 %v1905, %v1905
        %v1922 = vmul.f32 %v1906, %v1906
        %v1923 = vmul.f32 %v1907, %v1907
        %v1924 = vmul.f32 %v1908, %v1908
        %v1925 = vsel %vm512, %v1909, 0.0
        %1926 = vadd.xlane.f32.xlu0 %v1925
        %v1927 = vpop.xlane.xlu0 %1926
        %v1928 = vsel %vm512, %v1910, 0.0
        %1929 = vadd.xlane.f32.xlu0 %v1928
        %v1930 = vpop.xlane.xlu0 %1929
        %v1931 = vsel %vm512, %v1911, 0.0
        %1932 = vadd.xlane.f32.xlu0 %v1931
        %v1933 = vpop.xlane.xlu0 %1932
        %v1934 = vsel %vm512, %v1912, 0.0
        %1935 = vadd.xlane.f32.xlu0 %v1934
        %v1936 = vpop.xlane.xlu0 %1935
        %v1937 = vsel %vm512, %v1913, 0.0
        %1938 = vadd.xlane.f32.xlu0 %v1937
        %v1939 = vpop.xlane.xlu0 %1938
        %v1940 = vsel %vm512, %v1914, 0.0
        %1941 = vadd.xlane.f32.xlu0 %v1940
        %v1942 = vpop.xlane.xlu0 %1941
        %v1943 = vsel %vm512, %v1915, 0.0
        %1944 = vadd.xlane.f32.xlu0 %v1943
        %v1945 = vpop.xlane.xlu0 %1944
        %v1946 = vsel %vm512, %v1916, 0.0
        %1947 = vadd.xlane.f32.xlu0 %v1946
        %v1948 = vpop.xlane.xlu0 %1947
        %v1949 = vsel %vm512, %v1917, 0.0
        %1950 = vadd.xlane.f32.xlu0 %v1949
        %v1951 = vpop.xlane.xlu0 %1950
        %v1952 = vsel %vm512, %v1918, 0.0
        %1953 = vadd.xlane.f32.xlu0 %v1952
        %v1954 = vpop.xlane.xlu0 %1953
        %v1955 = vsel %vm512, %v1919, 0.0
        %1956 = vadd.xlane.f32.xlu0 %v1955
        %v1957 = vpop.xlane.xlu0 %1956
        %v1958 = vsel %vm512, %v1920, 0.0
        %1959 = vadd.xlane.f32.xlu0 %v1958
        %v1960 = vpop.xlane.xlu0 %1959
        %v1961 = vsel %vm512, %v1921, 0.0
        %1962 = vadd.xlane.f32.xlu0 %v1961
        %v1963 = vpop.xlane.xlu0 %1962
        %v1964 = vsel %vm512, %v1922, 0.0
        %1965 = vadd.xlane.f32.xlu0 %v1964
        %v1966 = vpop.xlane.xlu0 %1965
        %v1967 = vsel %vm512, %v1923, 0.0
        %1968 = vadd.xlane.f32.xlu0 %v1967
        %v1969 = vpop.xlane.xlu0 %1968
        %v1970 = vsel %vm512, %v1924, 0.0
        %1971 = vadd.xlane.f32.xlu0 %v1970
        %v1972 = vpop.xlane.xlu0 %1971
        %v1973 = vmul.f32 %v1927, %v698
        %v1974 = vmul.f32 %v1930, %v698
        %v1975 = vmul.f32 %v1933, %v698
        %v1976 = vmul.f32 %v1936, %v698
        %v1977 = vmul.f32 %v1939, %v698
        %v1978 = vmul.f32 %v1942, %v698
        %v1979 = vmul.f32 %v1945, %v698
        %v1980 = vmul.f32 %v1948, %v698
        %v1981 = vmul.f32 %v1951, %v698
        %v1982 = vmul.f32 %v1954, %v698
        %v1983 = vmul.f32 %v1957, %v698
        %v1984 = vmul.f32 %v1960, %v698
        %v1985 = vmul.f32 %v1963, %v698
        %v1986 = vmul.f32 %v1966, %v698
        %v1987 = vmul.f32 %v1969, %v698
        %v1988 = vmul.f32 %v1972, %v698
        %v1989 = vadd.f32 %v1973, 1e-05
        %v1990 = vadd.f32 %v1974, 1e-05
        %v1991 = vadd.f32 %v1975, 1e-05
        %v1992 = vadd.f32 %v1976, 1e-05
        %v1993 = vadd.f32 %v1977, 1e-05
        %v1994 = vadd.f32 %v1978, 1e-05
        %v1995 = vadd.f32 %v1979, 1e-05
        %v1996 = vadd.f32 %v1980, 1e-05
        %v1997 = vadd.f32 %v1981, 1e-05
        %v1998 = vadd.f32 %v1982, 1e-05
        %v1999 = vadd.f32 %v1983, 1e-05
        %v2000 = vadd.f32 %v1984, 1e-05
        %v2001 = vadd.f32 %v1985, 1e-05
        %v2002 = vadd.f32 %v1986, 1e-05
        %v2003 = vadd.f32 %v1987, 1e-05
        %v2004 = vadd.f32 %v1988, 1e-05
        %v2005 = vrsqrt.pop %v1989
        %v2006 = vrsqrt.pop %v1990
        %v2007 = vrsqrt.pop %v1991
        %v2008 = vrsqrt.pop %v1992
        %v2009 = vrsqrt.pop %v1993
        %v2010 = vrsqrt.pop %v1994
        %v2011 = vrsqrt.pop %v1995
        %v2012 = vrsqrt.pop %v1996
        %v2013 = vrsqrt.pop %v1997
        %v2014 = vrsqrt.pop %v1998
        %v2015 = vrsqrt.pop %v1999
        %v2016 = vrsqrt.pop %v2000
        %v2017 = vrsqrt.pop %v2001
        %v2018 = vrsqrt.pop %v2002
        %v2019 = vrsqrt.pop %v2003
        %v2020 = vrsqrt.pop %v2004
        %v2021 = vmul.f32 %v1893, %v2005
        %v2022 = vmul.f32 %v1894, %v2006
        %v2023 = vmul.f32 %v1895, %v2007
        %v2024 = vmul.f32 %v1896, %v2008
        %v2025 = vmul.f32 %v1897, %v2009
        %v2026 = vmul.f32 %v1898, %v2010
        %v2027 = vmul.f32 %v1899, %v2011
        %v2028 = vmul.f32 %v1900, %v2012
        %v2029 = vmul.f32 %v1901, %v2013
        %v2030 = vmul.f32 %v1902, %v2014
        %v2031 = vmul.f32 %v1903, %v2015
        %v2032 = vmul.f32 %v1904, %v2016
        %v2033 = vmul.f32 %v1905, %v2017
        %v2034 = vmul.f32 %v1906, %v2018
        %v2035 = vmul.f32 %v1907, %v2019
        %v2036 = vmul.f32 %v1908, %v2020
        %v2037 = vlaneseq
        %v2038 = vshrl.u32 %v2037, 7
        %v2039 = vsub.s32 1, %v2038
        %v2040 = vrot.slane %v1646, %v2039
        %v2041 = vmul.f32 %v2021, %v2040
        %v2042 = vmul.f32 %v2022, %v2040
        %v2043 = vmul.f32 %v2023, %v2040
        %v2044 = vmul.f32 %v2024, %v2040
        %v2045 = vmul.f32 %v2025, %v2040
        %v2046 = vmul.f32 %v2026, %v2040
        %v2047 = vmul.f32 %v2027, %v2040
        %v2048 = vmul.f32 %v2028, %v2040
        %v2049 = vmul.f32 %v2029, %v2040
        %v2050 = vmul.f32 %v2030, %v2040
        %v2051 = vmul.f32 %v2031, %v2040
        %v2052 = vmul.f32 %v2032, %v2040
        %v2053 = vmul.f32 %v2033, %v2040
        %v2054 = vmul.f32 %v2034, %v2040
        %v2055 = vmul.f32 %v2035, %v2040
        %v2056 = vmul.f32 %v2036, %v2040
        %v2057 = vlaneseq
        %v2058 = vshrl.u32 %v2057, 7
        %v2059 = vsub.s32 2, %v2058
        %v2060 = vrot.slane %v1646, %v2059
        %v2061 = vadd.f32 %v2041, %v2060
        %v2062 = vadd.f32 %v2042, %v2060
        %v2063 = vadd.f32 %v2043, %v2060
        %v2064 = vadd.f32 %v2044, %v2060
        %v2065 = vadd.f32 %v2045, %v2060
        %v2066 = vadd.f32 %v2046, %v2060
        %v2067 = vadd.f32 %v2047, %v2060
        %v2068 = vadd.f32 %v2048, %v2060
        %v2069 = vadd.f32 %v2049, %v2060
        %v2070 = vadd.f32 %v2050, %v2060
        %v2071 = vadd.f32 %v2051, %v2060
        %v2072 = vadd.f32 %v2052, %v2060
        %v2073 = vadd.f32 %v2053, %v2060
        %v2074 = vadd.f32 %v2054, %v2060
        %v2075 = vadd.f32 %v2055, %v2060
        %v2076 = vadd.f32 %v2056, %v2060
        %v2077 = vpack.c.bf16 %v2062, %v2061
        %v2078 = vpack.c.bf16 %v2064, %v2063
        %v2079 = vpack.c.bf16 %v2066, %v2065
        %v2080 = vpack.c.bf16 %v2068, %v2067
        %v2081 = vpack.c.bf16 %v2070, %v2069
        %v2082 = vpack.c.bf16 %v2072, %v2071
        %v2083 = vpack.c.bf16 %v2074, %v2073
        %v2084 = vpack.c.bf16 %v2076, %v2075
        %s2085 = scalar_lea.vmem %s3, 64
        %v2086 = vld [vmem:[%s2085] sm:$0xff]
        %v2087 = vld [vmem:[%s2085 + $0x8] sm:$0xff]
        %v2088 = vld [vmem:[%s2085 + $0x10] sm:$0xff]
        %v2089 = vld [vmem:[%s2085 + $0x18] sm:$0xff]
        %v2090 = vld [vmem:[%s2085 + $0x20] sm:$0xff]
        %v2091 = vld [vmem:[%s2085 + $0x28] sm:$0xff]
        %v2092 = vld [vmem:[%s2085 + $0x30] sm:$0xff]
        %v2093 = vld [vmem:[%s2085 + $0x38] sm:$0xff]
        %s2094 = scalar_lea.vmem %s6, 2
        %v2095 = vld [vmem:[%s2094] sm:$0x3]
        %v2097 = vlaneseq
        %v2098 = vshrl.u32 %v2097, 7
        %v2099 = vsub.s32 0, %v2098
        %v2100 = vrot.slane %v2095, %v2099
        %v2101 = vlaneseq
        %v2102 = vshrl.u32 %v2101, 7
        %v2103 = vsub.s32 1, %v2102
        %v2104 = vrot.slane %v2095, %v2103
        %v2115 = vunpack.c.l.b16 %v2086
        %v2116 = vunpack.c.h.b16 %v2086
        %v2117 = vunpack.c.l.b16 %v2087
        %v2118 = vunpack.c.h.b16 %v2087
        %v2119 = vunpack.c.l.b16 %v2088
        %v2120 = vunpack.c.h.b16 %v2088
        %v2121 = vunpack.c.l.b16 %v2089
        %v2122 = vunpack.c.h.b16 %v2089
        %v2123 = vunpack.c.l.b16 %v2090
        %v2124 = vunpack.c.h.b16 %v2090
        %v2125 = vunpack.c.l.b16 %v2091
        %v2126 = vunpack.c.h.b16 %v2091
        %v2127 = vunpack.c.l.b16 %v2092
        %v2128 = vunpack.c.h.b16 %v2092
        %v2129 = vunpack.c.l.b16 %v2093
        %v2130 = vunpack.c.h.b16 %v2093
        %v2131 = vpack.c.b16 %v2117, %v2115
        %v2132 = vpack.c.b16 %v2118, %v2116
        %v2133 = vpack.c.b16 %v2121, %v2119
        %v2134 = vpack.c.b16 %v2122, %v2120
        %v2135 = vpack.c.b16 %v2125, %v2123
        %v2136 = vpack.c.b16 %v2126, %v2124
        %v2137 = vpack.c.b16 %v2129, %v2127
        %v2138 = vpack.c.b16 %v2130, %v2128
        %v2148 = vsel %vm512, %v2077, 0
        %v2151 = vsel %vm512, %v2078, 0
        %v2154 = vsel %vm512, %v2079, 0
        %v2157 = vsel %vm512, %v2080, 0
        %v2160 = vsel %vm512, %v2081, 0
        %v2163 = vsel %vm512, %v2082, 0
        %v2166 = vsel %vm512, %v2083, 0
        %v2169 = vsel %vm512, %v2084, 0
        %2171 = vmatprep.subr.bf16.mxu0 %v2132
        %2172 = vmatpush1.bf16.msra.mxu0 %v2131
        %2173 = vmatprep.subr.bf16.mxu0 %v2134
        %2174 = vmatpush1.bf16.msra.mxu0 %v2133
        %2175 = vmatprep.subr.bf16.mxu0 %v2136
        %2176 = vmatpush1.bf16.msra.mxu0 %v2135
        %2177 = vmatprep.subr.bf16.mxu0 %v2138
        %2178 = vmatpush1.bf16.msra.mxu0 %v2137
        %2179 = vmatprep.subr.bf16.mxu0 0
        %2180 = vmatpush1.bf16.msra.mxu0 0
        %2181 = vmatprep.subr.bf16.mxu0 0
        %2182 = vmatpush1.bf16.msra.mxu0 0
        %2183 = vmatprep.subr.bf16.mxu0 0
        %2184 = vmatpush1.bf16.msra.mxu0 0
        %2185 = vmatprep.subr.bf16.mxu0 0
        %2186 = vmatpush1.bf16.msra.mxu0 0
        %2187 = vmatprep.subr.bf16.mxu0 0
        %2188 = vmatpush1.bf16.msra.mxu0 0
        %2189 = vmatprep.subr.bf16.mxu0 0
        %2190 = vmatpush1.bf16.msra.mxu0 0
        %2191 = vmatprep.subr.bf16.mxu0 0
        %2192 = vmatpush1.bf16.msra.mxu0 0
        %2193 = vmatprep.subr.bf16.mxu0 0
        %2194 = vmatpush1.bf16.msra.mxu0 0
        %2195 = vmatprep.subr.bf16.mxu0 0
        %2196 = vmatpush1.bf16.msra.mxu0 0
        %2197 = vmatprep.subr.bf16.mxu0 0
        %2198 = vmatpush1.bf16.msra.mxu0 0
        %2199 = vmatprep.subr.bf16.mxu0 0
        %2200 = vmatpush1.bf16.msra.mxu0 0
        %2201 = vmatprep.subr.bf16.mxu0 0
        %2202 = vmatpush1.bf16.msra.mxu0 0
        %2203 = vmatprep.mubr.bf16.mxu0 0
        %2204 = vmatmul.mubr.bf16.gmra.mrb[0].mxu0 %v2148
        %v2205 = vpop.f32.mrb[0].mxu0
        %v2206 = vadd.f32 %v2100, %v2205
        %v2207 = vpop.f32.mrb[0].mxu0
        %v2208 = vadd.f32 %v2104, %v2207
        %v2209 = vpop.f32.mrb[0].mxu0
        %v2210 = vadd.f32 %v2100, %v2209
        %v2211 = vpop.f32.mrb[0].mxu0
        %v2212 = vadd.f32 %v2104, %v2211
        %2213 = vmatprep.mubr.bf16.mxu0 0
        %2214 = vmatmul.mubr.bf16.gmra.mrb[0].mxu0 %v2151
        %v2215 = vpop.f32.mrb[0].mxu0
        %v2216 = vadd.f32 %v2100, %v2215
        %v2217 = vpop.f32.mrb[0].mxu0
        %v2218 = vadd.f32 %v2104, %v2217
        %v2219 = vpop.f32.mrb[0].mxu0
        %v2220 = vadd.f32 %v2100, %v2219
        %v2221 = vpop.f32.mrb[0].mxu0
        %v2222 = vadd.f32 %v2104, %v2221
        %2223 = vmatprep.mubr.bf16.mxu0 0
        %2224 = vmatmul.mubr.bf16.gmra.mrb[0].mxu0 %v2154
        %v2225 = vpop.f32.mrb[0].mxu0
        %v2226 = vadd.f32 %v2100, %v2225
        %v2227 = vpop.f32.mrb[0].mxu0
        %v2228 = vadd.f32 %v2104, %v2227
        %v2229 = vpop.f32.mrb[0].mxu0
        %v2230 = vadd.f32 %v2100, %v2229
        %v2231 = vpop.f32.mrb[0].mxu0
        %v2232 = vadd.f32 %v2104, %v2231
        %2233 = vmatprep.mubr.bf16.mxu0 0
        %2234 = vmatmul.mubr.bf16.gmra.mrb[0].mxu0 %v2157
        %v2235 = vpop.f32.mrb[0].mxu0
        %v2236 = vadd.f32 %v2100, %v2235
        %v2237 = vpop.f32.mrb[0].mxu0
        %v2238 = vadd.f32 %v2104, %v2237
        %v2239 = vpop.f32.mrb[0].mxu0
        %v2240 = vadd.f32 %v2100, %v2239
        %v2241 = vpop.f32.mrb[0].mxu0
        %v2242 = vadd.f32 %v2104, %v2241
        %2243 = vmatprep.mubr.bf16.mxu0 0
        %2244 = vmatmul.mubr.bf16.gmra.mrb[0].mxu0 %v2160
        %v2245 = vpop.f32.mrb[0].mxu0
        %v2246 = vadd.f32 %v2100, %v2245
        %v2247 = vpop.f32.mrb[0].mxu0
        %v2248 = vadd.f32 %v2104, %v2247
        %v2249 = vpop.f32.mrb[0].mxu0
        %v2250 = vadd.f32 %v2100, %v2249
        %v2251 = vpop.f32.mrb[0].mxu0
        %v2252 = vadd.f32 %v2104, %v2251
        %2253 = vmatprep.mubr.bf16.mxu0 0
        %2254 = vmatmul.mubr.bf16.gmra.mrb[0].mxu0 %v2163
        %v2255 = vpop.f32.mrb[0].mxu0
        %v2256 = vadd.f32 %v2100, %v2255
        %v2257 = vpop.f32.mrb[0].mxu0
        %v2258 = vadd.f32 %v2104, %v2257
        %v2259 = vpop.f32.mrb[0].mxu0
        %v2260 = vadd.f32 %v2100, %v2259
        %v2261 = vpop.f32.mrb[0].mxu0
        %v2262 = vadd.f32 %v2104, %v2261
        %2263 = vmatprep.mubr.bf16.mxu0 0
        %2264 = vmatmul.mubr.bf16.gmra.mrb[0].mxu0 %v2166
        %v2265 = vpop.f32.mrb[0].mxu0
        %v2266 = vadd.f32 %v2100, %v2265
        %v2267 = vpop.f32.mrb[0].mxu0
        %v2268 = vadd.f32 %v2104, %v2267
        %v2269 = vpop.f32.mrb[0].mxu0
        %v2270 = vadd.f32 %v2100, %v2269
        %v2271 = vpop.f32.mrb[0].mxu0
        %v2272 = vadd.f32 %v2104, %v2271
        %2273 = vmatprep.mubr.bf16.mxu0 0
        %2274 = vmatmul.mubr.bf16.gmra.mrb[0].mxu0 %v2169
        %v2275 = vpop.f32.mrb[0].mxu0
        %v2276 = vadd.f32 %v2100, %v2275
        %v2277 = vpop.f32.mrb[0].mxu0
        %v2278 = vadd.f32 %v2104, %v2277
        %v2279 = vpop.f32.mrb[0].mxu0
        %v2280 = vadd.f32 %v2100, %v2279
        %v2281 = vpop.f32.mrb[0].mxu0
        %v2282 = vadd.f32 %v2104, %v2281
        %2283 = vdwg.mxu0
        %v2284 = vmax.f32 %v2206, 0.0
        %v2285 = vmax.f32 %v2208, 0.0
        %v2286 = vmax.f32 %v2210, 0.0
        %v2287 = vmax.f32 %v2212, 0.0
        %v2288 = vmax.f32 %v2216, 0.0
        %v2289 = vmax.f32 %v2218, 0.0
        %v2290 = vmax.f32 %v2220, 0.0
        %v2291 = vmax.f32 %v2222, 0.0
        %v2292 = vmax.f32 %v2226, 0.0
        %v2293 = vmax.f32 %v2228, 0.0
        %v2294 = vmax.f32 %v2230, 0.0
        %v2295 = vmax.f32 %v2232, 0.0
        %v2296 = vmax.f32 %v2236, 0.0
        %v2297 = vmax.f32 %v2238, 0.0
        %v2298 = vmax.f32 %v2240, 0.0
        %v2299 = vmax.f32 %v2242, 0.0
        %v2300 = vmax.f32 %v2246, 0.0
        %v2301 = vmax.f32 %v2248, 0.0
        %v2302 = vmax.f32 %v2250, 0.0
        %v2303 = vmax.f32 %v2252, 0.0
        %v2304 = vmax.f32 %v2256, 0.0
        %v2305 = vmax.f32 %v2258, 0.0
        %v2306 = vmax.f32 %v2260, 0.0
        %v2307 = vmax.f32 %v2262, 0.0
        %v2308 = vmax.f32 %v2266, 0.0
        %v2309 = vmax.f32 %v2268, 0.0
        %v2310 = vmax.f32 %v2270, 0.0
        %v2311 = vmax.f32 %v2272, 0.0
        %v2312 = vmax.f32 %v2276, 0.0
        %v2313 = vmax.f32 %v2278, 0.0
        %v2314 = vmax.f32 %v2280, 0.0
        %v2315 = vmax.f32 %v2282, 0.0
        %v2316 = vpack.c.bf16 %v2286, %v2284
        %v2317 = vpack.c.bf16 %v2287, %v2285
        %v2318 = vpack.c.bf16 %v2290, %v2288
        %v2319 = vpack.c.bf16 %v2291, %v2289
        %v2320 = vpack.c.bf16 %v2294, %v2292
        %v2321 = vpack.c.bf16 %v2295, %v2293
        %v2322 = vpack.c.bf16 %v2298, %v2296
        %v2323 = vpack.c.bf16 %v2299, %v2297
        %v2324 = vpack.c.bf16 %v2302, %v2300
        %v2325 = vpack.c.bf16 %v2303, %v2301
        %v2326 = vpack.c.bf16 %v2306, %v2304
        %v2327 = vpack.c.bf16 %v2307, %v2305
        %v2328 = vpack.c.bf16 %v2310, %v2308
        %v2329 = vpack.c.bf16 %v2311, %v2309
        %v2330 = vpack.c.bf16 %v2314, %v2312
        %v2331 = vpack.c.bf16 %v2315, %v2313
        %s2332 = scalar_lea.vmem %s4, 128
        %v2333 = vld [vmem:[%s2332] sm:$0xf]
        %v2334 = vld [vmem:[%s2332 + $0x4] sm:$0xf]
        %v2335 = vld [vmem:[%s2332 + $0x8] sm:$0xf]
        %v2336 = vld [vmem:[%s2332 + $0xc] sm:$0xf]
        %v2337 = vld [vmem:[%s2332 + $0x10] sm:$0xf]
        %v2338 = vld [vmem:[%s2332 + $0x14] sm:$0xf]
        %v2339 = vld [vmem:[%s2332 + $0x18] sm:$0xf]
        %v2340 = vld [vmem:[%s2332 + $0x1c] sm:$0xf]
        %v2341 = vld [vmem:[%s2332 + $0x20] sm:$0xf]
        %v2342 = vld [vmem:[%s2332 + $0x24] sm:$0xf]
        %v2343 = vld [vmem:[%s2332 + $0x28] sm:$0xf]
        %v2344 = vld [vmem:[%s2332 + $0x2c] sm:$0xf]
        %v2345 = vld [vmem:[%s2332 + $0x30] sm:$0xf]
        %v2346 = vld [vmem:[%s2332 + $0x34] sm:$0xf]
        %v2347 = vld [vmem:[%s2332 + $0x38] sm:$0xf]
        %v2348 = vld [vmem:[%s2332 + $0x3c] sm:$0xf]
        %v2349 = vld [vmem:[%s2332 + $0x40] sm:$0xf]
        %v2350 = vld [vmem:[%s2332 + $0x44] sm:$0xf]
        %v2351 = vld [vmem:[%s2332 + $0x48] sm:$0xf]
        %v2352 = vld [vmem:[%s2332 + $0x4c] sm:$0xf]
        %v2353 = vld [vmem:[%s2332 + $0x50] sm:$0xf]
        %v2354 = vld [vmem:[%s2332 + $0x54] sm:$0xf]
        %v2355 = vld [vmem:[%s2332 + $0x58] sm:$0xf]
        %v2356 = vld [vmem:[%s2332 + $0x5c] sm:$0xf]
        %v2357 = vld [vmem:[%s2332 + $0x60] sm:$0xf]
        %v2358 = vld [vmem:[%s2332 + $0x64] sm:$0xf]
        %v2359 = vld [vmem:[%s2332 + $0x68] sm:$0xf]
        %v2360 = vld [vmem:[%s2332 + $0x6c] sm:$0xf]
        %v2361 = vld [vmem:[%s2332 + $0x70] sm:$0xf]
        %v2362 = vld [vmem:[%s2332 + $0x74] sm:$0xf]
        %v2363 = vld [vmem:[%s2332 + $0x78] sm:$0xf]
        %v2364 = vld [vmem:[%s2332 + $0x7c] sm:$0xf]
        %v2365 = vlaneseq
        %v2366 = vshrl.u32 %v2365, 7
        %v2367 = vsub.s32 3, %v2366
        %v2368 = vrot.slane %v1646, %v2367
        %v2401 = vunpack.c.l.b16 %v2333
        %v2402 = vunpack.c.l.b16 %v2334
        %v2403 = vunpack.c.l.b16 %v2335
        %v2404 = vunpack.c.l.b16 %v2336
        %v2405 = vunpack.c.l.b16 %v2337
        %v2406 = vunpack.c.l.b16 %v2338
        %v2407 = vunpack.c.l.b16 %v2339
        %v2408 = vunpack.c.l.b16 %v2340
        %v2409 = vunpack.c.l.b16 %v2341
        %v2410 = vunpack.c.l.b16 %v2342
        %v2411 = vunpack.c.l.b16 %v2343
        %v2412 = vunpack.c.l.b16 %v2344
        %v2413 = vunpack.c.l.b16 %v2345
        %v2414 = vunpack.c.l.b16 %v2346
        %v2415 = vunpack.c.l.b16 %v2347
        %v2416 = vunpack.c.l.b16 %v2348
        %v2417 = vunpack.c.l.b16 %v2349
        %v2418 = vunpack.c.l.b16 %v2350
        %v2419 = vunpack.c.l.b16 %v2351
        %v2420 = vunpack.c.l.b16 %v2352
        %v2421 = vunpack.c.l.b16 %v2353
        %v2422 = vunpack.c.l.b16 %v2354
        %v2423 = vunpack.c.l.b16 %v2355
        %v2424 = vunpack.c.l.b16 %v2356
        %v2425 = vunpack.c.l.b16 %v2357
        %v2426 = vunpack.c.l.b16 %v2358
        %v2427 = vunpack.c.l.b16 %v2359
        %v2428 = vunpack.c.l.b16 %v2360
        %v2429 = vunpack.c.l.b16 %v2361
        %v2430 = vunpack.c.l.b16 %v2362
        %v2431 = vunpack.c.l.b16 %v2363
        %v2432 = vunpack.c.l.b16 %v2364
        %v2433 = vpack.c.b16 %v2402, %v2401
        %v2434 = vpack.c.b16 %v2404, %v2403
        %v2435 = vpack.c.b16 %v2406, %v2405
        %v2436 = vpack.c.b16 %v2408, %v2407
        %v2437 = vpack.c.b16 %v2410, %v2409
        %v2438 = vpack.c.b16 %v2412, %v2411
        %v2439 = vpack.c.b16 %v2414, %v2413
        %v2440 = vpack.c.b16 %v2416, %v2415
        %v2441 = vpack.c.b16 %v2418, %v2417
        %v2442 = vpack.c.b16 %v2420, %v2419
        %v2443 = vpack.c.b16 %v2422, %v2421
        %v2444 = vpack.c.b16 %v2424, %v2423
        %v2445 = vpack.c.b16 %v2426, %v2425
        %v2446 = vpack.c.b16 %v2428, %v2427
        %v2447 = vpack.c.b16 %v2430, %v2429
        %v2448 = vpack.c.b16 %v2432, %v2431
        %2465 = vmatprep.subr.bf16.mxu0 0
        %2466 = vmatpush1.bf16.msra.mxu0 %v2433
        %2467 = vmatprep.subr.bf16.mxu0 0
        %2468 = vmatpush1.bf16.msra.mxu0 %v2434
        %2469 = vmatprep.subr.bf16.mxu0 0
        %2470 = vmatpush1.bf16.msra.mxu0 %v2435
        %2471 = vmatprep.subr.bf16.mxu0 0
        %2472 = vmatpush1.bf16.msra.mxu0 %v2436
        %2473 = vmatprep.subr.bf16.mxu0 0
        %2474 = vmatpush1.bf16.msra.mxu0 %v2437
        %2475 = vmatprep.subr.bf16.mxu0 0
        %2476 = vmatpush1.bf16.msra.mxu0 %v2438
        %2477 = vmatprep.subr.bf16.mxu0 0
        %2478 = vmatpush1.bf16.msra.mxu0 %v2439
        %2479 = vmatprep.subr.bf16.mxu0 0
        %2480 = vmatpush1.bf16.msra.mxu0 %v2440
        %2481 = vmatprep.subr.bf16.mxu0 0
        %2482 = vmatpush1.bf16.msra.mxu0 %v2441
        %2483 = vmatprep.subr.bf16.mxu0 0
        %2484 = vmatpush1.bf16.msra.mxu0 %v2442
        %2485 = vmatprep.subr.bf16.mxu0 0
        %2486 = vmatpush1.bf16.msra.mxu0 %v2443
        %2487 = vmatprep.subr.bf16.mxu0 0
        %2488 = vmatpush1.bf16.msra.mxu0 %v2444
        %2489 = vmatprep.subr.bf16.mxu0 0
        %2490 = vmatpush1.bf16.msra.mxu0 %v2445
        %2491 = vmatprep.subr.bf16.mxu0 0
        %2492 = vmatpush1.bf16.msra.mxu0 %v2446
        %2493 = vmatprep.subr.bf16.mxu0 0
        %2494 = vmatpush1.bf16.msra.mxu0 %v2447
        %2495 = vmatprep.subr.bf16.mxu0 0
        %2496 = vmatpush1.bf16.msra.mxu0 %v2448
        %2497 = vmatprep.mubr.bf16.mxu0 %v2317
        %2498 = vmatmul.mubr.bf16.gmra.mrb[0].mxu0 %v2316
        %v2499 = vpop.f32.mrb[0].mxu0
        %v2500 = vadd.f32 %v2368, %v2499
        %v2501 = vpop.f32.mrb[0].mxu0
        %v2502 = vpop.f32.mrb[0].mxu0
        %v2503 = vadd.f32 %v2368, %v2502
        %v2504 = vpop.f32.mrb[0].mxu0
        %2505 = vmatprep.mubr.bf16.mxu0 %v2319
        %2506 = vmatmul.mubr.bf16.gmra.mrb[0].mxu0 %v2318
        %v2507 = vpop.f32.mrb[0].mxu0
        %v2508 = vadd.f32 %v2368, %v2507
        %v2509 = vpop.f32.mrb[0].mxu0
        %v2510 = vpop.f32.mrb[0].mxu0
        %v2511 = vadd.f32 %v2368, %v2510
        %v2512 = vpop.f32.mrb[0].mxu0
        %2513 = vmatprep.mubr.bf16.mxu0 %v2321
        %2514 = vmatmul.mubr.bf16.gmra.mrb[0].mxu0 %v2320
        %v2515 = vpop.f32.mrb[0].mxu0
        %v2516 = vadd.f32 %v2368, %v2515
        %v2517 = vpop.f32.mrb[0].mxu0
        %v2518 = vpop.f32.mrb[0].mxu0
        %v2519 = vadd.f32 %v2368, %v2518
        %v2520 = vpop.f32.mrb[0].mxu0
        %2521 = vmatprep.mubr.bf16.mxu0 %v2323
        %2522 = vmatmul.mubr.bf16.gmra.mrb[0].mxu0 %v2322
        %v2523 = vpop.f32.mrb[0].mxu0
        %v2524 = vadd.f32 %v2368, %v2523
        %v2525 = vpop.f32.mrb[0].mxu0
        %v2526 = vpop.f32.mrb[0].mxu0
        %v2527 = vadd.f32 %v2368, %v2526
        %v2528 = vpop.f32.mrb[0].mxu0
        %2529 = vmatprep.mubr.bf16.mxu0 %v2325
        %2530 = vmatmul.mubr.bf16.gmra.mrb[0].mxu0 %v2324
        %v2531 = vpop.f32.mrb[0].mxu0
        %v2532 = vadd.f32 %v2368, %v2531
        %v2533 = vpop.f32.mrb[0].mxu0
        %v2534 = vpop.f32.mrb[0].mxu0
        %v2535 = vadd.f32 %v2368, %v2534
        %v2536 = vpop.f32.mrb[0].mxu0
        %2537 = vmatprep.mubr.bf16.mxu0 %v2327
        %2538 = vmatmul.mubr.bf16.gmra.mrb[0].mxu0 %v2326
        %v2539 = vpop.f32.mrb[0].mxu0
        %v2540 = vadd.f32 %v2368, %v2539
        %v2541 = vpop.f32.mrb[0].mxu0
        %v2542 = vpop.f32.mrb[0].mxu0
        %v2543 = vadd.f32 %v2368, %v2542
        %v2544 = vpop.f32.mrb[0].mxu0
        %2545 = vmatprep.mubr.bf16.mxu0 %v2329
        %2546 = vmatmul.mubr.bf16.gmra.mrb[0].mxu0 %v2328
        %v2547 = vpop.f32.mrb[0].mxu0
        %v2548 = vadd.f32 %v2368, %v2547
        %v2549 = vpop.f32.mrb[0].mxu0
        %v2550 = vpop.f32.mrb[0].mxu0
        %v2551 = vadd.f32 %v2368, %v2550
        %v2552 = vpop.f32.mrb[0].mxu0
        %2553 = vmatprep.mubr.bf16.mxu0 %v2331
        %2554 = vmatmul.mubr.bf16.gmra.mrb[0].mxu0 %v2330
        %v2555 = vpop.f32.mrb[0].mxu0
        %v2556 = vadd.f32 %v2368, %v2555
        %v2557 = vpop.f32.mrb[0].mxu0
        %v2558 = vpop.f32.mrb[0].mxu0
        %v2559 = vadd.f32 %v2368, %v2558
        %v2560 = vpop.f32.mrb[0].mxu0
        %2561 = vdwg.mxu0
        %v2562 = vadd.f32 %v2061, %v2500
        %v2563 = vadd.f32 %v2062, %v2503
        %v2564 = vadd.f32 %v2063, %v2508
        %v2565 = vadd.f32 %v2064, %v2511
        %v2566 = vadd.f32 %v2065, %v2516
        %v2567 = vadd.f32 %v2066, %v2519
        %v2568 = vadd.f32 %v2067, %v2524
        %v2569 = vadd.f32 %v2068, %v2527
        %v2570 = vadd.f32 %v2069, %v2532
        %v2571 = vadd.f32 %v2070, %v2535
        %v2572 = vadd.f32 %v2071, %v2540
        %v2573 = vadd.f32 %v2072, %v2543
        %v2574 = vadd.f32 %v2073, %v2548
        %v2575 = vadd.f32 %v2074, %v2551
        %v2576 = vadd.f32 %v2075, %v2556
        %v2577 = vadd.f32 %v2076, %v2559
        %v2578 = vsel %vm512, %v2562, 0.0
        %2579 = vadd.xlane.f32.xlu0 %v2578
        %v2580 = vpop.xlane.xlu0 %2579
        %v2581 = vsel %vm512, %v2563, 0.0
        %2582 = vadd.xlane.f32.xlu0 %v2581
        %v2583 = vpop.xlane.xlu0 %2582
        %v2584 = vsel %vm512, %v2564, 0.0
        %2585 = vadd.xlane.f32.xlu0 %v2584
        %v2586 = vpop.xlane.xlu0 %2585
        %v2587 = vsel %vm512, %v2565, 0.0
        %2588 = vadd.xlane.f32.xlu0 %v2587
        %v2589 = vpop.xlane.xlu0 %2588
        %v2590 = vsel %vm512, %v2566, 0.0
        %2591 = vadd.xlane.f32.xlu0 %v2590
        %v2592 = vpop.xlane.xlu0 %2591
        %v2593 = vsel %vm512, %v2567, 0.0
        %2594 = vadd.xlane.f32.xlu0 %v2593
        %v2595 = vpop.xlane.xlu0 %2594
        %v2596 = vsel %vm512, %v2568, 0.0
        %2597 = vadd.xlane.f32.xlu0 %v2596
        %v2598 = vpop.xlane.xlu0 %2597
        %v2599 = vsel %vm512, %v2569, 0.0
        %2600 = vadd.xlane.f32.xlu0 %v2599
        %v2601 = vpop.xlane.xlu0 %2600
        %v2602 = vsel %vm512, %v2570, 0.0
        %2603 = vadd.xlane.f32.xlu0 %v2602
        %v2604 = vpop.xlane.xlu0 %2603
        %v2605 = vsel %vm512, %v2571, 0.0
        %2606 = vadd.xlane.f32.xlu0 %v2605
        %v2607 = vpop.xlane.xlu0 %2606
        %v2608 = vsel %vm512, %v2572, 0.0
        %2609 = vadd.xlane.f32.xlu0 %v2608
        %v2610 = vpop.xlane.xlu0 %2609
        %v2611 = vsel %vm512, %v2573, 0.0
        %2612 = vadd.xlane.f32.xlu0 %v2611
        %v2613 = vpop.xlane.xlu0 %2612
        %v2614 = vsel %vm512, %v2574, 0.0
        %2615 = vadd.xlane.f32.xlu0 %v2614
        %v2616 = vpop.xlane.xlu0 %2615
        %v2617 = vsel %vm512, %v2575, 0.0
        %2618 = vadd.xlane.f32.xlu0 %v2617
        %v2619 = vpop.xlane.xlu0 %2618
        %v2620 = vsel %vm512, %v2576, 0.0
        %2621 = vadd.xlane.f32.xlu0 %v2620
        %v2622 = vpop.xlane.xlu0 %2621
        %v2623 = vsel %vm512, %v2577, 0.0
        %2624 = vadd.xlane.f32.xlu0 %v2623
        %v2625 = vpop.xlane.xlu0 %2624
        %v2626 = vmul.f32 %v2580, %v698
        %v2627 = vmul.f32 %v2583, %v698
        %v2628 = vmul.f32 %v2586, %v698
        %v2629 = vmul.f32 %v2589, %v698
        %v2630 = vmul.f32 %v2592, %v698
        %v2631 = vmul.f32 %v2595, %v698
        %v2632 = vmul.f32 %v2598, %v698
        %v2633 = vmul.f32 %v2601, %v698
        %v2634 = vmul.f32 %v2604, %v698
        %v2635 = vmul.f32 %v2607, %v698
        %v2636 = vmul.f32 %v2610, %v698
        %v2637 = vmul.f32 %v2613, %v698
        %v2638 = vmul.f32 %v2616, %v698
        %v2639 = vmul.f32 %v2619, %v698
        %v2640 = vmul.f32 %v2622, %v698
        %v2641 = vmul.f32 %v2625, %v698
        %v2642 = vsub.f32 %v2562, %v2626
        %v2643 = vsub.f32 %v2563, %v2627
        %v2644 = vsub.f32 %v2564, %v2628
        %v2645 = vsub.f32 %v2565, %v2629
        %v2646 = vsub.f32 %v2566, %v2630
        %v2647 = vsub.f32 %v2567, %v2631
        %v2648 = vsub.f32 %v2568, %v2632
        %v2649 = vsub.f32 %v2569, %v2633
        %v2650 = vsub.f32 %v2570, %v2634
        %v2651 = vsub.f32 %v2571, %v2635
        %v2652 = vsub.f32 %v2572, %v2636
        %v2653 = vsub.f32 %v2573, %v2637
        %v2654 = vsub.f32 %v2574, %v2638
        %v2655 = vsub.f32 %v2575, %v2639
        %v2656 = vsub.f32 %v2576, %v2640
        %v2657 = vsub.f32 %v2577, %v2641
        %v2658 = vmul.f32 %v2642, %v2642
        %v2659 = vmul.f32 %v2643, %v2643
        %v2660 = vmul.f32 %v2644, %v2644
        %v2661 = vmul.f32 %v2645, %v2645
        %v2662 = vmul.f32 %v2646, %v2646
        %v2663 = vmul.f32 %v2647, %v2647
        %v2664 = vmul.f32 %v2648, %v2648
        %v2665 = vmul.f32 %v2649, %v2649
        %v2666 = vmul.f32 %v2650, %v2650
        %v2667 = vmul.f32 %v2651, %v2651
        %v2668 = vmul.f32 %v2652, %v2652
        %v2669 = vmul.f32 %v2653, %v2653
        %v2670 = vmul.f32 %v2654, %v2654
        %v2671 = vmul.f32 %v2655, %v2655
        %v2672 = vmul.f32 %v2656, %v2656
        %v2673 = vmul.f32 %v2657, %v2657
        %v2674 = vsel %vm512, %v2658, 0.0
        %2675 = vadd.xlane.f32.xlu0 %v2674
        %v2676 = vpop.xlane.xlu0 %2675
        %v2677 = vsel %vm512, %v2659, 0.0
        %2678 = vadd.xlane.f32.xlu0 %v2677
        %v2679 = vpop.xlane.xlu0 %2678
        %v2680 = vsel %vm512, %v2660, 0.0
        %2681 = vadd.xlane.f32.xlu0 %v2680
        %v2682 = vpop.xlane.xlu0 %2681
        %v2683 = vsel %vm512, %v2661, 0.0
        %2684 = vadd.xlane.f32.xlu0 %v2683
        %v2685 = vpop.xlane.xlu0 %2684
        %v2686 = vsel %vm512, %v2662, 0.0
        %2687 = vadd.xlane.f32.xlu0 %v2686
        %v2688 = vpop.xlane.xlu0 %2687
        %v2689 = vsel %vm512, %v2663, 0.0
        %2690 = vadd.xlane.f32.xlu0 %v2689
        %v2691 = vpop.xlane.xlu0 %2690
        %v2692 = vsel %vm512, %v2664, 0.0
        %2693 = vadd.xlane.f32.xlu0 %v2692
        %v2694 = vpop.xlane.xlu0 %2693
        %v2695 = vsel %vm512, %v2665, 0.0
        %2696 = vadd.xlane.f32.xlu0 %v2695
        %v2697 = vpop.xlane.xlu0 %2696
        %v2698 = vsel %vm512, %v2666, 0.0
        %2699 = vadd.xlane.f32.xlu0 %v2698
        %v2700 = vpop.xlane.xlu0 %2699
        %v2701 = vsel %vm512, %v2667, 0.0
        %2702 = vadd.xlane.f32.xlu0 %v2701
        %v2703 = vpop.xlane.xlu0 %2702
        %v2704 = vsel %vm512, %v2668, 0.0
        %2705 = vadd.xlane.f32.xlu0 %v2704
        %v2706 = vpop.xlane.xlu0 %2705
        %v2707 = vsel %vm512, %v2669, 0.0
        %2708 = vadd.xlane.f32.xlu0 %v2707
        %v2709 = vpop.xlane.xlu0 %2708
        %v2710 = vsel %vm512, %v2670, 0.0
        %2711 = vadd.xlane.f32.xlu0 %v2710
        %v2712 = vpop.xlane.xlu0 %2711
        %v2713 = vsel %vm512, %v2671, 0.0
        %2714 = vadd.xlane.f32.xlu0 %v2713
        %v2715 = vpop.xlane.xlu0 %2714
        %v2716 = vsel %vm512, %v2672, 0.0
        %2717 = vadd.xlane.f32.xlu0 %v2716
        %v2718 = vpop.xlane.xlu0 %2717
        %v2719 = vsel %vm512, %v2673, 0.0
        %2720 = vadd.xlane.f32.xlu0 %v2719
        %v2721 = vpop.xlane.xlu0 %2720
        %v2722 = vmul.f32 %v2676, %v698
        %v2723 = vmul.f32 %v2679, %v698
        %v2724 = vmul.f32 %v2682, %v698
        %v2725 = vmul.f32 %v2685, %v698
        %v2726 = vmul.f32 %v2688, %v698
        %v2727 = vmul.f32 %v2691, %v698
        %v2728 = vmul.f32 %v2694, %v698
        %v2729 = vmul.f32 %v2697, %v698
        %v2730 = vmul.f32 %v2700, %v698
        %v2731 = vmul.f32 %v2703, %v698
        %v2732 = vmul.f32 %v2706, %v698
        %v2733 = vmul.f32 %v2709, %v698
        %v2734 = vmul.f32 %v2712, %v698
        %v2735 = vmul.f32 %v2715, %v698
        %v2736 = vmul.f32 %v2718, %v698
        %v2737 = vmul.f32 %v2721, %v698
        %v2738 = vadd.f32 %v2722, 1e-05
        %v2739 = vadd.f32 %v2723, 1e-05
        %v2740 = vadd.f32 %v2724, 1e-05
        %v2741 = vadd.f32 %v2725, 1e-05
        %v2742 = vadd.f32 %v2726, 1e-05
        %v2743 = vadd.f32 %v2727, 1e-05
        %v2744 = vadd.f32 %v2728, 1e-05
        %v2745 = vadd.f32 %v2729, 1e-05
        %v2746 = vadd.f32 %v2730, 1e-05
        %v2747 = vadd.f32 %v2731, 1e-05
        %v2748 = vadd.f32 %v2732, 1e-05
        %v2749 = vadd.f32 %v2733, 1e-05
        %v2750 = vadd.f32 %v2734, 1e-05
        %v2751 = vadd.f32 %v2735, 1e-05
        %v2752 = vadd.f32 %v2736, 1e-05
        %v2753 = vadd.f32 %v2737, 1e-05
        %v2754 = vrsqrt.pop %v2738
        %v2755 = vrsqrt.pop %v2739
        %v2756 = vrsqrt.pop %v2740
        %v2757 = vrsqrt.pop %v2741
        %v2758 = vrsqrt.pop %v2742
        %v2759 = vrsqrt.pop %v2743
        %v2760 = vrsqrt.pop %v2744
        %v2761 = vrsqrt.pop %v2745
        %v2762 = vrsqrt.pop %v2746
        %v2763 = vrsqrt.pop %v2747
        %v2764 = vrsqrt.pop %v2748
        %v2765 = vrsqrt.pop %v2749
        %v2766 = vrsqrt.pop %v2750
        %v2767 = vrsqrt.pop %v2751
        %v2768 = vrsqrt.pop %v2752
        %v2769 = vrsqrt.pop %v2753
        %v2770 = vmul.f32 %v2642, %v2754
        %v2771 = vmul.f32 %v2643, %v2755
        %v2772 = vmul.f32 %v2644, %v2756
        %v2773 = vmul.f32 %v2645, %v2757
        %v2774 = vmul.f32 %v2646, %v2758
        %v2775 = vmul.f32 %v2647, %v2759
        %v2776 = vmul.f32 %v2648, %v2760
        %v2777 = vmul.f32 %v2649, %v2761
        %v2778 = vmul.f32 %v2650, %v2762
        %v2779 = vmul.f32 %v2651, %v2763
        %v2780 = vmul.f32 %v2652, %v2764
        %v2781 = vmul.f32 %v2653, %v2765
        %v2782 = vmul.f32 %v2654, %v2766
        %v2783 = vmul.f32 %v2655, %v2767
        %v2784 = vmul.f32 %v2656, %v2768
        %v2785 = vmul.f32 %v2657, %v2769
        %v2786 = vlaneseq
        %v2787 = vshrl.u32 %v2786, 7
        %v2788 = vsub.s32 4, %v2787
        %v2789 = vrot.slane %v1646, %v2788
        %v2790 = vmul.f32 %v2770, %v2789
        %v2791 = vmul.f32 %v2771, %v2789
        %v2792 = vmul.f32 %v2772, %v2789
        %v2793 = vmul.f32 %v2773, %v2789
        %v2794 = vmul.f32 %v2774, %v2789
        %v2795 = vmul.f32 %v2775, %v2789
        %v2796 = vmul.f32 %v2776, %v2789
        %v2797 = vmul.f32 %v2777, %v2789
        %v2798 = vmul.f32 %v2778, %v2789
        %v2799 = vmul.f32 %v2779, %v2789
        %v2800 = vmul.f32 %v2780, %v2789
        %v2801 = vmul.f32 %v2781, %v2789
        %v2802 = vmul.f32 %v2782, %v2789
        %v2803 = vmul.f32 %v2783, %v2789
        %v2804 = vmul.f32 %v2784, %v2789
        %v2805 = vmul.f32 %v2785, %v2789
        %v2806 = vlaneseq
        %v2807 = vshrl.u32 %v2806, 7
        %v2808 = vsub.s32 5, %v2807
        %v2809 = vrot.slane %v1646, %v2808
        %v2810 = vadd.f32 %v2790, %v2809
        %v2811 = vadd.f32 %v2791, %v2809
        %v2812 = vadd.f32 %v2792, %v2809
        %v2813 = vadd.f32 %v2793, %v2809
        %v2814 = vadd.f32 %v2794, %v2809
        %v2815 = vadd.f32 %v2795, %v2809
        %v2816 = vadd.f32 %v2796, %v2809
        %v2817 = vadd.f32 %v2797, %v2809
        %v2818 = vadd.f32 %v2798, %v2809
        %v2819 = vadd.f32 %v2799, %v2809
        %v2820 = vadd.f32 %v2800, %v2809
        %v2821 = vadd.f32 %v2801, %v2809
        %v2822 = vadd.f32 %v2802, %v2809
        %v2823 = vadd.f32 %v2803, %v2809
        %v2824 = vadd.f32 %v2804, %v2809
        %v2825 = vadd.f32 %v2805, %v2809
        %v2826 = vlaneseq
        %v2827 = vshrl.u32 %v2826, 7
        %v2828 = vsub.s32 1, %v2827
        %v2829 = vrot.slane %v308, %v2828
        %v2830 = vmul.f32 %v2810, %v2829
        %v2831 = vmul.f32 %v2811, %v2829
        %v2832 = vmul.f32 %v2812, %v2829
        %v2833 = vmul.f32 %v2813, %v2829
        %v2834 = vmul.f32 %v2814, %v2829
        %v2835 = vmul.f32 %v2815, %v2829
        %v2836 = vmul.f32 %v2816, %v2829
        %v2837 = vmul.f32 %v2817, %v2829
        %v2838 = vmul.f32 %v2818, %v2829
        %v2839 = vmul.f32 %v2819, %v2829
        %v2840 = vmul.f32 %v2820, %v2829
        %v2841 = vmul.f32 %v2821, %v2829
        %v2842 = vmul.f32 %v2822, %v2829
        %v2843 = vmul.f32 %v2823, %v2829
        %v2844 = vmul.f32 %v2824, %v2829
        %v2845 = vmul.f32 %v2825, %v2829
        %v2846 = vsel %vm512, %v2830, 0.0
        %2847 = vadd.xlane.f32.xlu0 %v2846
        %v2848 = vpop.xlane.xlu0 %2847
        %v2849 = vsel %vm512, %v2831, 0.0
        %2850 = vadd.xlane.f32.xlu0 %v2849
        %v2851 = vpop.xlane.xlu0 %2850
        %v2852 = vsel %vm512, %v2832, 0.0
        %2853 = vadd.xlane.f32.xlu0 %v2852
        %v2854 = vpop.xlane.xlu0 %2853
        %v2855 = vsel %vm512, %v2833, 0.0
        %2856 = vadd.xlane.f32.xlu0 %v2855
        %v2857 = vpop.xlane.xlu0 %2856
        %v2858 = vsel %vm512, %v2834, 0.0
        %2859 = vadd.xlane.f32.xlu0 %v2858
        %v2860 = vpop.xlane.xlu0 %2859
        %v2861 = vsel %vm512, %v2835, 0.0
        %2862 = vadd.xlane.f32.xlu0 %v2861
        %v2863 = vpop.xlane.xlu0 %2862
        %v2864 = vsel %vm512, %v2836, 0.0
        %2865 = vadd.xlane.f32.xlu0 %v2864
        %v2866 = vpop.xlane.xlu0 %2865
        %v2867 = vsel %vm512, %v2837, 0.0
        %2868 = vadd.xlane.f32.xlu0 %v2867
        %v2869 = vpop.xlane.xlu0 %2868
        %v2870 = vsel %vm512, %v2838, 0.0
        %2871 = vadd.xlane.f32.xlu0 %v2870
        %v2872 = vpop.xlane.xlu0 %2871
        %v2873 = vsel %vm512, %v2839, 0.0
        %2874 = vadd.xlane.f32.xlu0 %v2873
        %v2875 = vpop.xlane.xlu0 %2874
        %v2876 = vsel %vm512, %v2840, 0.0
        %2877 = vadd.xlane.f32.xlu0 %v2876
        %v2878 = vpop.xlane.xlu0 %2877
        %v2879 = vsel %vm512, %v2841, 0.0
        %2880 = vadd.xlane.f32.xlu0 %v2879
        %v2881 = vpop.xlane.xlu0 %2880
        %v2882 = vsel %vm512, %v2842, 0.0
        %2883 = vadd.xlane.f32.xlu0 %v2882
        %v2884 = vpop.xlane.xlu0 %2883
        %v2885 = vsel %vm512, %v2843, 0.0
        %2886 = vadd.xlane.f32.xlu0 %v2885
        %v2887 = vpop.xlane.xlu0 %2886
        %v2888 = vsel %vm512, %v2844, 0.0
        %2889 = vadd.xlane.f32.xlu0 %v2888
        %v2890 = vpop.xlane.xlu0 %2889
        %v2891 = vsel %vm512, %v2845, 0.0
        %2892 = vadd.xlane.f32.xlu0 %v2891
        %v2893 = vpop.xlane.xlu0 %2892
        %v2894 = vlaneseq
        %v2895 = vshrl.u32 %v2894, 7
        %v2896 = vsub.s32 2, %v2895
        %v2897 = vrot.slane %v308, %v2896
        %v2898 = vadd.f32 %v2848, %v2897
        %v2899 = vadd.f32 %v2851, %v2897
        %v2900 = vadd.f32 %v2854, %v2897
        %v2901 = vadd.f32 %v2857, %v2897
        %v2902 = vadd.f32 %v2860, %v2897
        %v2903 = vadd.f32 %v2863, %v2897
        %v2904 = vadd.f32 %v2866, %v2897
        %v2905 = vadd.f32 %v2869, %v2897
        %v2906 = vadd.f32 %v2872, %v2897
        %v2907 = vadd.f32 %v2875, %v2897
        %v2908 = vadd.f32 %v2878, %v2897
        %v2909 = vadd.f32 %v2881, %v2897
        %v2910 = vadd.f32 %v2884, %v2897
        %v2911 = vadd.f32 %v2887, %v2897
        %v2912 = vadd.f32 %v2890, %v2897
        %v2913 = vadd.f32 %v2893, %v2897
        %2915 = vset.pattern.permute.xlu0 0
        %2916 = vperm.xlu0 %2915, %v2898
        %v2917 = vpop.permute.xlu0 %2916
        %2920 = vset.pattern.permute.xlu0 0
        %2921 = vperm.xlu0 %2920, %v2899
        %v2922 = vpop.permute.xlu0 %2921
        %2925 = vset.pattern.permute.xlu0 0
        %2926 = vperm.xlu0 %2925, %v2900
        %v2927 = vpop.permute.xlu0 %2926
        %2930 = vset.pattern.permute.xlu0 0
        %2931 = vperm.xlu0 %2930, %v2901
        %v2932 = vpop.permute.xlu0 %2931
        %2935 = vset.pattern.permute.xlu0 0
        %2936 = vperm.xlu0 %2935, %v2902
        %v2937 = vpop.permute.xlu0 %2936
        %2940 = vset.pattern.permute.xlu0 0
        %2941 = vperm.xlu0 %2940, %v2903
        %v2942 = vpop.permute.xlu0 %2941
        %2945 = vset.pattern.permute.xlu0 0
        %2946 = vperm.xlu0 %2945, %v2904
        %v2947 = vpop.permute.xlu0 %2946
        %2950 = vset.pattern.permute.xlu0 0
        %2951 = vperm.xlu0 %2950, %v2905
        %v2952 = vpop.permute.xlu0 %2951
        %2955 = vset.pattern.permute.xlu0 0
        %2956 = vperm.xlu0 %2955, %v2906
        %v2957 = vpop.permute.xlu0 %2956
        %2960 = vset.pattern.permute.xlu0 0
        %2961 = vperm.xlu0 %2960, %v2907
        %v2962 = vpop.permute.xlu0 %2961
        %2965 = vset.pattern.permute.xlu0 0
        %2966 = vperm.xlu0 %2965, %v2908
        %v2967 = vpop.permute.xlu0 %2966
        %2970 = vset.pattern.permute.xlu0 0
        %2971 = vperm.xlu0 %2970, %v2909
        %v2972 = vpop.permute.xlu0 %2971
        %2975 = vset.pattern.permute.xlu0 0
        %2976 = vperm.xlu0 %2975, %v2910
        %v2977 = vpop.permute.xlu0 %2976
        %2980 = vset.pattern.permute.xlu0 0
        %2981 = vperm.xlu0 %2980, %v2911
        %v2982 = vpop.permute.xlu0 %2981
        %2985 = vset.pattern.permute.xlu0 0
        %2986 = vperm.xlu0 %2985, %v2912
        %v2987 = vpop.permute.xlu0 %2986
        %2990 = vset.pattern.permute.xlu0 0
        %2991 = vperm.xlu0 %2990, %v2913
        %v2992 = vpop.permute.xlu0 %2991
        %2994 = vst [vmem:[%s299] sm:$0xff] %v2917
        %2995 = vst [vmem:[%s299 + $0x8] sm:$0xff] %v2922
        %2996 = vst [vmem:[%s299 + $0x10] sm:$0xff] %v2927
        %2997 = vst [vmem:[%s299 + $0x18] sm:$0xff] %v2932
        %2998 = vst [vmem:[%s299 + $0x20] sm:$0xff] %v2937
        %2999 = vst [vmem:[%s299 + $0x28] sm:$0xff] %v2942
        %3000 = vst [vmem:[%s299 + $0x30] sm:$0xff] %v2947
        %3001 = vst [vmem:[%s299 + $0x38] sm:$0xff] %v2952
        %3002 = vst [vmem:[%s299 + $0x40] sm:$0xff] %v2957
        %3003 = vst [vmem:[%s299 + $0x48] sm:$0xff] %v2962
        %3004 = vst [vmem:[%s299 + $0x50] sm:$0xff] %v2967
        %3005 = vst [vmem:[%s299 + $0x58] sm:$0xff] %v2972
        %3006 = vst [vmem:[%s299 + $0x60] sm:$0xff] %v2977
        %3007 = vst [vmem:[%s299 + $0x68] sm:$0xff] %v2982
        %3008 = vst [vmem:[%s299 + $0x70] sm:$0xff] %v2987
        %3009 = vst [vmem:[%s299 + $0x78] sm:$0xff] %v2992
        %s3010 = sand.u32 %s203, 1
        %s3011 = scalar_lea.sflag [#allocation3], %s3010
        %s3012 = sand.u32 %s203, 1
        %s3013 = smul.addr %s3012, 128
        %s3014 = scalar_lea.vmem [#allocation2], %s3013
        // Predicated region
        $region53: #{tpu_custom_call.1} parent=51 // pred_check
          %p3015 = pneg %p213
        $region54: #{tpu_custom_call.1} parent=51 // pred_check_branch
          %3017 = sbr.rel (%p3015) target = $region56
        $region55: #{tpu_custom_call.1} parent=51 // pred_region
          %s3018 = smul.u32 16, %s22
          %s3020 = ssub.s32 2048, 2048
          %3021 = vsyncadd %s3011, %s3020
          %s3022 = smul.addr %s3018, 128
          %s3023 = scalar_lea.hbm %s8, %s3022
          %s3024 = sshll.u32 %s3014, 4
          %s3025 = int_to_ptr.vmem [resolvable:$true] %s3024
          %3030 = dma.vmem_to_hbm [thread:$0]  %s3025, 2048, %s3023, %s3011, 128, 128, 8
        $region56: #{tpu_custom_call.1} parent=51 // pred_fallthru
          _
      $region52: #{tpu_custom_call.1} parent=5 // pred_fallthru
        _
      %p3031 = scmp.le.s32.totalorder 2, %s17
      // Predicated region
      $region57: #{tpu_custom_call.1} parent=5 // pred_check
        %p3032 = pneg %p3031
      $region58: #{tpu_custom_call.1} parent=5 // pred_check_branch
        %3034 = sbr.rel (%p3032) target = $region60
      $region59: #{tpu_custom_call.1} parent=5 // pred_region
        %s3035 = ssub.s32 %s17, 2
        // Predicated region
        $region61: #{tpu_custom_call.1} parent=59 // pred_check
          %p3036 = pneg %p219
        $region62: #{tpu_custom_call.1} parent=59 // pred_check_branch
          %3038 = sbr.rel (%p3036) target = $region64
        $region63: #{tpu_custom_call.1} parent=59 // pred_region
          %s3039 = sand.u32 %s204, 1
          %s3040 = scalar_lea.sflag [#allocation3], %s3039
          %s3041 = sand.u32 %s204, 1
          %s3042 = smul.addr %s3041, 128
          %s3043 = scalar_lea.vmem [#allocation2], %s3042
          %3044 = dma.done %s3040, 2048
        $region64: #{tpu_custom_call.1} parent=59 // pred_fallthru
          _
      $region60: #{tpu_custom_call.1} parent=5 // pred_fallthru
        _
    $region6: #{tpu_custom_call.1} parent=1 // loop_footer
      %s21 = sadd.s32 1, %s17
    $region7: #{tpu_custom_call.1} parent=1 // loop_footer_branch
      %16 = sbr.rel target = $region3
    $region8: #{tpu_custom_call.1} parent=1 // loop_exit
      _
    %3045 = vsyncpa [#allocation3], 1
    %s3046 = scalar_lea.sflag [#allocation3], 1
    %3047 = vsyncpa %s3046, 1

</llo_original>
